<compile_context>
chip_gen: v7x
topology: tpu7x:2x2x1
jax: 0.10.0
libtpu: 0.0.40
codegen_flags: <defaults>
</compile_context>

<pallas_src>
import jax
import jax.numpy as jnp
import numpy as np
from jax.experimental import pallas as pl
from jax.experimental.pallas import tpu as pltpu

# ---------------- Game constants (synthetic config, consistent with the module) -------------
Game_Input_C_Global = 16
Game_Input_C_Card = 8
Game_Input_C_Person = 8
Game_Card_Num = 4
Game_Head_Num = 8          # != 0 -> person-head path with card padding
Game_Output_C = 10

# ---------------- Model hyper-parameters (encoderB, encoderF, mlpB, mlpF, globalF) ----------
ENCODER_B = 2
ENCODER_F = 32
MLP_B = 2
MLP_F = 32
GLOBAL_F = 16
BATCH = 2

C_TOTAL = (Game_Input_C_Global
           + Game_Card_Num * Game_Input_C_Card
           + Game_Head_Num * Game_Input_C_Person)          # 16 + 32 + 64 = 112

LANES = 128          # lane width of packed slabs
OUT_LANES = 128      # lane-dense output width (logits live in lanes [:Game_Output_C])
SEQ = Game_Head_Num  # tokens per request
REQ_TILE = 8         # requests per grid step -> output tile is a full (8,128) block
BS_TILE = REQ_TILE * SEQ


def _pad8(n):
    return ((n + 7) // 8) * 8


# ---------------- Packed weight slab layout (pre-transposed [in, out]; static) --------------
def _build_w_layout():
    off = {}
    r = 0

    def add(name, in_rows, out_cols):
        nonlocal r
        off[name] = (r, in_rows, out_cols)
        r += _pad8(in_rows)

    add("wg1", Game_Input_C_Global, GLOBAL_F)
    add("wg2", GLOBAL_F, ENCODER_F)
    add("wcard", Game_Input_C_Card, ENCODER_F)
    add("wperson", Game_Input_C_Person, ENCODER_F)
    for i in range(ENCODER_B):
        add(f"wq{i}", ENCODER_F, ENCODER_F)
        add(f"wv{i}", ENCODER_F, ENCODER_F)
        add(f"wglob{i}", GLOBAL_F, ENCODER_F)
        add(f"wff1_{i}", ENCODER_F, 2 * ENCODER_F)
        add(f"wff2_{i}", 2 * ENCODER_F, ENCODER_F)
    add("wbm1", GLOBAL_F, MLP_F)
    add("wbm2", ENCODER_F, MLP_F)
    for i in range(MLP_B):
        add(f"wm1_{i}", MLP_F, MLP_F)
        add(f"wm2_{i}", MLP_F, MLP_F)
    add("wout", MLP_F, OUT_LANES)             # only lanes [:Game_Output_C] are nonzero
    add("bout", 8, OUT_LANES)                 # row 0 holds the bias, rest zero
    add("E", BS_TILE, REQ_TILE)               # token-expansion selector (0/1)
    add("P", REQ_TILE, BS_TILE)               # mean-pool selector (1/SEQ)
    return off, r


W_OFF, W_ROWS = _build_w_layout()

# ---------------- Packed per-tile input layout ----------------------------------------------
X1_ROW = 0                                    # [REQ_TILE, Cg]
X2_ROW = REQ_TILE                             # [REQ_TILE*SEQ, Cc] (card rows >= Game_Card_Num zero)
X3_ROW = X2_ROW + BS_TILE                     # [REQ_TILE*SEQ, Cp]
TILE_ROWS = X3_ROW + BS_TILE                  # 8 + 64 + 64 = 136 rows per grid step


# ============================= Pallas kernel ================================================
def model_kernel(x_ref, w_ref, out_ref):
    RB, S, F = REQ_TILE, SEQ, ENCODER_F
    BS = RB * S

    def W(name):  # static carve-out of one (pre-transposed) weight from the slab
        r, rows, cols = W_OFF[name]
        return w_ref[r:r + rows, :cols]

    def lin(a, wT):  # [M, in] @ wT[in, out] -> [M, out]  (no weight transpose needed)
        return jax.lax.dot_general(a, wT, (((1,), (0,)), ((), ())),
                                   preferred_element_type=jnp.float32)

    x1 = x_ref[X1_ROW:X1_ROW + RB, :Game_Input_C_Global]      # [RB, Cg]
    x2f = x_ref[X2_ROW:X2_ROW + BS, :Game_Input_C_Card]       # [RB*S, Cc]
    x3f = x_ref[X3_ROW:X3_ROW + BS, :Game_Input_C_Person]     # [RB*S, Cp]

    E = W("E")                                                 # [BS, RB] 0/1 selector
    P = W("P")                                                 # [RB, BS] 1/S selector

    # ---- input heads ----
    gf = jnp.maximum(lin(x1, W("wg1")), 0.0)                   # [RB, globalF]
    gf_tok = jnp.dot(E, gf, preferred_element_type=jnp.float32)  # [BS, globalF] (once, reused)
    g2 = lin(gf_tok, W("wg2"))                                 # [BS, F]
    card = lin(x2f, W("wcard"))                                # [BS, F] (pad rows -> 0, bias-free)
    person = lin(x3f, W("wperson"))                            # [BS, F]
    h = jnp.maximum(g2 + card + person, 0.0)                   # [BS, F]

    # ---- loop-invariant precomputation (hoisted out of the encoder loop) ----
    tok_r = jax.lax.broadcasted_iota(jnp.int32, (BS, BS), 0)
    tok_c = jax.lax.broadcasted_iota(jnp.int32, (BS, BS), 1)
    if S & (S - 1) == 0:                                       # S is a power of two here
        shift = S.bit_length() - 1
        row_b = jax.lax.shift_right_logical(tok_r, shift)
        col_b = jax.lax.shift_right_logical(tok_c, shift)
    else:
        row_b = tok_r // S
        col_b = tok_c // S
    mask_add = jnp.where(row_b == col_b, 0.0, -1e30).astype(jnp.float32)   # additive mask
    gl = [lin(gf_tok, W(f"wglob{i}")) for i in range(ENCODER_B)]           # [BS, F] each

    # ---- encoder trunk (folded-batch attention, block-diagonal mask) ----
    for i in range(ENCODER_B):
        q = lin(h, W(f"wq{i}"))                                # [BS, F]
        v = lin(h, W(f"wv{i}"))                                # [BS, F]
        scores = jax.lax.dot_general(h, q, (((1,), (1,)), ((), ())),
                                     preferred_element_type=jnp.float32)   # [BS, BS] = h @ q.T
        scores = scores + mask_add
        scores = scores - jnp.max(scores, axis=1, keepdims=True)
        p = jnp.exp(scores)
        att = p * pl.reciprocal(jnp.sum(p, axis=1, keepdims=True), approx=False)
        y = jnp.dot(att, v, preferred_element_type=jnp.float32)            # [BS, F]
        y = jnp.maximum(y + gl[i], 0.0)
        henc = y + h                                           # residual (EncoderLayerSoftmax)
        yf = jnp.maximum(lin(henc, W(f"wff1_{i}")), 0.0)       # [BS, 2F]
        yf = jnp.maximum(lin(yf, W(f"wff2_{i}")), 0.0)         # [BS, F]
        h = yf + henc                                          # residual (EncoderLayerFull)

    # ---- pool over tokens (per request) via selector matmul ----
    hm = jnp.dot(P, h, preferred_element_type=jnp.float32)     # [RB, F]

    # ---- pre-MLP mix: relu(hm @ wbm2.T + gf @ wbm1.T) ----
    z = jnp.maximum(lin(hm, W("wbm2")) + lin(gf, W("wbm1")), 0.0)          # [RB, mlpF]

    # ---- MLP (resnet) trunk ----
    for i in range(MLP_B):
        t = jnp.maximum(lin(z, W(f"wm1_{i}")), 0.0)
        t = jnp.maximum(lin(t, W(f"wm2_{i}")), 0.0)
        z = t + z

    # ---- lane-dense output head: full (8,128) unmasked store ----
    rb = W_OFF["bout"][0]
    out_ref[...] = lin(z, W("wout")) + w_ref[rb:rb + 1, :]     # [RB, 128]


# ============================= Host-side packing ============================================
def pack_weights(params):
    (wg1, wg2, wcard, wperson, wq, wv, wglob, wff1, wff2,
     wbm1, wbm2, wm1, wm2, wout, bout) = params
    slab = jnp.zeros((W_ROWS, LANES), jnp.float32)

    def put(s, name, w_t):
        r, _, _ = W_OFF[name]
        return s.at[r:r + w_t.shape[0], :w_t.shape[1]].set(w_t.astype(jnp.float32))

    slab = put(slab, "wg1", wg1.T)
    slab = put(slab, "wg2", wg2.T)
    slab = put(slab, "wcard", wcard.T)
    slab = put(slab, "wperson", wperson.T)
    for i in range(ENCODER_B):
        slab = put(slab, f"wq{i}", wq[i].T)
        slab = put(slab, f"wv{i}", wv[i].T)
        slab = put(slab, f"wglob{i}", wglob[i].T)
        slab = put(slab, f"wff1_{i}", wff1[i].T)
        slab = put(slab, f"wff2_{i}", wff2[i].T)
    slab = put(slab, "wbm1", wbm1.T)
    slab = put(slab, "wbm2", wbm2.T)
    for i in range(MLP_B):
        slab = put(slab, f"wm1_{i}", wm1[i].T)
        slab = put(slab, f"wm2_{i}", wm2[i].T)
    slab = put(slab, "wout", wout.T)                    # [MLP_F, Game_Output_C] in lanes [:10]
    slab = put(slab, "bout", bout)                      # row 0, lanes [:Game_Output_C]
    # constant selector matrices (token expansion / mean pool) live in the slab too
    eye = jnp.eye(REQ_TILE, dtype=jnp.float32)
    slab = put(slab, "E", jnp.repeat(eye, SEQ, axis=0))               # [BS, RB]
    slab = put(slab, "P", jnp.repeat(eye, SEQ, axis=1) / float(SEQ))  # [RB, BS]
    return slab


def pack_inputs(x):
    """[B, C_TOTAL] -> [n_tiles * TILE_ROWS, 128] lane-padded slab (traced under jit)."""
    B = x.shape[0]
    n_tiles = -(-B // REQ_TILE)
    Bp = n_tiles * REQ_TILE
    Cg, Cc, Cp = Game_Input_C_Global, Game_Input_C_Card, Game_Input_C_Person

    xp = jnp.pad(x.astype(jnp.float32), ((0, Bp - B), (0, 0)))
    x1 = jnp.pad(xp[:, :Cg], ((0, 0), (0, LANES - Cg)))                       # [Bp, 128]
    x2 = xp[:, Cg:Cg + Game_Card_Num * Cc].reshape(Bp, Game_Card_Num, Cc)
    x2 = jnp.pad(x2, ((0, 0), (0, SEQ - Game_Card_Num), (0, LANES - Cc)))     # [Bp, S, 128]
    x3 = xp[:, Cg + Game_Card_Num * Cc:].reshape(Bp, SEQ, Cp)
    x3 = jnp.pad(x3, ((0, 0), (0, 0), (0, LANES - Cp)))                       # [Bp, S, 128]

    slab = jnp.concatenate(
        [x1.reshape(n_tiles, REQ_TILE, LANES),
         x2.reshape(n_tiles, REQ_TILE * SEQ, LANES),
         x3.reshape(n_tiles, REQ_TILE * SEQ, LANES)], axis=1)
    return slab.reshape(n_tiles * TILE_ROWS, LANES)


def _cost_estimate(n_tiles):
    RB, S, F, GF, MF = REQ_TILE, SEQ, ENCODER_F, GLOBAL_F, MLP_F
    BS = RB * S
    fl = 0
    fl += 2 * RB * Game_Input_C_Global * GF                      # gf
    fl += 2 * BS * RB * GF                                       # gf_tok
    fl += 2 * BS * GF * F                                        # g2
    fl += 2 * BS * Game_Input_C_Card * F + 2 * BS * Game_Input_C_Person * F
    fl += ENCODER_B * (2 * 2 * BS * F * F                        # q, v
                       + 2 * 2 * BS * BS * F                     # scores, att@v
                       + 2 * BS * GF * F                         # gl (hoisted)
                       + 2 * BS * F * 2 * F + 2 * BS * 2 * F * F)  # ff1, ff2
    fl += 2 * RB * BS * F                                        # mean pool
    fl += 2 * RB * F * MF + 2 * RB * GF * MF                     # before-MLP
    fl += MLP_B * 2 * (2 * RB * MF * MF)                         # resnet
    fl += 2 * RB * MF * OUT_LANES                                # output head
    bytes_acc = (W_ROWS * LANES
                 + n_tiles * (TILE_ROWS * LANES + REQ_TILE * OUT_LANES)) * 4
    return pl.CostEstimate(flops=fl * n_tiles,
                           transcendentals=ENCODER_B * BS * BS * n_tiles,
                           bytes_accessed=bytes_acc)


# ============================= Wrapper (single jitted dispatch) =============================
@jax.jit
def run_model(x, w_slab):
    B = x.shape[0]
    n_tiles = -(-B // REQ_TILE)
    x_slab = pack_inputs(x)
    out_pad = pl.pallas_call(
        model_kernel,
        grid=(n_tiles,),
        out_shape=jax.ShapeDtypeStruct((n_tiles * REQ_TILE, OUT_LANES), jnp.float32),
        in_specs=[pl.BlockSpec((TILE_ROWS, LANES), lambda i: (i, 0)),
                  pl.BlockSpec((W_ROWS, LANES), lambda i: (0, 0))],   # slab resident across steps
        out_specs=pl.BlockSpec((REQ_TILE, OUT_LANES), lambda i: (i, 0)),
        compiler_params=pltpu.CompilerParams(dimension_semantics=("parallel",)),
        cost_estimate=_cost_estimate(n_tiles),
    )(x_slab, w_slab)
    return out_pad[:B, :Game_Output_C]


# ============================= Deterministic parameter init =================================
def make_params(key):
    ks = jax.random.split(key, 15)

    def w(k, shape, scale=0.1):
        return jax.random.normal(k, shape, dtype=jnp.float32) * scale

    wg1 = w(ks[0], (GLOBAL_F, Game_Input_C_Global))        # inputheadGlobal1
    wg2 = w(ks[1], (ENCODER_F, GLOBAL_F))                  # inputheadGlobal2
    wcard = w(ks[2], (ENCODER_F, Game_Input_C_Card))       # inputheadCard
    wperson = w(ks[3], (ENCODER_F, Game_Input_C_Person))   # inputheadPerson
    wq = w(ks[4], (ENCODER_B, ENCODER_F, ENCODER_F))       # encoder lin_Q (stacked)
    wv = w(ks[5], (ENCODER_B, ENCODER_F, ENCODER_F))       # encoder lin_V
    wglob = w(ks[6], (ENCODER_B, ENCODER_F, GLOBAL_F))     # encoder lin_global
    wff1 = w(ks[7], (ENCODER_B, 2 * ENCODER_F, ENCODER_F)) # encoder ff1
    wff2 = w(ks[8], (ENCODER_B, ENCODER_F, 2 * ENCODER_F)) # encoder ff2
    wbm1 = w(ks[9], (MLP_F, GLOBAL_F))                     # linBeforeMLP1
    wbm2 = w(ks[10], (MLP_F, ENCODER_F))                   # linBeforeMLP2
    wm1 = w(ks[11], (MLP_B, MLP_F, MLP_F))                 # resnet lin1 (stacked)
    wm2 = w(ks[12], (MLP_B, MLP_F, MLP_F))                 # resnet lin2
    wout = w(ks[13], (Game_Output_C, MLP_F))               # outputhead weight
    bout = w(ks[14], (1, Game_Output_C))                   # outputhead bias
    return (wg1, wg2, wcard, wperson, wq, wv, wglob, wff1, wff2,
            wbm1, wbm2, wm1, wm2, wout, bout)


# ============================= Pure-JAX reference (mirrors the torch forward) ===============
def reference_forward(x, params):
    (wg1, wg2, wcard, wperson, wq, wv, wglob, wff1, wff2,
     wbm1, wbm2, wm1, wm2, wout, bout) = params
    B = x.shape[0]
    Cg, Cc, Cp = Game_Input_C_Global, Game_Input_C_Card, Game_Input_C_Person

    x1 = x[:, :Cg]
    x2 = x[:, Cg:Cg + Game_Card_Num * Cc].reshape(-1, Cc)
    x3 = x[:, Cg + Game_Card_Num * Cc:].reshape(-1, Cp)

    gf = jax.nn.relu(x1 @ wg1.T)
    card = (x2 @ wcard.T).reshape(B, Game_Card_Num, ENCODER_F)
    card = jnp.pad(card, ((0, 0), (0, Game_Head_Num - Game_Card_Num), (0, 0)))
    person = (x3 @ wperson.T).reshape(B, Game_Head_Num, ENCODER_F)
    h = jax.nn.relu((gf @ wg2.T)[:, None, :] + card + person)

    for i in range(ENCODER_B):
        hf = h.reshape(B * Game_Head_Num, ENCODER_F)
        q = (hf @ wq[i].T).reshape(B, Game_Head_Num, ENCODER_F)
        v = (hf @ wv[i].T).reshape(B, Game_Head_Num, ENCODER_F)
        att = jax.nn.softmax(jnp.einsum('bsf,btf->bst', h, q), axis=2)
        y = jnp.einsum('bst,btf->bsf', att, v)
        y = jax.nn.relu(y + (gf @ wglob[i].T)[:, None, :])
        henc = y + h
        yf = henc.reshape(B * Game_Head_Num, ENCODER_F)
        yf = jax.nn.relu(yf @ wff1[i].T)
        yf = jax.nn.relu(yf @ wff2[i].T)
        h = yf.reshape(B, Game_Head_Num, ENCODER_F) + henc

    hm = h.mean(axis=1)
    z = jax.nn.relu(hm @ wbm2.T + gf @ wbm1.T)
    for i in range(MLP_B):
        t = jax.nn.relu(z @ wm1[i].T)
        t = jax.nn.relu(t @ wm2[i].T)
        z = t + z
    return z @ wout.T + bout


# ============================= Main =========================================================
if __name__ == "__main__":
    key = jax.random.PRNGKey(0)
    kx, kp, kx2 = jax.random.split(key, 3)

    params = make_params(kp)
    w_slab = jax.block_until_ready(pack_weights(params))   # packed once, reused every call

    # --- small-shape check (batch = 2, as in the spec) ---
    x = jax.random.normal(kx, (BATCH, C_TOTAL), dtype=jnp.float32)
    out = jax.block_until_ready(run_model(x, w_slab))
    ref = jax.block_until_ready(reference_forward(x, params))
    assert out.shape == (BATCH, Game_Output_C), out.shape
    np.testing.assert_allclose(np.asarray(out), np.asarray(ref), rtol=2e-2, atol=2e-2)

    # --- multi-tile check (exercises the request grid / resident weight slab) ---
    xb = jax.random.normal(kx2, (10, C_TOTAL), dtype=jnp.float32)
    outb = jax.block_until_ready(run_model(xb, w_slab))
    refb = jax.block_until_ready(reference_forward(xb, params))
    assert outb.shape == (10, Game_Output_C), outb.shape
    np.testing.assert_allclose(np.asarray(outb), np.asarray(refb), rtol=2e-2, atol=2e-2)

    print("KERNEL_OK")
</pallas_src>

<mosaic_0001>
module attributes {stable_mosaic.version = 11 : i64} {
  func.func @model_kernel(%arg0: i32, %arg1: memref<136x128xf32, #tpu.memory_space<vmem>>, %arg2: memref<688x128xf32, #tpu.memory_space<vmem>>, %arg3: memref<8x128xf32, #tpu.memory_space<vmem>>) attributes {dimension_semantics = [#tpu.dimension_semantics<parallel>], iteration_bounds = array<i64: 1>, scalar_prefetch = 0 : i64, scratch_operands = 0 : i64, tpu.core_type = #tpu.core_type<tc>, window_params = [{transform_indices = @transform_0, window_bounds = array<i64: 136, 128>}, {pipeline_mode = #tpu.pipeline_mode<synchronous>, transform_indices = @transform_1, window_bounds = array<i64: 688, 128>}, {transform_indices = @transform_2, window_bounds = array<i64: 8, 128>}]} {
    %c0 = arith.constant 0 : index
    %c0_0 = arith.constant 0 : index
    %0 = vector.load %arg1[%c0, %c0_0] : memref<136x128xf32, #tpu.memory_space<vmem>>, vector<8x16xf32>
    %c8 = arith.constant 8 : index
    %c0_1 = arith.constant 0 : index
    %1 = vector.load %arg1[%c8, %c0_1] : memref<136x128xf32, #tpu.memory_space<vmem>>, vector<64x8xf32>
    %c72 = arith.constant 72 : index
    %c0_2 = arith.constant 0 : index
    %2 = vector.load %arg1[%c72, %c0_2] : memref<136x128xf32, #tpu.memory_space<vmem>>, vector<64x8xf32>
    %c616 = arith.constant 616 : index
    %c0_3 = arith.constant 0 : index
    %3 = vector.load %arg2[%c616, %c0_3] : memref<688x128xf32, #tpu.memory_space<vmem>>, vector<64x8xf32>
    %c680 = arith.constant 680 : index
    %c0_4 = arith.constant 0 : index
    %4 = vector.load %arg2[%c680, %c0_4] : memref<688x128xf32, #tpu.memory_space<vmem>>, vector<8x64xf32>
    %c0_5 = arith.constant 0 : index
    %c0_6 = arith.constant 0 : index
    %5 = vector.load %arg2[%c0_5, %c0_6] : memref<688x128xf32, #tpu.memory_space<vmem>>, vector<16x16xf32>
    %cst = arith.constant dense<0.000000e+00> : vector<8x16xf32>
    %6 = tpu.matmul %0, %5, %cst {dimension_numbers = #tpu.dot_dimension_numbers<[1], [0], [0], [1], [0, 0, 1, 1], [], []>} : vector<8x16xf32>, vector<16x16xf32>, vector<8x16xf32> -> vector<8x16xf32>
    %cst_7 = arith.constant 0.000000e+00 : f32
    %7 = vector.broadcast %cst_7 : f32 to vector<8x16xf32>
    %8 = arith.maximumf %6, %7 : vector<8x16xf32>
    %cst_8 = arith.constant dense<0.000000e+00> : vector<64x16xf32>
    %9 = tpu.matmul %3, %8, %cst_8 {dimension_numbers = #tpu.dot_dimension_numbers<[1], [0], [0], [1], [0, 0, 1, 1], [], []>} : vector<64x8xf32>, vector<8x16xf32>, vector<64x16xf32> -> vector<64x16xf32>
    %c16 = arith.constant 16 : index
    %c0_9 = arith.constant 0 : index
    %10 = vector.load %arg2[%c16, %c0_9] : memref<688x128xf32, #tpu.memory_space<vmem>>, vector<16x32xf32>
    %cst_10 = arith.constant dense<0.000000e+00> : vector<64x32xf32>
    %11 = tpu.matmul %9, %10, %cst_10 {dimension_numbers = #tpu.dot_dimension_numbers<[1], [0], [0], [1], [0, 0, 1, 1], [], []>} : vector<64x16xf32>, vector<16x32xf32>, vector<64x32xf32> -> vector<64x32xf32>
    %c32 = arith.constant 32 : index
    %c0_11 = arith.constant 0 : index
    %12 = vector.load %arg2[%c32, %c0_11] : memref<688x128xf32, #tpu.memory_space<vmem>>, vector<8x32xf32>
    %cst_12 = arith.constant dense<0.000000e+00> : vector<64x32xf32>
    %13 = tpu.matmul %1, %12, %cst_12 {dimension_numbers = #tpu.dot_dimension_numbers<[1], [0], [0], [1], [0, 0, 1, 1], [], []>} : vector<64x8xf32>, vector<8x32xf32>, vector<64x32xf32> -> vector<64x32xf32>
    %c40 = arith.constant 40 : index
    %c0_13 = arith.constant 0 : index
    %14 = vector.load %arg2[%c40, %c0_13] : memref<688x128xf32, #tpu.memory_space<vmem>>, vector<8x32xf32>
    %cst_14 = arith.constant dense<0.000000e+00> : vector<64x32xf32>
    %15 = tpu.matmul %2, %14, %cst_14 {dimension_numbers = #tpu.dot_dimension_numbers<[1], [0], [0], [1], [0, 0, 1, 1], [], []>} : vector<64x8xf32>, vector<8x32xf32>, vector<64x32xf32> -> vector<64x32xf32>
    %16 = arith.addf %11, %13 : vector<64x32xf32>
    %17 = arith.addf %16, %15 : vector<64x32xf32>
    %cst_15 = arith.constant 0.000000e+00 : f32
    %18 = vector.broadcast %cst_15 : f32 to vector<64x32xf32>
    %19 = arith.maximumf %17, %18 : vector<64x32xf32>
    %20 = tpu.iota {dimensions = array<i32: 0>} : vector<64x64xi32>
    %21 = tpu.iota {dimensions = array<i32: 1>} : vector<64x64xi32>
    %c3_i32 = arith.constant 3 : i32
    %22 = vector.broadcast %c3_i32 : i32 to vector<64x64xi32>
    %23 = arith.shrui %20, %22 : vector<64x64xi32>
    %c3_i32_16 = arith.constant 3 : i32
    %24 = vector.broadcast %c3_i32_16 : i32 to vector<64x64xi32>
    %25 = arith.shrui %21, %24 : vector<64x64xi32>
    %26 = arith.cmpi eq, %23, %25 : vector<64x64xi32>
    %cst_17 = arith.constant 0.000000e+00 : f32
    %cst_18 = arith.constant -1.000000e+30 : f32
    %27 = vector.broadcast %cst_17 : f32 to vector<64x64xf32>
    %28 = vector.broadcast %cst_18 : f32 to vector<64x64xf32>
    %29 = arith.select %26, %27, %28 : vector<64x64xi1>, vector<64x64xf32>
    %c112 = arith.constant 112 : index
    %c0_19 = arith.constant 0 : index
    %30 = vector.load %arg2[%c112, %c0_19] : memref<688x128xf32, #tpu.memory_space<vmem>>, vector<16x32xf32>
    %cst_20 = arith.constant dense<0.000000e+00> : vector<64x32xf32>
    %31 = tpu.matmul %9, %30, %cst_20 {dimension_numbers = #tpu.dot_dimension_numbers<[1], [0], [0], [1], [0, 0, 1, 1], [], []>} : vector<64x16xf32>, vector<16x32xf32>, vector<64x32xf32> -> vector<64x32xf32>
    %c288 = arith.constant 288 : index
    %c0_21 = arith.constant 0 : index
    %32 = vector.load %arg2[%c288, %c0_21] : memref<688x128xf32, #tpu.memory_space<vmem>>, vector<16x32xf32>
    %cst_22 = arith.constant dense<0.000000e+00> : vector<64x32xf32>
    %33 = tpu.matmul %9, %32, %cst_22 {dimension_numbers = #tpu.dot_dimension_numbers<[1], [0], [0], [1], [0, 0, 1, 1], [], []>} : vector<64x16xf32>, vector<16x32xf32>, vector<64x32xf32> -> vector<64x32xf32>
    %c48 = arith.constant 48 : index
    %c0_23 = arith.constant 0 : index
    %34 = vector.load %arg2[%c48, %c0_23] : memref<688x128xf32, #tpu.memory_space<vmem>>, vector<32x32xf32>
    %cst_24 = arith.constant dense<0.000000e+00> : vector<64x32xf32>
    %35 = tpu.matmul %19, %34, %cst_24 {dimension_numbers = #tpu.dot_dimension_numbers<[1], [0], [0], [1], [0, 0, 1, 1], [], []>} : vector<64x32xf32>, vector<32x32xf32>, vector<64x32xf32> -> vector<64x32xf32>
    %c80 = arith.constant 80 : index
    %c0_25 = arith.constant 0 : index
    %36 = vector.load %arg2[%c80, %c0_25] : memref<688x128xf32, #tpu.memory_space<vmem>>, vector<32x32xf32>
    %cst_26 = arith.constant dense<0.000000e+00> : vector<64x32xf32>
    %37 = tpu.matmul %19, %36, %cst_26 {dimension_numbers = #tpu.dot_dimension_numbers<[1], [0], [0], [1], [0, 0, 1, 1], [], []>} : vector<64x32xf32>, vector<32x32xf32>, vector<64x32xf32> -> vector<64x32xf32>
    %cst_27 = arith.constant dense<0.000000e+00> : vector<64x64xf32>
    %38 = tpu.matmul %19, %35, %cst_27 {dimension_numbers = #tpu.dot_dimension_numbers<[1], [1], [0], [0], [0, 0, 1, 0], [], []>} : vector<64x32xf32>, vector<64x32xf32>, vector<64x64xf32> -> vector<64x64xf32>
    %39 = arith.addf %38, %29 : vector<64x64xf32>
    %cst_28 = arith.constant dense<0xFF800000> : vector<64xf32>
    %40 = vector.multi_reduction <maximumf>, %39, %cst_28 [1] : vector<64x64xf32> to vector<64xf32>
    %41 = vector.shape_cast %40 : vector<64xf32> to vector<64x1xf32>
    %42 = vector.broadcast %41 : vector<64x1xf32> to vector<64x64xf32>
    %43 = arith.subf %39, %42 : vector<64x64xf32>
    %44 = math.exp %43 : vector<64x64xf32>
    %cst_29 = arith.constant dense<0.000000e+00> : vector<64xf32>
    %45 = vector.multi_reduction <add>, %44, %cst_29 [1] : vector<64x64xf32> to vector<64xf32>
    %46 = vector.shape_cast %45 : vector<64xf32> to vector<64x1xf32>
    %47 = tpu.reciprocal %46 : vector<64x1xf32> -> vector<64x1xf32>
    %48 = vector.broadcast %47 : vector<64x1xf32> to vector<64x64xf32>
    %49 = arith.mulf %44, %48 : vector<64x64xf32>
    %cst_30 = arith.constant dense<0.000000e+00> : vector<64x32xf32>
    %50 = tpu.matmul %49, %37, %cst_30 {dimension_numbers = #tpu.dot_dimension_numbers<[1], [0], [0], [1], [0, 0, 1, 1], [], []>} : vector<64x64xf32>, vector<64x32xf32>, vector<64x32xf32> -> vector<64x32xf32>
    %51 = arith.addf %50, %31 : vector<64x32xf32>
    %cst_31 = arith.constant 0.000000e+00 : f32
    %52 = vector.broadcast %cst_31 : f32 to vector<64x32xf32>
    %53 = arith.maximumf %51, %52 : vector<64x32xf32>
    %54 = arith.addf %53, %19 : vector<64x32xf32>
    %c128 = arith.constant 128 : index
    %c0_32 = arith.constant 0 : index
    %55 = vector.load %arg2[%c128, %c0_32] : memref<688x128xf32, #tpu.memory_space<vmem>>, vector<32x64xf32>
    %cst_33 = arith.constant dense<0.000000e+00> : vector<64x64xf32>
    %56 = tpu.matmul %54, %55, %cst_33 {dimension_numbers = #tpu.dot_dimension_numbers<[1], [0], [0], [1], [0, 0, 1, 1], [], []>} : vector<64x32xf32>, vector<32x64xf32>, vector<64x64xf32> -> vector<64x64xf32>
    %cst_34 = arith.constant 0.000000e+00 : f32
    %57 = vector.broadcast %cst_34 : f32 to vector<64x64xf32>
    %58 = arith.maximumf %56, %57 : vector<64x64xf32>
    %c160 = arith.constant 160 : index
    %c0_35 = arith.constant 0 : index
    %59 = vector.load %arg2[%c160, %c0_35] : memref<688x128xf32, #tpu.memory_space<vmem>>, vector<64x32xf32>
    %cst_36 = arith.constant dense<0.000000e+00> : vector<64x32xf32>
    %60 = tpu.matmul %58, %59, %cst_36 {dimension_numbers = #tpu.dot_dimension_numbers<[1], [0], [0], [1], [0, 0, 1, 1], [], []>} : vector<64x64xf32>, vector<64x32xf32>, vector<64x32xf32> -> vector<64x32xf32>
    %cst_37 = arith.constant 0.000000e+00 : f32
    %61 = vector.broadcast %cst_37 : f32 to vector<64x32xf32>
    %62 = arith.maximumf %60, %61 : vector<64x32xf32>
    %63 = arith.addf %62, %54 : vector<64x32xf32>
    %c224 = arith.constant 224 : index
    %c0_38 = arith.constant 0 : index
    %64 = vector.load %arg2[%c224, %c0_38] : memref<688x128xf32, #tpu.memory_space<vmem>>, vector<32x32xf32>
    %cst_39 = arith.constant dense<0.000000e+00> : vector<64x32xf32>
    %65 = tpu.matmul %63, %64, %cst_39 {dimension_numbers = #tpu.dot_dimension_numbers<[1], [0], [0], [1], [0, 0, 1, 1], [], []>} : vector<64x32xf32>, vector<32x32xf32>, vector<64x32xf32> -> vector<64x32xf32>
    %c256 = arith.constant 256 : index
    %c0_40 = arith.constant 0 : index
    %66 = vector.load %arg2[%c256, %c0_40] : memref<688x128xf32, #tpu.memory_space<vmem>>, vector<32x32xf32>
    %cst_41 = arith.constant dense<0.000000e+00> : vector<64x32xf32>
    %67 = tpu.matmul %63, %66, %cst_41 {dimension_numbers = #tpu.dot_dimension_numbers<[1], [0], [0], [1], [0, 0, 1, 1], [], []>} : vector<64x32xf32>, vector<32x32xf32>, vector<64x32xf32> -> vector<64x32xf32>
    %cst_42 = arith.constant dense<0.000000e+00> : vector<64x64xf32>
    %68 = tpu.matmul %63, %65, %cst_42 {dimension_numbers = #tpu.dot_dimension_numbers<[1], [1], [0], [0], [0, 0, 1, 0], [], []>} : vector<64x32xf32>, vector<64x32xf32>, vector<64x64xf32> -> vector<64x64xf32>
    %69 = arith.addf %68, %29 : vector<64x64xf32>
    %cst_43 = arith.constant dense<0xFF800000> : vector<64xf32>
    %70 = vector.multi_reduction <maximumf>, %69, %cst_43 [1] : vector<64x64xf32> to vector<64xf32>
    %71 = vector.shape_cast %70 : vector<64xf32> to vector<64x1xf32>
    %72 = vector.broadcast %71 : vector<64x1xf32> to vector<64x64xf32>
    %73 = arith.subf %69, %72 : vector<64x64xf32>
    %74 = math.exp %73 : vector<64x64xf32>
    %cst_44 = arith.constant dense<0.000000e+00> : vector<64xf32>
    %75 = vector.multi_reduction <add>, %74, %cst_44 [1] : vector<64x64xf32> to vector<64xf32>
    %76 = vector.shape_cast %75 : vector<64xf32> to vector<64x1xf32>
    %77 = tpu.reciprocal %76 : vector<64x1xf32> -> vector<64x1xf32>
    %78 = vector.broadcast %77 : vector<64x1xf32> to vector<64x64xf32>
    %79 = arith.mulf %74, %78 : vector<64x64xf32>
    %cst_45 = arith.constant dense<0.000000e+00> : vector<64x32xf32>
    %80 = tpu.matmul %79, %67, %cst_45 {dimension_numbers = #tpu.dot_dimension_numbers<[1], [0], [0], [1], [0, 0, 1, 1], [], []>} : vector<64x64xf32>, vector<64x32xf32>, vector<64x32xf32> -> vector<64x32xf32>
    %81 = arith.addf %80, %33 : vector<64x32xf32>
    %cst_46 = arith.constant 0.000000e+00 : f32
    %82 = vector.broadcast %cst_46 : f32 to vector<64x32xf32>
    %83 = arith.maximumf %81, %82 : vector<64x32xf32>
    %84 = arith.addf %83, %63 : vector<64x32xf32>
    %c304 = arith.constant 304 : index
    %c0_47 = arith.constant 0 : index
    %85 = vector.load %arg2[%c304, %c0_47] : memref<688x128xf32, #tpu.memory_space<vmem>>, vector<32x64xf32>
    %cst_48 = arith.constant dense<0.000000e+00> : vector<64x64xf32>
    %86 = tpu.matmul %84, %85, %cst_48 {dimension_numbers = #tpu.dot_dimension_numbers<[1], [0], [0], [1], [0, 0, 1, 1], [], []>} : vector<64x32xf32>, vector<32x64xf32>, vector<64x64xf32> -> vector<64x64xf32>
    %cst_49 = arith.constant 0.000000e+00 : f32
    %87 = vector.broadcast %cst_49 : f32 to vector<64x64xf32>
    %88 = arith.maximumf %86, %87 : vector<64x64xf32>
    %c336 = arith.constant 336 : index
    %c0_50 = arith.constant 0 : index
    %89 = vector.load %arg2[%c336, %c0_50] : memref<688x128xf32, #tpu.memory_space<vmem>>, vector<64x32xf32>
    %cst_51 = arith.constant dense<0.000000e+00> : vector<64x32xf32>
    %90 = tpu.matmul %88, %89, %cst_51 {dimension_numbers = #tpu.dot_dimension_numbers<[1], [0], [0], [1], [0, 0, 1, 1], [], []>} : vector<64x64xf32>, vector<64x32xf32>, vector<64x32xf32> -> vector<64x32xf32>
    %cst_52 = arith.constant 0.000000e+00 : f32
    %91 = vector.broadcast %cst_52 : f32 to vector<64x32xf32>
    %92 = arith.maximumf %90, %91 : vector<64x32xf32>
    %93 = arith.addf %92, %84 : vector<64x32xf32>
    %cst_53 = arith.constant dense<0.000000e+00> : vector<8x32xf32>
    %94 = tpu.matmul %4, %93, %cst_53 {dimension_numbers = #tpu.dot_dimension_numbers<[1], [0], [0], [1], [0, 0, 1, 1], [], []>} : vector<8x64xf32>, vector<64x32xf32>, vector<8x32xf32> -> vector<8x32xf32>
    %c416 = arith.constant 416 : index
    %c0_54 = arith.constant 0 : index
    %95 = vector.load %arg2[%c416, %c0_54] : memref<688x128xf32, #tpu.memory_space<vmem>>, vector<32x32xf32>
    %cst_55 = arith.constant dense<0.000000e+00> : vector<8x32xf32>
    %96 = tpu.matmul %94, %95, %cst_55 {dimension_numbers = #tpu.dot_dimension_numbers<[1], [0], [0], [1], [0, 0, 1, 1], [], []>} : vector<8x32xf32>, vector<32x32xf32>, vector<8x32xf32> -> vector<8x32xf32>
    %c400 = arith.constant 400 : index
    %c0_56 = arith.constant 0 : index
    %97 = vector.load %arg2[%c400, %c0_56] : memref<688x128xf32, #tpu.memory_space<vmem>>, vector<16x32xf32>
    %cst_57 = arith.constant dense<0.000000e+00> : vector<8x32xf32>
    %98 = tpu.matmul %8, %97, %cst_57 {dimension_numbers = #tpu.dot_dimension_numbers<[1], [0], [0], [1], [0, 0, 1, 1], [], []>} : vector<8x16xf32>, vector<16x32xf32>, vector<8x32xf32> -> vector<8x32xf32>
    %99 = arith.addf %96, %98 : vector<8x32xf32>
    %cst_58 = arith.constant 0.000000e+00 : f32
    %100 = vector.broadcast %cst_58 : f32 to vector<8x32xf32>
    %101 = arith.maximumf %99, %100 : vector<8x32xf32>
    %c448 = arith.constant 448 : index
    %c0_59 = arith.constant 0 : index
    %102 = vector.load %arg2[%c448, %c0_59] : memref<688x128xf32, #tpu.memory_space<vmem>>, vector<32x32xf32>
    %cst_60 = arith.constant dense<0.000000e+00> : vector<8x32xf32>
    %103 = tpu.matmul %101, %102, %cst_60 {dimension_numbers = #tpu.dot_dimension_numbers<[1], [0], [0], [1], [0, 0, 1, 1], [], []>} : vector<8x32xf32>, vector<32x32xf32>, vector<8x32xf32> -> vector<8x32xf32>
    %cst_61 = arith.constant 0.000000e+00 : f32
    %104 = vector.broadcast %cst_61 : f32 to vector<8x32xf32>
    %105 = arith.maximumf %103, %104 : vector<8x32xf32>
    %c480 = arith.constant 480 : index
    %c0_62 = arith.constant 0 : index
    %106 = vector.load %arg2[%c480, %c0_62] : memref<688x128xf32, #tpu.memory_space<vmem>>, vector<32x32xf32>
    %cst_63 = arith.constant dense<0.000000e+00> : vector<8x32xf32>
    %107 = tpu.matmul %105, %106, %cst_63 {dimension_numbers = #tpu.dot_dimension_numbers<[1], [0], [0], [1], [0, 0, 1, 1], [], []>} : vector<8x32xf32>, vector<32x32xf32>, vector<8x32xf32> -> vector<8x32xf32>
    %cst_64 = arith.constant 0.000000e+00 : f32
    %108 = vector.broadcast %cst_64 : f32 to vector<8x32xf32>
    %109 = arith.maximumf %107, %108 : vector<8x32xf32>
    %110 = arith.addf %109, %101 : vector<8x32xf32>
    %c512 = arith.constant 512 : index
    %c0_65 = arith.constant 0 : index
    %111 = vector.load %arg2[%c512, %c0_65] : memref<688x128xf32, #tpu.memory_space<vmem>>, vector<32x32xf32>
    %cst_66 = arith.constant dense<0.000000e+00> : vector<8x32xf32>
    %112 = tpu.matmul %110, %111, %cst_66 {dimension_numbers = #tpu.dot_dimension_numbers<[1], [0], [0], [1], [0, 0, 1, 1], [], []>} : vector<8x32xf32>, vector<32x32xf32>, vector<8x32xf32> -> vector<8x32xf32>
    %cst_67 = arith.constant 0.000000e+00 : f32
    %113 = vector.broadcast %cst_67 : f32 to vector<8x32xf32>
    %114 = arith.maximumf %112, %113 : vector<8x32xf32>
    %c544 = arith.constant 544 : index
    %c0_68 = arith.constant 0 : index
    %115 = vector.load %arg2[%c544, %c0_68] : memref<688x128xf32, #tpu.memory_space<vmem>>, vector<32x32xf32>
    %cst_69 = arith.constant dense<0.000000e+00> : vector<8x32xf32>
    %116 = tpu.matmul %114, %115, %cst_69 {dimension_numbers = #tpu.dot_dimension_numbers<[1], [0], [0], [1], [0, 0, 1, 1], [], []>} : vector<8x32xf32>, vector<32x32xf32>, vector<8x32xf32> -> vector<8x32xf32>
    %cst_70 = arith.constant 0.000000e+00 : f32
    %117 = vector.broadcast %cst_70 : f32 to vector<8x32xf32>
    %118 = arith.maximumf %116, %117 : vector<8x32xf32>
    %119 = arith.addf %118, %110 : vector<8x32xf32>
    %c576 = arith.constant 576 : index
    %c0_71 = arith.constant 0 : index
    %120 = vector.load %arg2[%c576, %c0_71] : memref<688x128xf32, #tpu.memory_space<vmem>>, vector<32x128xf32>
    %cst_72 = arith.constant dense<0.000000e+00> : vector<8x128xf32>
    %121 = tpu.matmul %119, %120, %cst_72 {dimension_numbers = #tpu.dot_dimension_numbers<[1], [0], [0], [1], [0, 0, 1, 1], [], []>} : vector<8x32xf32>, vector<32x128xf32>, vector<8x128xf32> -> vector<8x128xf32>
    %c608 = arith.constant 608 : index
    %c0_73 = arith.constant 0 : index
    %122 = vector.load %arg2[%c608, %c0_73] : memref<688x128xf32, #tpu.memory_space<vmem>>, vector<1x128xf32>
    %123 = vector.broadcast %122 : vector<1x128xf32> to vector<8x128xf32>
    %124 = arith.addf %121, %123 : vector<8x128xf32>
    %c0_74 = arith.constant 0 : index
    %c0_75 = arith.constant 0 : index
    %125 = vector.load %arg3[%c0_74, %c0_75] : memref<8x128xf32, #tpu.memory_space<vmem>>, vector<8x128xf32>
    tpu.vector_store %arg3[%c0_74, %c0_75], %124 {strides = array<i32>} : memref<8x128xf32, #tpu.memory_space<vmem>>, vector<8x128xf32>,
    return
  }
  func.func @transform_0(%arg0: i32) -> (i32, i32) {
    %c0_i32 = arith.constant 0 : i32
    %c0_i32_0 = arith.constant 0 : i32
    return %arg0, %c0_i32 : i32, i32
  }
  func.func @transform_1(%arg0: i32) -> (i32, i32) {
    %c0_i32 = arith.constant 0 : i32
    %c0_i32_0 = arith.constant 0 : i32
    %c0_i32_1 = arith.constant 0 : i32
    return %c0_i32, %c0_i32_0 : i32, i32
  }
  func.func @transform_2(%arg0: i32) -> (i32, i32) {
    %c0_i32 = arith.constant 0 : i32
    %c0_i32_0 = arith.constant 0 : i32
    return %arg0, %c0_i32 : i32, i32
  }
}

</mosaic_0001>

<llo_original>
// kernel: run_model.1
$region0: #{run_model.1}
  #allocation0 [shape = 'u32[]', space=smem, size = 0x4, offset = 0x4, fixed_abs, tag = 'smem constant byte address 0x4 - core index']
  #allocation1 [shape = 'u32[144,128]{1,0:T(1,128)}', space=vmem, size = 0x12000, scoped, tag = 'internal scratch']
  %s0 = inlined_call_operand.vmem [shape: f32[136,128], index: 0, kind: input, shape index: {}]
  %s1 = inlined_call_operand.hbm [shape: f32[688,128], index: 1, kind: input, shape index: {}]
  %s2 = inlined_call_operand.vmem [shape: f32[8,128], index: 2, kind: output, shape index: {}]
  %s3 = sld [smem:[#allocation0]]
  $region22: #{run_model.1} parent=0
    _
  %s5 = ssub.s32 1, %s3
  %s6 = scalar_select 0, %s5, %s3
  $region1: #{run_model.1} parent=0
    #allocation2 [shape = 'u8[352256]{0}', space=vmem, size = 0x56000, scoped, tag = 'input window, operand 1, single buffered']
    #allocation3 [shape = 's32[1]{0}', space=sflag, size = 0x4, scoped, tag = 'scoped memory for run_model.1']
    %7 = vsyncpa [#allocation3], 0
    // Predicated region
    $region2: #{run_model.1} parent=1 // pred_check
      _
    $region3: #{run_model.1} parent=1 // pred_check_branch
      %9 = sbr.rel (0) target = $region5
    $region4: #{run_model.1} parent=1 // pred_region
      _
    $region5: #{run_model.1} parent=1 // pred_fallthru
      _
    // Predicated region
    $region6: #{run_model.1} parent=1 // pred_check
      _
    $region7: #{run_model.1} parent=1 // pred_check_branch
      %11 = sbr.rel (0) target = $region9
    $region8: #{run_model.1} parent=1 // pred_region
      %s13 = ssub.s32 11008, 11008
      %14 = vsyncadd [#allocation3], %s13
      %s15 = sshll.u32 [#allocation2], 4
      %s16 = int_to_ptr.vmem [resolvable:$true] %s15
      %21 = dma.hbm_to_vmem [thread:$0]  %s1, 11008, %s16, [#allocation3], 128, 128, 8
    $region9: #{run_model.1} parent=1 // pred_fallthru
      _
    // Predicated region
    $region10: #{run_model.1} parent=1 // pred_check
      _
    $region11: #{run_model.1} parent=1 // pred_check_branch
      %23 = sbr.rel (0) target = $region13
    $region12: #{run_model.1} parent=1 // pred_region
      %24 = dma.done [#allocation3], 11008
    $region13: #{run_model.1} parent=1 // pred_fallthru
      _
    %v25 = vld [vmem:[%s0] sm:$0xff]
    %v26 = vld [vmem:[%s0 + $0x8] sm:$0xff]
    %v27 = vld [vmem:[%s0 + $0x10] sm:$0xff]
    %v28 = vld [vmem:[%s0 + $0x18] sm:$0xff]
    %v29 = vld [vmem:[%s0 + $0x20] sm:$0xff]
    %v30 = vld [vmem:[%s0 + $0x28] sm:$0xff]
    %v31 = vld [vmem:[%s0 + $0x30] sm:$0xff]
    %v32 = vld [vmem:[%s0 + $0x38] sm:$0xff]
    %v33 = vld [vmem:[%s0 + $0x40] sm:$0xff]
    %v34 = vld [vmem:[%s0 + $0x48] sm:$0xff]
    %v35 = vld [vmem:[%s0 + $0x50] sm:$0xff]
    %v36 = vld [vmem:[%s0 + $0x58] sm:$0xff]
    %v37 = vld [vmem:[%s0 + $0x60] sm:$0xff]
    %v38 = vld [vmem:[%s0 + $0x68] sm:$0xff]
    %v39 = vld [vmem:[%s0 + $0x70] sm:$0xff]
    %v40 = vld [vmem:[%s0 + $0x78] sm:$0xff]
    %v41 = vld [vmem:[%s0 + $0x80] sm:$0xff]
    %v42 = vld [vmem:[#allocation2 + $0x268] sm:$0xff]
    %v43 = vld [vmem:[#allocation2 + $0x270] sm:$0xff]
    %v44 = vld [vmem:[#allocation2 + $0x278] sm:$0xff]
    %v45 = vld [vmem:[#allocation2 + $0x280] sm:$0xff]
    %v46 = vld [vmem:[#allocation2 + $0x288] sm:$0xff]
    %v47 = vld [vmem:[#allocation2 + $0x290] sm:$0xff]
    %v48 = vld [vmem:[#allocation2 + $0x298] sm:$0xff]
    %v49 = vld [vmem:[#allocation2 + $0x2a0] sm:$0xff]
    %v50 = vld [vmem:[#allocation2 + $0x2a8] sm:$0xff]
    %v51 = vld [vmem:[#allocation2] sm:$0xff]
    %v52 = vld [vmem:[#allocation2 + $0x8] sm:$0xff]
    %vm53 = vcmask 130048
    %v55 = vsel %vm53, %v25, 0
    %57 = vmatprep.subr.mxu0 0.0
    %58 = vmatpush1.msra.mxu0 %v51
    %59 = vmatprep.subr.mxu0 0.0
    %60 = vmatpush1.msra.mxu0 %v52
    %61 = vmatprep.subr.mxu0 0.0
    %62 = vmatpush1.msra.mxu0 0.0
    %63 = vmatprep.subr.mxu0 0.0
    %64 = vmatpush1.msra.mxu0 0.0
    %65 = vmatprep.subr.mxu0 0.0
    %66 = vmatpush1.msra.mxu0 0.0
    %67 = vmatprep.subr.mxu0 0.0
    %68 = vmatpush1.msra.mxu0 0.0
    %69 = vmatprep.subr.mxu0 0.0
    %70 = vmatpush1.msra.mxu0 0.0
    %71 = vmatprep.subr.mxu0 0.0
    %72 = vmatpush1.msra.mxu0 0.0
    %73 = vmatprep.subr.mxu0 0.0
    %74 = vmatpush1.msra.mxu0 0.0
    %75 = vmatprep.subr.mxu0 0.0
    %76 = vmatpush1.msra.mxu0 0.0
    %77 = vmatprep.subr.mxu0 0.0
    %78 = vmatpush1.msra.mxu0 0.0
    %79 = vmatprep.subr.mxu0 0.0
    %80 = vmatpush1.msra.mxu0 0.0
    %81 = vmatprep.subr.mxu0 0.0
    %82 = vmatpush1.msra.mxu0 0.0
    %83 = vmatprep.subr.mxu0 0.0
    %84 = vmatpush1.msra.mxu0 0.0
    %85 = vmatprep.subr.mxu0 0.0
    %86 = vmatpush1.msra.mxu0 0.0
    %87 = vmatprep.subr.mxu0 0.0
    %88 = vmatpush1.msra.mxu0 0.0
    %89 = vmatprep.subr.mxu0 0.0
    %90 = vmatpush1.msra.mxu0 0.0
    %91 = vmatprep.subr.mxu0 0.0
    %92 = vmatpush1.msra.mxu0 0.0
    %93 = vmatprep.subr.mxu0 0.0
    %94 = vmatpush1.msra.mxu0 0.0
    %95 = vmatprep.subr.mxu0 0.0
    %96 = vmatpush1.msra.mxu0 0.0
    %97 = vmatprep.subr.mxu0 0.0
    %98 = vmatpush1.msra.mxu0 0.0
    %99 = vmatprep.subr.mxu0 0.0
    %100 = vmatpush1.msra.mxu0 0.0
    %101 = vmatprep.subr.mxu0 0.0
    %102 = vmatpush1.msra.mxu0 0.0
    %103 = vmatprep.subr.mxu0 0.0
    %104 = vmatpush1.msra.mxu0 0.0
    %105 = vmatprep.subr.mxu0 0.0
    %106 = vmatpush1.msra.mxu0 0.0
    %107 = vmatprep.subr.mxu0 0.0
    %108 = vmatpush1.msra.mxu0 0.0
    %109 = vmatprep.subr.mxu0 0.0
    %110 = vmatpush1.msra.mxu0 0.0
    %111 = vmatprep.subr.mxu0 0.0
    %112 = vmatpush1.msra.mxu0 0.0
    %113 = vmatprep.subr.mxu0 0.0
    %114 = vmatpush1.msra.mxu0 0.0
    %115 = vmatprep.subr.mxu0 0.0
    %116 = vmatpush1.msra.mxu0 0.0
    %117 = vmatprep.subr.mxu0 0.0
    %118 = vmatpush1.msra.mxu0 0.0
    %119 = vmatprep.subr.mxu0 0.0
    %120 = vmatpush1.msra.mxu0 0.0
    %121 = vmatprep.mubr.f32.mxu0 0.0
    %122 = vmatmul.mubr.f32.gmra.mrb[0].mxu0 %v55
    %v123 = vpop.f32.mrb[0].mxu0
    %v124 = vadd.f32 0.0, %v123
    %v125 = vpop.f32.mrb[0].mxu0
    %126 = vdwg.mxu0
    %v127 = vmax.f32 %v124, 0.0
    %vm128 = vcmask 64512
    %v130 = vsel %vm128, %v42, 0
    %v133 = vsel %vm128, %v43, 0
    %v136 = vsel %vm128, %v44, 0
    %v139 = vsel %vm128, %v45, 0
    %v142 = vsel %vm128, %v46, 0
    %v145 = vsel %vm128, %v47, 0
    %v148 = vsel %vm128, %v48, 0
    %v151 = vsel %vm128, %v49, 0
    %153 = vmatprep.subr.mxu0 0.0
    %154 = vmatpush1.msra.mxu0 %v127
    %155 = vmatprep.subr.mxu0 0.0
    %156 = vmatpush1.msra.mxu0 0.0
    %157 = vmatprep.subr.mxu0 0.0
    %158 = vmatpush1.msra.mxu0 0.0
    %159 = vmatprep.subr.mxu0 0.0
    %160 = vmatpush1.msra.mxu0 0.0
    %161 = vmatprep.subr.mxu0 0.0
    %162 = vmatpush1.msra.mxu0 0.0
    %163 = vmatprep.subr.mxu0 0.0
    %164 = vmatpush1.msra.mxu0 0.0
    %165 = vmatprep.subr.mxu0 0.0
    %166 = vmatpush1.msra.mxu0 0.0
    %167 = vmatprep.subr.mxu0 0.0
    %168 = vmatpush1.msra.mxu0 0.0
    %169 = vmatprep.subr.mxu0 0.0
    %170 = vmatpush1.msra.mxu0 0.0
    %171 = vmatprep.subr.mxu0 0.0
    %172 = vmatpush1.msra.mxu0 0.0
    %173 = vmatprep.subr.mxu0 0.0
    %174 = vmatpush1.msra.mxu0 0.0
    %175 = vmatprep.subr.mxu0 0.0
    %176 = vmatpush1.msra.mxu0 0.0
    %177 = vmatprep.subr.mxu0 0.0
    %178 = vmatpush1.msra.mxu0 0.0
    %179 = vmatprep.subr.mxu0 0.0
    %180 = vmatpush1.msra.mxu0 0.0
    %181 = vmatprep.subr.mxu0 0.0
    %182 = vmatpush1.msra.mxu0 0.0
    %183 = vmatprep.subr.mxu0 0.0
    %184 = vmatpush1.msra.mxu0 0.0
    %185 = vmatprep.subr.mxu0 0.0
    %186 = vmatpush1.msra.mxu0 0.0
    %187 = vmatprep.subr.mxu0 0.0
    %188 = vmatpush1.msra.mxu0 0.0
    %189 = vmatprep.subr.mxu0 0.0
    %190 = vmatpush1.msra.mxu0 0.0
    %191 = vmatprep.subr.mxu0 0.0
    %192 = vmatpush1.msra.mxu0 0.0
    %193 = vmatprep.subr.mxu0 0.0
    %194 = vmatpush1.msra.mxu0 0.0
    %195 = vmatprep.subr.mxu0 0.0
    %196 = vmatpush1.msra.mxu0 0.0
    %197 = vmatprep.subr.mxu0 0.0
    %198 = vmatpush1.msra.mxu0 0.0
    %199 = vmatprep.subr.mxu0 0.0
    %200 = vmatpush1.msra.mxu0 0.0
    %201 = vmatprep.subr.mxu0 0.0
    %202 = vmatpush1.msra.mxu0 0.0
    %203 = vmatprep.subr.mxu0 0.0
    %204 = vmatpush1.msra.mxu0 0.0
    %205 = vmatprep.subr.mxu0 0.0
    %206 = vmatpush1.msra.mxu0 0.0
    %207 = vmatprep.subr.mxu0 0.0
    %208 = vmatpush1.msra.mxu0 0.0
    %209 = vmatprep.subr.mxu0 0.0
    %210 = vmatpush1.msra.mxu0 0.0
    %211 = vmatprep.subr.mxu0 0.0
    %212 = vmatpush1.msra.mxu0 0.0
    %213 = vmatprep.subr.mxu0 0.0
    %214 = vmatpush1.msra.mxu0 0.0
    %215 = vmatprep.subr.mxu0 0.0
    %216 = vmatpush1.msra.mxu0 0.0
    %217 = vmatprep.mubr.f32.mxu0 0.0
    %218 = vmatmul.mubr.f32.gmra.mrb[0].mxu0 %v130
    %v219 = vpop.f32.mrb[0].mxu0
    %v220 = vadd.f32 0.0, %v219
    %v221 = vpop.f32.mrb[0].mxu0
    %222 = vmatprep.mubr.f32.mxu0 0.0
    %223 = vmatmul.mubr.f32.gmra.mrb[0].mxu0 %v133
    %v224 = vpop.f32.mrb[0].mxu0
    %v225 = vadd.f32 0.0, %v224
    %v226 = vpop.f32.mrb[0].mxu0
    %227 = vmatprep.mubr.f32.mxu0 0.0
    %228 = vmatmul.mubr.f32.gmra.mrb[0].mxu0 %v136
    %v229 = vpop.f32.mrb[0].mxu0
    %v230 = vadd.f32 0.0, %v229
    %v231 = vpop.f32.mrb[0].mxu0
    %232 = vmatprep.mubr.f32.mxu0 0.0
    %233 = vmatmul.mubr.f32.gmra.mrb[0].mxu0 %v139
    %v234 = vpop.f32.mrb[0].mxu0
    %v235 = vadd.f32 0.0, %v234
    %v236 = vpop.f32.mrb[0].mxu0
    %237 = vmatprep.mubr.f32.mxu0 0.0
    %238 = vmatmul.mubr.f32.gmra.mrb[0].mxu0 %v142
    %v239 = vpop.f32.mrb[0].mxu0
    %v240 = vadd.f32 0.0, %v239
    %v241 = vpop.f32.mrb[0].mxu0
    %242 = vmatprep.mubr.f32.mxu0 0.0
    %243 = vmatmul.mubr.f32.gmra.mrb[0].mxu0 %v145
    %v244 = vpop.f32.mrb[0].mxu0
    %v245 = vadd.f32 0.0, %v244
    %v246 = vpop.f32.mrb[0].mxu0
    %247 = vmatprep.mubr.f32.mxu0 0.0
    %248 = vmatmul.mubr.f32.gmra.mrb[0].mxu0 %v148
    %v249 = vpop.f32.mrb[0].mxu0
    %v250 = vadd.f32 0.0, %v249
    %v251 = vpop.f32.mrb[0].mxu0
    %252 = vmatprep.mubr.f32.mxu0 0.0
    %253 = vmatmul.mubr.f32.gmra.mrb[0].mxu0 %v151
    %v254 = vpop.f32.mrb[0].mxu0
    %v255 = vadd.f32 0.0, %v254
    %v256 = vpop.f32.mrb[0].mxu0
    %257 = vdwg.mxu0
    %v258 = vld [vmem:[#allocation2 + $0x10] sm:$0xff]
    %v259 = vld [vmem:[#allocation2 + $0x18] sm:$0xff]
    %v260 = vld [vmem:[#allocation2 + $0x20] sm:$0xff]
    %v262 = vsel %vm128, %v26, 0
    %v265 = vsel %vm128, %v27, 0
    %v268 = vsel %vm128, %v28, 0
    %v271 = vsel %vm128, %v29, 0
    %v274 = vsel %vm128, %v30, 0
    %v277 = vsel %vm128, %v31, 0
    %v280 = vsel %vm128, %v32, 0
    %v283 = vsel %vm128, %v33, 0
    %285 = vmatprep.subr.mxu0 0.0
    %286 = vmatpush1.msra.mxu0 %v260
    %287 = vmatprep.subr.mxu0 0.0
    %288 = vmatpush1.msra.mxu0 0.0
    %289 = vmatprep.subr.mxu0 0.0
    %290 = vmatpush1.msra.mxu0 0.0
    %291 = vmatprep.subr.mxu0 0.0
    %292 = vmatpush1.msra.mxu0 0.0
    %293 = vmatprep.subr.mxu0 0.0
    %294 = vmatpush1.msra.mxu0 0.0
    %295 = vmatprep.subr.mxu0 0.0
    %296 = vmatpush1.msra.mxu0 0.0
    %297 = vmatprep.subr.mxu0 0.0
    %298 = vmatpush1.msra.mxu0 0.0
    %299 = vmatprep.subr.mxu0 0.0
    %300 = vmatpush1.msra.mxu0 0.0
    %301 = vmatprep.subr.mxu0 0.0
    %302 = vmatpush1.msra.mxu0 0.0
    %303 = vmatprep.subr.mxu0 0.0
    %304 = vmatpush1.msra.mxu0 0.0
    %305 = vmatprep.subr.mxu0 0.0
    %306 = vmatpush1.msra.mxu0 0.0
    %307 = vmatprep.subr.mxu0 0.0
    %308 = vmatpush1.msra.mxu0 0.0
    %309 = vmatprep.subr.mxu0 0.0
    %310 = vmatpush1.msra.mxu0 0.0
    %311 = vmatprep.subr.mxu0 0.0
    %312 = vmatpush1.msra.mxu0 0.0
    %313 = vmatprep.subr.mxu0 0.0
    %314 = vmatpush1.msra.mxu0 0.0
    %315 = vmatprep.subr.mxu0 0.0
    %316 = vmatpush1.msra.mxu0 0.0
    %317 = vmatprep.subr.mxu0 0.0
    %318 = vmatpush1.msra.mxu0 0.0
    %319 = vmatprep.subr.mxu0 0.0
    %320 = vmatpush1.msra.mxu0 0.0
    %321 = vmatprep.subr.mxu0 0.0
    %322 = vmatpush1.msra.mxu0 0.0
    %323 = vmatprep.subr.mxu0 0.0
    %324 = vmatpush1.msra.mxu0 0.0
    %325 = vmatprep.subr.mxu0 0.0
    %326 = vmatpush1.msra.mxu0 0.0
    %327 = vmatprep.subr.mxu0 0.0
    %328 = vmatpush1.msra.mxu0 0.0
    %329 = vmatprep.subr.mxu0 0.0
    %330 = vmatpush1.msra.mxu0 0.0
    %331 = vmatprep.subr.mxu0 0.0
    %332 = vmatpush1.msra.mxu0 0.0
    %333 = vmatprep.subr.mxu0 0.0
    %334 = vmatpush1.msra.mxu0 0.0
    %335 = vmatprep.subr.mxu0 0.0
    %336 = vmatpush1.msra.mxu0 0.0
    %337 = vmatprep.subr.mxu0 0.0
    %338 = vmatpush1.msra.mxu0 0.0
    %339 = vmatprep.subr.mxu0 0.0
    %340 = vmatpush1.msra.mxu0 0.0
    %341 = vmatprep.subr.mxu0 0.0
    %342 = vmatpush1.msra.mxu0 0.0
    %343 = vmatprep.subr.mxu0 0.0
    %344 = vmatpush1.msra.mxu0 0.0
    %345 = vmatprep.subr.mxu0 0.0
    %346 = vmatpush1.msra.mxu0 0.0
    %347 = vmatprep.subr.mxu0 0.0
    %348 = vmatpush1.msra.mxu0 0.0
    %349 = vmatprep.mubr.f32.mxu0 0.0
    %350 = vmatmul.mubr.f32.gmra.mrb[0].mxu0 %v262
    %v351 = vpop.f32.mrb[0].mxu0
    %v352 = vadd.f32 0.0, %v351
    %v353 = vpop.f32.mrb[0].mxu0
    %354 = vmatprep.mubr.f32.mxu0 0.0
    %355 = vmatmul.mubr.f32.gmra.mrb[0].mxu0 %v265
    %v356 = vpop.f32.mrb[0].mxu0
    %v357 = vadd.f32 0.0, %v356
    %v358 = vpop.f32.mrb[0].mxu0
    %359 = vmatprep.mubr.f32.mxu0 0.0
    %360 = vmatmul.mubr.f32.gmra.mrb[0].mxu0 %v268
    %v361 = vpop.f32.mrb[0].mxu0
    %v362 = vadd.f32 0.0, %v361
    %v363 = vpop.f32.mrb[0].mxu0
    %364 = vmatprep.mubr.f32.mxu0 0.0
    %365 = vmatmul.mubr.f32.gmra.mrb[0].mxu0 %v271
    %v366 = vpop.f32.mrb[0].mxu0
    %v367 = vadd.f32 0.0, %v366
    %v368 = vpop.f32.mrb[0].mxu0
    %369 = vmatprep.mubr.f32.mxu0 0.0
    %370 = vmatmul.mubr.f32.gmra.mrb[0].mxu0 %v274
    %v371 = vpop.f32.mrb[0].mxu0
    %v372 = vadd.f32 0.0, %v371
    %v373 = vpop.f32.mrb[0].mxu0
    %374 = vmatprep.mubr.f32.mxu0 0.0
    %375 = vmatmul.mubr.f32.gmra.mrb[0].mxu0 %v277
    %v376 = vpop.f32.mrb[0].mxu0
    %v377 = vadd.f32 0.0, %v376
    %v378 = vpop.f32.mrb[0].mxu0
    %379 = vmatprep.mubr.f32.mxu0 0.0
    %380 = vmatmul.mubr.f32.gmra.mrb[0].mxu0 %v280
    %v381 = vpop.f32.mrb[0].mxu0
    %v382 = vadd.f32 0.0, %v381
    %v383 = vpop.f32.mrb[0].mxu0
    %384 = vmatprep.mubr.f32.mxu0 0.0
    %385 = vmatmul.mubr.f32.gmra.mrb[0].mxu0 %v283
    %v386 = vpop.f32.mrb[0].mxu0
    %v387 = vadd.f32 0.0, %v386
    %v388 = vpop.f32.mrb[0].mxu0
    %389 = vdwg.mxu0
    %v390 = vld [vmem:[#allocation2 + $0x28] sm:$0xff]
    %v392 = vsel %vm128, %v34, 0
    %v395 = vsel %vm128, %v35, 0
    %v398 = vsel %vm128, %v36, 0
    %v401 = vsel %vm128, %v37, 0
    %v404 = vsel %vm128, %v38, 0
    %v407 = vsel %vm128, %v39, 0
    %v410 = vsel %vm128, %v40, 0
    %v413 = vsel %vm128, %v41, 0
    %415 = vmatprep.subr.mxu0 0.0
    %416 = vmatpush1.msra.mxu0 %v390
    %417 = vmatprep.subr.mxu0 0.0
    %418 = vmatpush1.msra.mxu0 0.0
    %419 = vmatprep.subr.mxu0 0.0
    %420 = vmatpush1.msra.mxu0 0.0
    %421 = vmatprep.subr.mxu0 0.0
    %422 = vmatpush1.msra.mxu0 0.0
    %423 = vmatprep.subr.mxu0 0.0
    %424 = vmatpush1.msra.mxu0 0.0
    %425 = vmatprep.subr.mxu0 0.0
    %426 = vmatpush1.msra.mxu0 0.0
    %427 = vmatprep.subr.mxu0 0.0
    %428 = vmatpush1.msra.mxu0 0.0
    %429 = vmatprep.subr.mxu0 0.0
    %430 = vmatpush1.msra.mxu0 0.0
    %431 = vmatprep.subr.mxu0 0.0
    %432 = vmatpush1.msra.mxu0 0.0
    %433 = vmatprep.subr.mxu0 0.0
    %434 = vmatpush1.msra.mxu0 0.0
    %435 = vmatprep.subr.mxu0 0.0
    %436 = vmatpush1.msra.mxu0 0.0
    %437 = vmatprep.subr.mxu0 0.0
    %438 = vmatpush1.msra.mxu0 0.0
    %439 = vmatprep.subr.mxu0 0.0
    %440 = vmatpush1.msra.mxu0 0.0
    %441 = vmatprep.subr.mxu0 0.0
    %442 = vmatpush1.msra.mxu0 0.0
    %443 = vmatprep.subr.mxu0 0.0
    %444 = vmatpush1.msra.mxu0 0.0
    %445 = vmatprep.subr.mxu0 0.0
    %446 = vmatpush1.msra.mxu0 0.0
    %447 = vmatprep.subr.mxu0 0.0
    %448 = vmatpush1.msra.mxu0 0.0
    %449 = vmatprep.subr.mxu0 0.0
    %450 = vmatpush1.msra.mxu0 0.0
    %451 = vmatprep.subr.mxu0 0.0
    %452 = vmatpush1.msra.mxu0 0.0
    %453 = vmatprep.subr.mxu0 0.0
    %454 = vmatpush1.msra.mxu0 0.0
    %455 = vmatprep.subr.mxu0 0.0
    %456 = vmatpush1.msra.mxu0 0.0
    %457 = vmatprep.subr.mxu0 0.0
    %458 = vmatpush1.msra.mxu0 0.0
    %459 = vmatprep.subr.mxu0 0.0
    %460 = vmatpush1.msra.mxu0 0.0
    %461 = vmatprep.subr.mxu0 0.0
    %462 = vmatpush1.msra.mxu0 0.0
    %463 = vmatprep.subr.mxu0 0.0
    %464 = vmatpush1.msra.mxu0 0.0
    %465 = vmatprep.subr.mxu0 0.0
    %466 = vmatpush1.msra.mxu0 0.0
    %467 = vmatprep.subr.mxu0 0.0
    %468 = vmatpush1.msra.mxu0 0.0
    %469 = vmatprep.subr.mxu0 0.0
    %470 = vmatpush1.msra.mxu0 0.0
    %471 = vmatprep.subr.mxu0 0.0
    %472 = vmatpush1.msra.mxu0 0.0
    %473 = vmatprep.subr.mxu0 0.0
    %474 = vmatpush1.msra.mxu0 0.0
    %475 = vmatprep.subr.mxu0 0.0
    %476 = vmatpush1.msra.mxu0 0.0
    %477 = vmatprep.subr.mxu0 0.0
    %478 = vmatpush1.msra.mxu0 0.0
    %479 = vmatprep.mubr.f32.mxu0 0.0
    %480 = vmatmul.mubr.f32.gmra.mrb[0].mxu0 %v392
    %v481 = vpop.f32.mrb[0].mxu0
    %v482 = vadd.f32 0.0, %v481
    %v483 = vpop.f32.mrb[0].mxu0
    %484 = vmatprep.mubr.f32.mxu0 0.0
    %485 = vmatmul.mubr.f32.gmra.mrb[0].mxu0 %v395
    %v486 = vpop.f32.mrb[0].mxu0
    %v487 = vadd.f32 0.0, %v486
    %v488 = vpop.f32.mrb[0].mxu0
    %489 = vmatprep.mubr.f32.mxu0 0.0
    %490 = vmatmul.mubr.f32.gmra.mrb[0].mxu0 %v398
    %v491 = vpop.f32.mrb[0].mxu0
    %v492 = vadd.f32 0.0, %v491
    %v493 = vpop.f32.mrb[0].mxu0
    %494 = vmatprep.mubr.f32.mxu0 0.0
    %495 = vmatmul.mubr.f32.gmra.mrb[0].mxu0 %v401
    %v496 = vpop.f32.mrb[0].mxu0
    %v497 = vadd.f32 0.0, %v496
    %v498 = vpop.f32.mrb[0].mxu0
    %499 = vmatprep.mubr.f32.mxu0 0.0
    %500 = vmatmul.mubr.f32.gmra.mrb[0].mxu0 %v404
    %v501 = vpop.f32.mrb[0].mxu0
    %v502 = vadd.f32 0.0, %v501
    %v503 = vpop.f32.mrb[0].mxu0
    %504 = vmatprep.mubr.f32.mxu0 0.0
    %505 = vmatmul.mubr.f32.gmra.mrb[0].mxu0 %v407
    %v506 = vpop.f32.mrb[0].mxu0
    %v507 = vadd.f32 0.0, %v506
    %v508 = vpop.f32.mrb[0].mxu0
    %509 = vmatprep.mubr.f32.mxu0 0.0
    %510 = vmatmul.mubr.f32.gmra.mrb[0].mxu0 %v410
    %v511 = vpop.f32.mrb[0].mxu0
    %v512 = vadd.f32 0.0, %v511
    %v513 = vpop.f32.mrb[0].mxu0
    %514 = vmatprep.mubr.f32.mxu0 0.0
    %515 = vmatmul.mubr.f32.gmra.mrb[0].mxu0 %v413
    %v516 = vpop.f32.mrb[0].mxu0
    %v517 = vadd.f32 0.0, %v516
    %v518 = vpop.f32.mrb[0].mxu0
    %519 = vdwg.mxu0
    %v521 = vsel %vm53, %v220, 0
    %v524 = vsel %vm53, %v225, 0
    %v527 = vsel %vm53, %v230, 0
    %v530 = vsel %vm53, %v235, 0
    %v533 = vsel %vm53, %v240, 0
    %v536 = vsel %vm53, %v245, 0
    %v539 = vsel %vm53, %v250, 0
    %v542 = vsel %vm53, %v255, 0
    %544 = vmatprep.subr.mxu0 0.0
    %545 = vmatpush1.msra.mxu0 %v258
    %546 = vmatprep.subr.mxu0 0.0
    %547 = vmatpush1.msra.mxu0 %v259
    %548 = vmatprep.subr.mxu0 0.0
    %549 = vmatpush1.msra.mxu0 0.0
    %550 = vmatprep.subr.mxu0 0.0
    %551 = vmatpush1.msra.mxu0 0.0
    %552 = vmatprep.subr.mxu0 0.0
    %553 = vmatpush1.msra.mxu0 0.0
    %554 = vmatprep.subr.mxu0 0.0
    %555 = vmatpush1.msra.mxu0 0.0
    %556 = vmatprep.subr.mxu0 0.0
    %557 = vmatpush1.msra.mxu0 0.0
    %558 = vmatprep.subr.mxu0 0.0
    %559 = vmatpush1.msra.mxu0 0.0
    %560 = vmatprep.subr.mxu0 0.0
    %561 = vmatpush1.msra.mxu0 0.0
    %562 = vmatprep.subr.mxu0 0.0
    %563 = vmatpush1.msra.mxu0 0.0
    %564 = vmatprep.subr.mxu0 0.0
    %565 = vmatpush1.msra.mxu0 0.0
    %566 = vmatprep.subr.mxu0 0.0
    %567 = vmatpush1.msra.mxu0 0.0
    %568 = vmatprep.subr.mxu0 0.0
    %569 = vmatpush1.msra.mxu0 0.0
    %570 = vmatprep.subr.mxu0 0.0
    %571 = vmatpush1.msra.mxu0 0.0
    %572 = vmatprep.subr.mxu0 0.0
    %573 = vmatpush1.msra.mxu0 0.0
    %574 = vmatprep.subr.mxu0 0.0
    %575 = vmatpush1.msra.mxu0 0.0
    %576 = vmatprep.subr.mxu0 0.0
    %577 = vmatpush1.msra.mxu0 0.0
    %578 = vmatprep.subr.mxu0 0.0
    %579 = vmatpush1.msra.mxu0 0.0
    %580 = vmatprep.subr.mxu0 0.0
    %581 = vmatpush1.msra.mxu0 0.0
    %582 = vmatprep.subr.mxu0 0.0
    %583 = vmatpush1.msra.mxu0 0.0
    %584 = vmatprep.subr.mxu0 0.0
    %585 = vmatpush1.msra.mxu0 0.0
    %586 = vmatprep.subr.mxu0 0.0
    %587 = vmatpush1.msra.mxu0 0.0
    %588 = vmatprep.subr.mxu0 0.0
    %589 = vmatpush1.msra.mxu0 0.0
    %590 = vmatprep.subr.mxu0 0.0
    %591 = vmatpush1.msra.mxu0 0.0
    %592 = vmatprep.subr.mxu0 0.0
    %593 = vmatpush1.msra.mxu0 0.0
    %594 = vmatprep.subr.mxu0 0.0
    %595 = vmatpush1.msra.mxu0 0.0
    %596 = vmatprep.subr.mxu0 0.0
    %597 = vmatpush1.msra.mxu0 0.0
    %598 = vmatprep.subr.mxu0 0.0
    %599 = vmatpush1.msra.mxu0 0.0
    %600 = vmatprep.subr.mxu0 0.0
    %601 = vmatpush1.msra.mxu0 0.0
    %602 = vmatprep.subr.mxu0 0.0
    %603 = vmatpush1.msra.mxu0 0.0
    %604 = vmatprep.subr.mxu0 0.0
    %605 = vmatpush1.msra.mxu0 0.0
    %606 = vmatprep.subr.mxu0 0.0
    %607 = vmatpush1.msra.mxu0 0.0
    %608 = vmatprep.mubr.f32.mxu0 0.0
    %609 = vmatmul.mubr.f32.gmra.mrb[0].mxu0 %v521
    %v610 = vpop.f32.mrb[0].mxu0
    %v611 = vadd.f32 %v352, %v610
    %v612 = vpop.f32.mrb[0].mxu0
    %613 = vmatprep.mubr.f32.mxu0 0.0
    %614 = vmatmul.mubr.f32.gmra.mrb[0].mxu0 %v524
    %v615 = vpop.f32.mrb[0].mxu0
    %v616 = vadd.f32 %v357, %v615
    %v617 = vpop.f32.mrb[0].mxu0
    %618 = vmatprep.mubr.f32.mxu0 0.0
    %619 = vmatmul.mubr.f32.gmra.mrb[0].mxu0 %v527
    %v620 = vpop.f32.mrb[0].mxu0
    %v621 = vadd.f32 %v362, %v620
    %v622 = vpop.f32.mrb[0].mxu0
    %623 = vmatprep.mubr.f32.mxu0 0.0
    %624 = vmatmul.mubr.f32.gmra.mrb[0].mxu0 %v530
    %v625 = vpop.f32.mrb[0].mxu0
    %v626 = vadd.f32 %v367, %v625
    %v627 = vpop.f32.mrb[0].mxu0
    %628 = vmatprep.mubr.f32.mxu0 0.0
    %629 = vmatmul.mubr.f32.gmra.mrb[0].mxu0 %v533
    %v630 = vpop.f32.mrb[0].mxu0
    %v631 = vadd.f32 %v372, %v630
    %v632 = vpop.f32.mrb[0].mxu0
    %633 = vmatprep.mubr.f32.mxu0 0.0
    %634 = vmatmul.mubr.f32.gmra.mrb[0].mxu0 %v536
    %v635 = vpop.f32.mrb[0].mxu0
    %v636 = vadd.f32 %v377, %v635
    %v637 = vpop.f32.mrb[0].mxu0
    %638 = vmatprep.mubr.f32.mxu0 0.0
    %639 = vmatmul.mubr.f32.gmra.mrb[0].mxu0 %v539
    %v640 = vpop.f32.mrb[0].mxu0
    %v641 = vadd.f32 %v382, %v640
    %v642 = vpop.f32.mrb[0].mxu0
    %643 = vmatprep.mubr.f32.mxu0 0.0
    %644 = vmatmul.mubr.f32.gmra.mrb[0].mxu0 %v542
    %v645 = vpop.f32.mrb[0].mxu0
    %v646 = vadd.f32 %v387, %v645
    %v647 = vpop.f32.mrb[0].mxu0
    %648 = vdwg.mxu0
    %v649 = vadd.f32 %v611, %v482
    %v650 = vadd.f32 %v616, %v487
    %v651 = vadd.f32 %v621, %v492
    %v652 = vadd.f32 %v626, %v497
    %v653 = vadd.f32 %v631, %v502
    %v654 = vadd.f32 %v636, %v507
    %v655 = vadd.f32 %v641, %v512
    %v656 = vadd.f32 %v646, %v517
    %v657 = vmax.f32 %v649, 0.0
    %v658 = vmax.f32 %v650, 0.0
    %v659 = vmax.f32 %v651, 0.0
    %v660 = vmax.f32 %v652, 0.0
    %v661 = vmax.f32 %v653, 0.0
    %v662 = vmax.f32 %v654, 0.0
    %v663 = vmax.f32 %v655, 0.0
    %v664 = vmax.f32 %v656, 0.0
    %v665 = vlaneseq
    %v666 = vshrl.u32 %v665, 7
    %v667 = vadd.s32 %v666, 8
    %v668 = vadd.s32 %v666, 16
    %v669 = vadd.s32 %v666, 24
    %v670 = vadd.s32 %v666, 32
    %v671 = vadd.s32 %v666, 40
    %v672 = vadd.s32 %v666, 48
    %v673 = vadd.s32 %v666, 56
    %v674 = vlaneseq
    %v675 = vand.u32 %v674, 127
    %v676 = vshrl.u32 %v666, 3
    %v677 = vshrl.u32 %v667, 3
    %v678 = vshrl.u32 %v668, 3
    %v679 = vshrl.u32 %v669, 3
    %v680 = vshrl.u32 %v670, 3
    %v681 = vshrl.u32 %v671, 3
    %v682 = vshrl.u32 %v672, 3
    %v683 = vshrl.u32 %v673, 3
    %v684 = vshrl.u32 %v675, 3
    %vm685 = vcmp.eq.s32.totalorder %v676, %v684
    %vm686 = vcmp.eq.s32.totalorder %v677, %v684
    %vm687 = vcmp.eq.s32.totalorder %v678, %v684
    %vm688 = vcmp.eq.s32.totalorder %v679, %v684
    %vm689 = vcmp.eq.s32.totalorder %v680, %v684
    %vm690 = vcmp.eq.s32.totalorder %v681, %v684
    %vm691 = vcmp.eq.s32.totalorder %v682, %v684
    %vm692 = vcmp.eq.s32.totalorder %v683, %v684
    %v693 = vsel %vm685, 0.0, -1e+30
    %v694 = vsel %vm686, 0.0, -1e+30
    %v695 = vsel %vm687, 0.0, -1e+30
    %v696 = vsel %vm688, 0.0, -1e+30
    %v697 = vsel %vm689, 0.0, -1e+30
    %v698 = vsel %vm690, 0.0, -1e+30
    %v699 = vsel %vm691, 0.0, -1e+30
    %v700 = vsel %vm692, 0.0, -1e+30
    %v701 = vld [vmem:[#allocation2 + $0x70] sm:$0xff]
    %v702 = vld [vmem:[#allocation2 + $0x78] sm:$0xff]
    %703 = vmatprep.subr.mxu0 0.0
    %704 = vmatpush1.msra.mxu0 %v701
    %705 = vmatprep.subr.mxu0 0.0
    %706 = vmatpush1.msra.mxu0 %v702
    %707 = vmatprep.subr.mxu0 0.0
    %708 = vmatpush1.msra.mxu0 0.0
    %709 = vmatprep.subr.mxu0 0.0
    %710 = vmatpush1.msra.mxu0 0.0
    %711 = vmatprep.subr.mxu0 0.0
    %712 = vmatpush1.msra.mxu0 0.0
    %713 = vmatprep.subr.mxu0 0.0
    %714 = vmatpush1.msra.mxu0 0.0
    %715 = vmatprep.subr.mxu0 0.0
    %716 = vmatpush1.msra.mxu0 0.0
    %717 = vmatprep.subr.mxu0 0.0
    %718 = vmatpush1.msra.mxu0 0.0
    %719 = vmatprep.subr.mxu0 0.0
    %720 = vmatpush1.msra.mxu0 0.0
    %721 = vmatprep.subr.mxu0 0.0
    %722 = vmatpush1.msra.mxu0 0.0
    %723 = vmatprep.subr.mxu0 0.0
    %724 = vmatpush1.msra.mxu0 0.0
    %725 = vmatprep.subr.mxu0 0.0
    %726 = vmatpush1.msra.mxu0 0.0
    %727 = vmatprep.subr.mxu0 0.0
    %728 = vmatpush1.msra.mxu0 0.0
    %729 = vmatprep.subr.mxu0 0.0
    %730 = vmatpush1.msra.mxu0 0.0
    %731 = vmatprep.subr.mxu0 0.0
    %732 = vmatpush1.msra.mxu0 0.0
    %733 = vmatprep.subr.mxu0 0.0
    %734 = vmatpush1.msra.mxu0 0.0
    %735 = vmatprep.subr.mxu0 0.0
    %736 = vmatpush1.msra.mxu0 0.0
    %737 = vmatprep.subr.mxu0 0.0
    %738 = vmatpush1.msra.mxu0 0.0
    %739 = vmatprep.subr.mxu0 0.0
    %740 = vmatpush1.msra.mxu0 0.0
    %741 = vmatprep.subr.mxu0 0.0
    %742 = vmatpush1.msra.mxu0 0.0
    %743 = vmatprep.subr.mxu0 0.0
    %744 = vmatpush1.msra.mxu0 0.0
    %745 = vmatprep.subr.mxu0 0.0
    %746 = vmatpush1.msra.mxu0 0.0
    %747 = vmatprep.subr.mxu0 0.0
    %748 = vmatpush1.msra.mxu0 0.0
    %749 = vmatprep.subr.mxu0 0.0
    %750 = vmatpush1.msra.mxu0 0.0
    %751 = vmatprep.subr.mxu0 0.0
    %752 = vmatpush1.msra.mxu0 0.0
    %753 = vmatprep.subr.mxu0 0.0
    %754 = vmatpush1.msra.mxu0 0.0
    %755 = vmatprep.subr.mxu0 0.0
    %756 = vmatpush1.msra.mxu0 0.0
    %757 = vmatprep.subr.mxu0 0.0
    %758 = vmatpush1.msra.mxu0 0.0
    %759 = vmatprep.subr.mxu0 0.0
    %760 = vmatpush1.msra.mxu0 0.0
    %761 = vmatprep.subr.mxu0 0.0
    %762 = vmatpush1.msra.mxu0 0.0
    %763 = vmatprep.subr.mxu0 0.0
    %764 = vmatpush1.msra.mxu0 0.0
    %765 = vmatprep.subr.mxu0 0.0
    %766 = vmatpush1.msra.mxu0 0.0
    %767 = vmatprep.mubr.f32.mxu0 0.0
    %768 = vmatmul.mubr.f32.gmra.mrb[0].mxu0 %v521
    %v769 = vpop.f32.mrb[0].mxu0
    %v770 = vadd.f32 0.0, %v769
    %v771 = vpop.f32.mrb[0].mxu0
    %772 = vmatprep.mubr.f32.mxu0 0.0
    %773 = vmatmul.mubr.f32.gmra.mrb[0].mxu0 %v524
    %v774 = vpop.f32.mrb[0].mxu0
    %v775 = vadd.f32 0.0, %v774
    %v776 = vpop.f32.mrb[0].mxu0
    %777 = vmatprep.mubr.f32.mxu0 0.0
    %778 = vmatmul.mubr.f32.gmra.mrb[0].mxu0 %v527
    %v779 = vpop.f32.mrb[0].mxu0
    %v780 = vadd.f32 0.0, %v779
    %v781 = vpop.f32.mrb[0].mxu0
    %782 = vmatprep.mubr.f32.mxu0 0.0
    %783 = vmatmul.mubr.f32.gmra.mrb[0].mxu0 %v530
    %v784 = vpop.f32.mrb[0].mxu0
    %v785 = vadd.f32 0.0, %v784
    %v786 = vpop.f32.mrb[0].mxu0
    %787 = vmatprep.mubr.f32.mxu0 0.0
    %788 = vmatmul.mubr.f32.gmra.mrb[0].mxu0 %v533
    %v789 = vpop.f32.mrb[0].mxu0
    %v790 = vadd.f32 0.0, %v789
    %v791 = vpop.f32.mrb[0].mxu0
    %792 = vmatprep.mubr.f32.mxu0 0.0
    %793 = vmatmul.mubr.f32.gmra.mrb[0].mxu0 %v536
    %v794 = vpop.f32.mrb[0].mxu0
    %v795 = vadd.f32 0.0, %v794
    %v796 = vpop.f32.mrb[0].mxu0
    %797 = vmatprep.mubr.f32.mxu0 0.0
    %798 = vmatmul.mubr.f32.gmra.mrb[0].mxu0 %v539
    %v799 = vpop.f32.mrb[0].mxu0
    %v800 = vadd.f32 0.0, %v799
    %v801 = vpop.f32.mrb[0].mxu0
    %802 = vmatprep.mubr.f32.mxu0 0.0
    %803 = vmatmul.mubr.f32.gmra.mrb[0].mxu0 %v542
    %v804 = vpop.f32.mrb[0].mxu0
    %v805 = vadd.f32 0.0, %v804
    %v806 = vpop.f32.mrb[0].mxu0
    %807 = vdwg.mxu0
    %v808 = vld [vmem:[#allocation2 + $0x120] sm:$0xff]
    %v809 = vld [vmem:[#allocation2 + $0x128] sm:$0xff]
    %810 = vmatprep.subr.mxu0 0.0
    %811 = vmatpush1.msra.mxu0 %v808
    %812 = vmatprep.subr.mxu0 0.0
    %813 = vmatpush1.msra.mxu0 %v809
    %814 = vmatprep.subr.mxu0 0.0
    %815 = vmatpush1.msra.mxu0 0.0
    %816 = vmatprep.subr.mxu0 0.0
    %817 = vmatpush1.msra.mxu0 0.0
    %818 = vmatprep.subr.mxu0 0.0
    %819 = vmatpush1.msra.mxu0 0.0
    %820 = vmatprep.subr.mxu0 0.0
    %821 = vmatpush1.msra.mxu0 0.0
    %822 = vmatprep.subr.mxu0 0.0
    %823 = vmatpush1.msra.mxu0 0.0
    %824 = vmatprep.subr.mxu0 0.0
    %825 = vmatpush1.msra.mxu0 0.0
    %826 = vmatprep.subr.mxu0 0.0
    %827 = vmatpush1.msra.mxu0 0.0
    %828 = vmatprep.subr.mxu0 0.0
    %829 = vmatpush1.msra.mxu0 0.0
    %830 = vmatprep.subr.mxu0 0.0
    %831 = vmatpush1.msra.mxu0 0.0
    %832 = vmatprep.subr.mxu0 0.0
    %833 = vmatpush1.msra.mxu0 0.0
    %834 = vmatprep.subr.mxu0 0.0
    %835 = vmatpush1.msra.mxu0 0.0
    %836 = vmatprep.subr.mxu0 0.0
    %837 = vmatpush1.msra.mxu0 0.0
    %838 = vmatprep.subr.mxu0 0.0
    %839 = vmatpush1.msra.mxu0 0.0
    %840 = vmatprep.subr.mxu0 0.0
    %841 = vmatpush1.msra.mxu0 0.0
    %842 = vmatprep.subr.mxu0 0.0
    %843 = vmatpush1.msra.mxu0 0.0
    %844 = vmatprep.subr.mxu0 0.0
    %845 = vmatpush1.msra.mxu0 0.0
    %846 = vmatprep.subr.mxu0 0.0
    %847 = vmatpush1.msra.mxu0 0.0
    %848 = vmatprep.subr.mxu0 0.0
    %849 = vmatpush1.msra.mxu0 0.0
    %850 = vmatprep.subr.mxu0 0.0
    %851 = vmatpush1.msra.mxu0 0.0
    %852 = vmatprep.subr.mxu0 0.0
    %853 = vmatpush1.msra.mxu0 0.0
    %854 = vmatprep.subr.mxu0 0.0
    %855 = vmatpush1.msra.mxu0 0.0
    %856 = vmatprep.subr.mxu0 0.0
    %857 = vmatpush1.msra.mxu0 0.0
    %858 = vmatprep.subr.mxu0 0.0
    %859 = vmatpush1.msra.mxu0 0.0
    %860 = vmatprep.subr.mxu0 0.0
    %861 = vmatpush1.msra.mxu0 0.0
    %862 = vmatprep.subr.mxu0 0.0
    %863 = vmatpush1.msra.mxu0 0.0
    %864 = vmatprep.subr.mxu0 0.0
    %865 = vmatpush1.msra.mxu0 0.0
    %866 = vmatprep.subr.mxu0 0.0
    %867 = vmatpush1.msra.mxu0 0.0
    %868 = vmatprep.subr.mxu0 0.0
    %869 = vmatpush1.msra.mxu0 0.0
    %870 = vmatprep.subr.mxu0 0.0
    %871 = vmatpush1.msra.mxu0 0.0
    %872 = vmatprep.subr.mxu0 0.0
    %873 = vmatpush1.msra.mxu0 0.0
    %874 = vmatprep.mubr.f32.mxu0 0.0
    %875 = vmatmul.mubr.f32.gmra.mrb[0].mxu0 %v521
    %v876 = vpop.f32.mrb[0].mxu0
    %v877 = vadd.f32 0.0, %v876
    %v878 = vpop.f32.mrb[0].mxu0
    %879 = vmatprep.mubr.f32.mxu0 0.0
    %880 = vmatmul.mubr.f32.gmra.mrb[0].mxu0 %v524
    %v881 = vpop.f32.mrb[0].mxu0
    %v882 = vadd.f32 0.0, %v881
    %v883 = vpop.f32.mrb[0].mxu0
    %884 = vmatprep.mubr.f32.mxu0 0.0
    %885 = vmatmul.mubr.f32.gmra.mrb[0].mxu0 %v527
    %v886 = vpop.f32.mrb[0].mxu0
    %v887 = vadd.f32 0.0, %v886
    %v888 = vpop.f32.mrb[0].mxu0
    %889 = vmatprep.mubr.f32.mxu0 0.0
    %890 = vmatmul.mubr.f32.gmra.mrb[0].mxu0 %v530
    %v891 = vpop.f32.mrb[0].mxu0
    %v892 = vadd.f32 0.0, %v891
    %v893 = vpop.f32.mrb[0].mxu0
    %894 = vmatprep.mubr.f32.mxu0 0.0
    %895 = vmatmul.mubr.f32.gmra.mrb[0].mxu0 %v533
    %v896 = vpop.f32.mrb[0].mxu0
    %v897 = vadd.f32 0.0, %v896
    %v898 = vpop.f32.mrb[0].mxu0
    %899 = vmatprep.mubr.f32.mxu0 0.0
    %900 = vmatmul.mubr.f32.gmra.mrb[0].mxu0 %v536
    %v901 = vpop.f32.mrb[0].mxu0
    %v902 = vadd.f32 0.0, %v901
    %v903 = vpop.f32.mrb[0].mxu0
    %904 = vmatprep.mubr.f32.mxu0 0.0
    %905 = vmatmul.mubr.f32.gmra.mrb[0].mxu0 %v539
    %v906 = vpop.f32.mrb[0].mxu0
    %v907 = vadd.f32 0.0, %v906
    %v908 = vpop.f32.mrb[0].mxu0
    %909 = vmatprep.mubr.f32.mxu0 0.0
    %910 = vmatmul.mubr.f32.gmra.mrb[0].mxu0 %v542
    %v911 = vpop.f32.mrb[0].mxu0
    %v912 = vadd.f32 0.0, %v911
    %v913 = vpop.f32.mrb[0].mxu0
    %914 = vdwg.mxu0
    %v915 = vld [vmem:[#allocation2 + $0x30] sm:$0xff]
    %v916 = vld [vmem:[#allocation2 + $0x38] sm:$0xff]
    %v917 = vld [vmem:[#allocation2 + $0x40] sm:$0xff]
    %v918 = vld [vmem:[#allocation2 + $0x48] sm:$0xff]
    %vm919 = vcmask 261120
    %v921 = vsel %vm919, %v657, 0
    %v924 = vsel %vm919, %v658, 0
    %v927 = vsel %vm919, %v659, 0
    %v930 = vsel %vm919, %v660, 0
    %v933 = vsel %vm919, %v661, 0
    %v936 = vsel %vm919, %v662, 0
    %v939 = vsel %vm919, %v663, 0
    %v942 = vsel %vm919, %v664, 0
    %944 = vmatprep.subr.mxu0 0.0
    %945 = vmatpush1.msra.mxu0 %v915
    %946 = vmatprep.subr.mxu0 0.0
    %947 = vmatpush1.msra.mxu0 %v916
    %948 = vmatprep.subr.mxu0 0.0
    %949 = vmatpush1.msra.mxu0 %v917
    %950 = vmatprep.subr.mxu0 0.0
    %951 = vmatpush1.msra.mxu0 %v918
    %952 = vmatprep.subr.mxu0 0.0
    %953 = vmatpush1.msra.mxu0 0.0
    %954 = vmatprep.subr.mxu0 0.0
    %955 = vmatpush1.msra.mxu0 0.0
    %956 = vmatprep.subr.mxu0 0.0
    %957 = vmatpush1.msra.mxu0 0.0
    %958 = vmatprep.subr.mxu0 0.0
    %959 = vmatpush1.msra.mxu0 0.0
    %960 = vmatprep.subr.mxu0 0.0
    %961 = vmatpush1.msra.mxu0 0.0
    %962 = vmatprep.subr.mxu0 0.0
    %963 = vmatpush1.msra.mxu0 0.0
    %964 = vmatprep.subr.mxu0 0.0
    %965 = vmatpush1.msra.mxu0 0.0
    %966 = vmatprep.subr.mxu0 0.0
    %967 = vmatpush1.msra.mxu0 0.0
    %968 = vmatprep.subr.mxu0 0.0
    %969 = vmatpush1.msra.mxu0 0.0
    %970 = vmatprep.subr.mxu0 0.0
    %971 = vmatpush1.msra.mxu0 0.0
    %972 = vmatprep.subr.mxu0 0.0
    %973 = vmatpush1.msra.mxu0 0.0
    %974 = vmatprep.subr.mxu0 0.0
    %975 = vmatpush1.msra.mxu0 0.0
    %976 = vmatprep.subr.mxu0 0.0
    %977 = vmatpush1.msra.mxu0 0.0
    %978 = vmatprep.subr.mxu0 0.0
    %979 = vmatpush1.msra.mxu0 0.0
    %980 = vmatprep.subr.mxu0 0.0
    %981 = vmatpush1.msra.mxu0 0.0
    %982 = vmatprep.subr.mxu0 0.0
    %983 = vmatpush1.msra.mxu0 0.0
    %984 = vmatprep.subr.mxu0 0.0
    %985 = vmatpush1.msra.mxu0 0.0
    %986 = vmatprep.subr.mxu0 0.0
    %987 = vmatpush1.msra.mxu0 0.0
    %988 = vmatprep.subr.mxu0 0.0
    %989 = vmatpush1.msra.mxu0 0.0
    %990 = vmatprep.subr.mxu0 0.0
    %991 = vmatpush1.msra.mxu0 0.0
    %992 = vmatprep.subr.mxu0 0.0
    %993 = vmatpush1.msra.mxu0 0.0
    %994 = vmatprep.subr.mxu0 0.0
    %995 = vmatpush1.msra.mxu0 0.0
    %996 = vmatprep.subr.mxu0 0.0
    %997 = vmatpush1.msra.mxu0 0.0
    %998 = vmatprep.subr.mxu0 0.0
    %999 = vmatpush1.msra.mxu0 0.0
    %1000 = vmatprep.subr.mxu0 0.0
    %1001 = vmatpush1.msra.mxu0 0.0
    %1002 = vmatprep.subr.mxu0 0.0
    %1003 = vmatpush1.msra.mxu0 0.0
    %1004 = vmatprep.subr.mxu0 0.0
    %1005 = vmatpush1.msra.mxu0 0.0
    %1006 = vmatprep.subr.mxu0 0.0
    %1007 = vmatpush1.msra.mxu0 0.0
    %1008 = vmatprep.mubr.f32.mxu0 0.0
    %1009 = vmatmul.mubr.f32.gmra.mrb[0].mxu0 %v921
    %v1010 = vpop.f32.mrb[0].mxu0
    %v1011 = vadd.f32 0.0, %v1010
    %v1012 = vpop.f32.mrb[0].mxu0
    %1013 = vmatprep.mubr.f32.mxu0 0.0
    %1014 = vmatmul.mubr.f32.gmra.mrb[0].mxu0 %v924
    %v1015 = vpop.f32.mrb[0].mxu0
    %v1016 = vadd.f32 0.0, %v1015
    %v1017 = vpop.f32.mrb[0].mxu0
    %1018 = vmatprep.mubr.f32.mxu0 0.0
    %1019 = vmatmul.mubr.f32.gmra.mrb[0].mxu0 %v927
    %v1020 = vpop.f32.mrb[0].mxu0
    %v1021 = vadd.f32 0.0, %v1020
    %v1022 = vpop.f32.mrb[0].mxu0
    %1023 = vmatprep.mubr.f32.mxu0 0.0
    %1024 = vmatmul.mubr.f32.gmra.mrb[0].mxu0 %v930
    %v1025 = vpop.f32.mrb[0].mxu0
    %v1026 = vadd.f32 0.0, %v1025
    %v1027 = vpop.f32.mrb[0].mxu0
    %1028 = vmatprep.mubr.f32.mxu0 0.0
    %1029 = vmatmul.mubr.f32.gmra.mrb[0].mxu0 %v933
    %v1030 = vpop.f32.mrb[0].mxu0
    %v1031 = vadd.f32 0.0, %v1030
    %v1032 = vpop.f32.mrb[0].mxu0
    %1033 = vmatprep.mubr.f32.mxu0 0.0
    %1034 = vmatmul.mubr.f32.gmra.mrb[0].mxu0 %v936
    %v1035 = vpop.f32.mrb[0].mxu0
    %v1036 = vadd.f32 0.0, %v1035
    %v1037 = vpop.f32.mrb[0].mxu0
    %1038 = vmatprep.mubr.f32.mxu0 0.0
    %1039 = vmatmul.mubr.f32.gmra.mrb[0].mxu0 %v939
    %v1040 = vpop.f32.mrb[0].mxu0
    %v1041 = vadd.f32 0.0, %v1040
    %v1042 = vpop.f32.mrb[0].mxu0
    %1043 = vmatprep.mubr.f32.mxu0 0.0
    %1044 = vmatmul.mubr.f32.gmra.mrb[0].mxu0 %v942
    %v1045 = vpop.f32.mrb[0].mxu0
    %v1046 = vadd.f32 0.0, %v1045
    %v1047 = vpop.f32.mrb[0].mxu0
    %1048 = vdwg.mxu0
    %v1049 = vld [vmem:[#allocation2 + $0x50] sm:$0xff]
    %v1050 = vld [vmem:[#allocation2 + $0x58] sm:$0xff]
    %v1051 = vld [vmem:[#allocation2 + $0x60] sm:$0xff]
    %v1052 = vld [vmem:[#allocation2 + $0x68] sm:$0xff]
    %1053 = vmatprep.subr.mxu0 0.0
    %1054 = vmatpush1.msra.mxu0 %v1049
    %1055 = vmatprep.subr.mxu0 0.0
    %1056 = vmatpush1.msra.mxu0 %v1050
    %1057 = vmatprep.subr.mxu0 0.0
    %1058 = vmatpush1.msra.mxu0 %v1051
    %1059 = vmatprep.subr.mxu0 0.0
    %1060 = vmatpush1.msra.mxu0 %v1052
    %1061 = vmatprep.subr.mxu0 0.0
    %1062 = vmatpush1.msra.mxu0 0.0
    %1063 = vmatprep.subr.mxu0 0.0
    %1064 = vmatpush1.msra.mxu0 0.0
    %1065 = vmatprep.subr.mxu0 0.0
    %1066 = vmatpush1.msra.mxu0 0.0
    %1067 = vmatprep.subr.mxu0 0.0
    %1068 = vmatpush1.msra.mxu0 0.0
    %1069 = vmatprep.subr.mxu0 0.0
    %1070 = vmatpush1.msra.mxu0 0.0
    %1071 = vmatprep.subr.mxu0 0.0
    %1072 = vmatpush1.msra.mxu0 0.0
    %1073 = vmatprep.subr.mxu0 0.0
    %1074 = vmatpush1.msra.mxu0 0.0
    %1075 = vmatprep.subr.mxu0 0.0
    %1076 = vmatpush1.msra.mxu0 0.0
    %1077 = vmatprep.subr.mxu0 0.0
    %1078 = vmatpush1.msra.mxu0 0.0
    %1079 = vmatprep.subr.mxu0 0.0
    %1080 = vmatpush1.msra.mxu0 0.0
    %1081 = vmatprep.subr.mxu0 0.0
    %1082 = vmatpush1.msra.mxu0 0.0
    %1083 = vmatprep.subr.mxu0 0.0
    %1084 = vmatpush1.msra.mxu0 0.0
    %1085 = vmatprep.subr.mxu0 0.0
    %1086 = vmatpush1.msra.mxu0 0.0
    %1087 = vmatprep.subr.mxu0 0.0
    %1088 = vmatpush1.msra.mxu0 0.0
    %1089 = vmatprep.subr.mxu0 0.0
    %1090 = vmatpush1.msra.mxu0 0.0
    %1091 = vmatprep.subr.mxu0 0.0
    %1092 = vmatpush1.msra.mxu0 0.0
    %1093 = vmatprep.subr.mxu0 0.0
    %1094 = vmatpush1.msra.mxu0 0.0
    %1095 = vmatprep.subr.mxu0 0.0
    %1096 = vmatpush1.msra.mxu0 0.0
    %1097 = vmatprep.subr.mxu0 0.0
    %1098 = vmatpush1.msra.mxu0 0.0
    %1099 = vmatprep.subr.mxu0 0.0
    %1100 = vmatpush1.msra.mxu0 0.0
    %1101 = vmatprep.subr.mxu0 0.0
    %1102 = vmatpush1.msra.mxu0 0.0
    %1103 = vmatprep.subr.mxu0 0.0
    %1104 = vmatpush1.msra.mxu0 0.0
    %1105 = vmatprep.subr.mxu0 0.0
    %1106 = vmatpush1.msra.mxu0 0.0
    %1107 = vmatprep.subr.mxu0 0.0
    %1108 = vmatpush1.msra.mxu0 0.0
    %1109 = vmatprep.subr.mxu0 0.0
    %1110 = vmatpush1.msra.mxu0 0.0
    %1111 = vmatprep.subr.mxu0 0.0
    %1112 = vmatpush1.msra.mxu0 0.0
    %1113 = vmatprep.subr.mxu0 0.0
    %1114 = vmatpush1.msra.mxu0 0.0
    %1115 = vmatprep.subr.mxu0 0.0
    %1116 = vmatpush1.msra.mxu0 0.0
    %1117 = vmatprep.mubr.f32.mxu0 0.0
    %1118 = vmatmul.mubr.f32.gmra.mrb[0].mxu0 %v921
    %v1119 = vpop.f32.mrb[0].mxu0
    %v1120 = vadd.f32 0.0, %v1119
    %v1121 = vpop.f32.mrb[0].mxu0
    %1122 = vmatprep.mubr.f32.mxu0 0.0
    %1123 = vmatmul.mubr.f32.gmra.mrb[0].mxu0 %v924
    %v1124 = vpop.f32.mrb[0].mxu0
    %v1125 = vadd.f32 0.0, %v1124
    %v1126 = vpop.f32.mrb[0].mxu0
    %1127 = vmatprep.mubr.f32.mxu0 0.0
    %1128 = vmatmul.mubr.f32.gmra.mrb[0].mxu0 %v927
    %v1129 = vpop.f32.mrb[0].mxu0
    %v1130 = vadd.f32 0.0, %v1129
    %v1131 = vpop.f32.mrb[0].mxu0
    %1132 = vmatprep.mubr.f32.mxu0 0.0
    %1133 = vmatmul.mubr.f32.gmra.mrb[0].mxu0 %v930
    %v1134 = vpop.f32.mrb[0].mxu0
    %v1135 = vadd.f32 0.0, %v1134
    %v1136 = vpop.f32.mrb[0].mxu0
    %1137 = vmatprep.mubr.f32.mxu0 0.0
    %1138 = vmatmul.mubr.f32.gmra.mrb[0].mxu0 %v933
    %v1139 = vpop.f32.mrb[0].mxu0
    %v1140 = vadd.f32 0.0, %v1139
    %v1141 = vpop.f32.mrb[0].mxu0
    %1142 = vmatprep.mubr.f32.mxu0 0.0
    %1143 = vmatmul.mubr.f32.gmra.mrb[0].mxu0 %v936
    %v1144 = vpop.f32.mrb[0].mxu0
    %v1145 = vadd.f32 0.0, %v1144
    %v1146 = vpop.f32.mrb[0].mxu0
    %1147 = vmatprep.mubr.f32.mxu0 0.0
    %1148 = vmatmul.mubr.f32.gmra.mrb[0].mxu0 %v939
    %v1149 = vpop.f32.mrb[0].mxu0
    %v1150 = vadd.f32 0.0, %v1149
    %v1151 = vpop.f32.mrb[0].mxu0
    %1152 = vmatprep.mubr.f32.mxu0 0.0
    %1153 = vmatmul.mubr.f32.gmra.mrb[0].mxu0 %v942
    %v1154 = vpop.f32.mrb[0].mxu0
    %v1155 = vadd.f32 0.0, %v1154
    %v1156 = vpop.f32.mrb[0].mxu0
    %1157 = vdwg.mxu0
    %v1159 = vsel %vm919, %v1011, 0
    %v1162 = vsel %vm919, %v1016, 0
    %v1165 = vsel %vm919, %v1021, 0
    %v1168 = vsel %vm919, %v1026, 0
    %v1171 = vsel %vm919, %v1031, 0
    %v1174 = vsel %vm919, %v1036, 0
    %v1177 = vsel %vm919, %v1041, 0
    %v1180 = vsel %vm919, %v1046, 0
    %1182 = vmatprep.subr.mxu0 0.0
    %1183 = vmatpush1.xpose.msra.mxu0 %v1159
    %1184 = vmatprep.subr.mxu0 0.0
    %1185 = vmatpush1.xpose.msra.mxu0 %v1162
    %1186 = vmatprep.subr.mxu0 0.0
    %1187 = vmatpush1.xpose.msra.mxu0 %v1165
    %1188 = vmatprep.subr.mxu0 0.0
    %1189 = vmatpush1.xpose.msra.mxu0 %v1168
    %1190 = vmatprep.subr.mxu0 0.0
    %1191 = vmatpush1.xpose.msra.mxu0 %v1171
    %1192 = vmatprep.subr.mxu0 0.0
    %1193 = vmatpush1.xpose.msra.mxu0 %v1174
    %1194 = vmatprep.subr.mxu0 0.0
    %1195 = vmatpush1.xpose.msra.mxu0 %v1177
    %1196 = vmatprep.subr.mxu0 0.0
    %1197 = vmatpush1.xpose.msra.mxu0 %v1180
    %1198 = vmatprep.subr.mxu0 0.0
    %1199 = vmatpush1.xpose.msra.mxu0 0.0
    %1200 = vmatprep.subr.mxu0 0.0
    %1201 = vmatpush1.xpose.msra.mxu0 0.0
    %1202 = vmatprep.subr.mxu0 0.0
    %1203 = vmatpush1.xpose.msra.mxu0 0.0
    %1204 = vmatprep.subr.mxu0 0.0
    %1205 = vmatpush1.xpose.msra.mxu0 0.0
    %1206 = vmatprep.subr.mxu0 0.0
    %1207 = vmatpush1.xpose.msra.mxu0 0.0
    %1208 = vmatprep.subr.mxu0 0.0
    %1209 = vmatpush1.xpose.msra.mxu0 0.0
    %1210 = vmatprep.subr.mxu0 0.0
    %1211 = vmatpush1.xpose.msra.mxu0 0.0
    %1212 = vmatprep.subr.mxu0 0.0
    %1213 = vmatpush1.xpose.msra.mxu0 0.0
    %1214 = vmatprep.subr.mxu0 0.0
    %1215 = vmatpush1.xpose.msra.mxu0 0.0
    %1216 = vmatprep.subr.mxu0 0.0
    %1217 = vmatpush1.xpose.msra.mxu0 0.0
    %1218 = vmatprep.subr.mxu0 0.0
    %1219 = vmatpush1.xpose.msra.mxu0 0.0
    %1220 = vmatprep.subr.mxu0 0.0
    %1221 = vmatpush1.xpose.msra.mxu0 0.0
    %1222 = vmatprep.subr.mxu0 0.0
    %1223 = vmatpush1.xpose.msra.mxu0 0.0
    %1224 = vmatprep.subr.mxu0 0.0
    %1225 = vmatpush1.xpose.msra.mxu0 0.0
    %1226 = vmatprep.subr.mxu0 0.0
    %1227 = vmatpush1.xpose.msra.mxu0 0.0
    %1228 = vmatprep.subr.mxu0 0.0
    %1229 = vmatpush1.xpose.msra.mxu0 0.0
    %1230 = vmatprep.subr.mxu0 0.0
    %1231 = vmatpush1.xpose.msra.mxu0 0.0
    %1232 = vmatprep.subr.mxu0 0.0
    %1233 = vmatpush1.xpose.msra.mxu0 0.0
    %1234 = vmatprep.subr.mxu0 0.0
    %1235 = vmatpush1.xpose.msra.mxu0 0.0
    %1236 = vmatprep.subr.mxu0 0.0
    %1237 = vmatpush1.xpose.msra.mxu0 0.0
    %1238 = vmatprep.subr.mxu0 0.0
    %1239 = vmatpush1.xpose.msra.mxu0 0.0
    %1240 = vmatprep.subr.mxu0 0.0
    %1241 = vmatpush1.xpose.msra.mxu0 0.0
    %1242 = vmatprep.subr.mxu0 0.0
    %1243 = vmatpush1.xpose.msra.mxu0 0.0
    %1244 = vmatprep.subr.mxu0 0.0
    %1245 = vmatpush1.xpose.msra.mxu0 0.0
    %1246 = vmatprep.mubr.f32.mxu0 0.0
    %1247 = vmatmul.mubr.f32.gmra.mrb[0].mxu0 %v921
    %v1248 = vpop.f32.mrb[0].mxu0
    %v1249 = vadd.f32 %v693, %v1248
    %v1250 = vpop.f32.mrb[0].mxu0
    %1251 = vmatprep.mubr.f32.mxu0 0.0
    %1252 = vmatmul.mubr.f32.gmra.mrb[0].mxu0 %v924
    %v1253 = vpop.f32.mrb[0].mxu0
    %v1254 = vadd.f32 %v694, %v1253
    %v1255 = vpop.f32.mrb[0].mxu0
    %1256 = vmatprep.mubr.f32.mxu0 0.0
    %1257 = vmatmul.mubr.f32.gmra.mrb[0].mxu0 %v927
    %v1258 = vpop.f32.mrb[0].mxu0
    %v1259 = vadd.f32 %v695, %v1258
    %v1260 = vpop.f32.mrb[0].mxu0
    %1261 = vmatprep.mubr.f32.mxu0 0.0
    %1262 = vmatmul.mubr.f32.gmra.mrb[0].mxu0 %v930
    %v1263 = vpop.f32.mrb[0].mxu0
    %v1264 = vadd.f32 %v696, %v1263
    %v1265 = vpop.f32.mrb[0].mxu0
    %1266 = vmatprep.mubr.f32.mxu0 0.0
    %1267 = vmatmul.mubr.f32.gmra.mrb[0].mxu0 %v933
    %v1268 = vpop.f32.mrb[0].mxu0
    %v1269 = vadd.f32 %v697, %v1268
    %v1270 = vpop.f32.mrb[0].mxu0
    %1271 = vmatprep.mubr.f32.mxu0 0.0
    %1272 = vmatmul.mubr.f32.gmra.mrb[0].mxu0 %v936
    %v1273 = vpop.f32.mrb[0].mxu0
    %v1274 = vadd.f32 %v698, %v1273
    %v1275 = vpop.f32.mrb[0].mxu0
    %1276 = vmatprep.mubr.f32.mxu0 0.0
    %1277 = vmatmul.mubr.f32.gmra.mrb[0].mxu0 %v939
    %v1278 = vpop.f32.mrb[0].mxu0
    %v1279 = vadd.f32 %v699, %v1278
    %v1280 = vpop.f32.mrb[0].mxu0
    %1281 = vmatprep.mubr.f32.mxu0 0.0
    %1282 = vmatmul.mubr.f32.gmra.mrb[0].mxu0 %v942
    %v1283 = vpop.f32.mrb[0].mxu0
    %v1284 = vadd.f32 %v700, %v1283
    %v1285 = vpop.f32.mrb[0].mxu0
    %1286 = vdwg.mxu0
    %vm1287 = vcmask 523264
    %v1288 = vsel %vm1287, %v1249, -inf
    %1289 = vmax.xlane.f32.xlu0 %v1288
    %v1290 = vpop.xlane.xlu0 %1289
    %v1291 = vsel %vm1287, %v1254, -inf
    %1292 = vmax.xlane.f32.xlu0 %v1291
    %v1293 = vpop.xlane.xlu0 %1292
    %v1294 = vsel %vm1287, %v1259, -inf
    %1295 = vmax.xlane.f32.xlu0 %v1294
    %v1296 = vpop.xlane.xlu0 %1295
    %v1297 = vsel %vm1287, %v1264, -inf
    %1298 = vmax.xlane.f32.xlu0 %v1297
    %v1299 = vpop.xlane.xlu0 %1298
    %v1300 = vsel %vm1287, %v1269, -inf
    %1301 = vmax.xlane.f32.xlu0 %v1300
    %v1302 = vpop.xlane.xlu0 %1301
    %v1303 = vsel %vm1287, %v1274, -inf
    %1304 = vmax.xlane.f32.xlu0 %v1303
    %v1305 = vpop.xlane.xlu0 %1304
    %v1306 = vsel %vm1287, %v1279, -inf
    %1307 = vmax.xlane.f32.xlu0 %v1306
    %v1308 = vpop.xlane.xlu0 %1307
    %v1309 = vsel %vm1287, %v1284, -inf
    %1310 = vmax.xlane.f32.xlu0 %v1309
    %v1311 = vpop.xlane.xlu0 %1310
    %v1312 = vsub.f32 %v1249, %v1290
    %v1313 = vsub.f32 %v1254, %v1293
    %v1314 = vsub.f32 %v1259, %v1296
    %v1315 = vsub.f32 %v1264, %v1299
    %v1316 = vsub.f32 %v1269, %v1302
    %v1317 = vsub.f32 %v1274, %v1305
    %v1318 = vsub.f32 %v1279, %v1308
    %v1319 = vsub.f32 %v1284, %v1311
    %v1320 = vmul.f32 %v1312, 1.442695
    %v1321 = vpow.pop %v1320
    %v1322 = vmul.f32 %v1313, 1.442695
    %v1323 = vpow.pop %v1322
    %v1324 = vmul.f32 %v1314, 1.442695
    %v1325 = vpow.pop %v1324
    %v1326 = vmul.f32 %v1315, 1.442695
    %v1327 = vpow.pop %v1326
    %v1328 = vmul.f32 %v1316, 1.442695
    %v1329 = vpow.pop %v1328
    %v1330 = vmul.f32 %v1317, 1.442695
    %v1331 = vpow.pop %v1330
    %v1332 = vmul.f32 %v1318, 1.442695
    %v1333 = vpow.pop %v1332
    %v1334 = vmul.f32 %v1319, 1.442695
    %v1335 = vpow.pop %v1334
    %v1336 = vsel %vm1287, %v1321, 0.0
    %1337 = vadd.xlane.f32.xlu0 %v1336
    %v1338 = vpop.xlane.xlu0 %1337
    %v1339 = vsel %vm1287, %v1323, 0.0
    %1340 = vadd.xlane.f32.xlu0 %v1339
    %v1341 = vpop.xlane.xlu0 %1340
    %v1342 = vsel %vm1287, %v1325, 0.0
    %1343 = vadd.xlane.f32.xlu0 %v1342
    %v1344 = vpop.xlane.xlu0 %1343
    %v1345 = vsel %vm1287, %v1327, 0.0
    %1346 = vadd.xlane.f32.xlu0 %v1345
    %v1347 = vpop.xlane.xlu0 %1346
    %v1348 = vsel %vm1287, %v1329, 0.0
    %1349 = vadd.xlane.f32.xlu0 %v1348
    %v1350 = vpop.xlane.xlu0 %1349
    %v1351 = vsel %vm1287, %v1331, 0.0
    %1352 = vadd.xlane.f32.xlu0 %v1351
    %v1353 = vpop.xlane.xlu0 %1352
    %v1354 = vsel %vm1287, %v1333, 0.0
    %1355 = vadd.xlane.f32.xlu0 %v1354
    %v1356 = vpop.xlane.xlu0 %1355
    %v1357 = vsel %vm1287, %v1335, 0.0
    %1358 = vadd.xlane.f32.xlu0 %v1357
    %v1359 = vpop.xlane.xlu0 %1358
    %v1360 = vrcp.pop %v1338
    %v1361 = vrcp.pop %v1341
    %v1362 = vrcp.pop %v1344
    %v1363 = vrcp.pop %v1347
    %v1364 = vrcp.pop %v1350
    %v1365 = vrcp.pop %v1353
    %v1366 = vrcp.pop %v1356
    %v1367 = vrcp.pop %v1359
    %v1368 = vmul.f32 %v1321, %v1360
    %v1369 = vmul.f32 %v1323, %v1361
    %v1370 = vmul.f32 %v1325, %v1362
    %v1371 = vmul.f32 %v1327, %v1363
    %v1372 = vmul.f32 %v1329, %v1364
    %v1373 = vmul.f32 %v1331, %v1365
    %v1374 = vmul.f32 %v1333, %v1366
    %v1375 = vmul.f32 %v1335, %v1367
    %v1377 = vsel %vm1287, %v1368, 0
    %v1380 = vsel %vm1287, %v1369, 0
    %v1383 = vsel %vm1287, %v1370, 0
    %v1386 = vsel %vm1287, %v1371, 0
    %v1389 = vsel %vm1287, %v1372, 0
    %v1392 = vsel %vm1287, %v1373, 0
    %v1395 = vsel %vm1287, %v1374, 0
    %v1398 = vsel %vm1287, %v1375, 0
    %1400 = vmatprep.subr.mxu0 0.0
    %1401 = vmatpush1.msra.mxu0 %v1120
    %1402 = vmatprep.subr.mxu0 0.0
    %1403 = vmatpush1.msra.mxu0 %v1125
    %1404 = vmatprep.subr.mxu0 0.0
    %1405 = vmatpush1.msra.mxu0 %v1130
    %1406 = vmatprep.subr.mxu0 0.0
    %1407 = vmatpush1.msra.mxu0 %v1135
    %1408 = vmatprep.subr.mxu0 0.0
    %1409 = vmatpush1.msra.mxu0 %v1140
    %1410 = vmatprep.subr.mxu0 0.0
    %1411 = vmatpush1.msra.mxu0 %v1145
    %1412 = vmatprep.subr.mxu0 0.0
    %1413 = vmatpush1.msra.mxu0 %v1150
    %1414 = vmatprep.subr.mxu0 0.0
    %1415 = vmatpush1.msra.mxu0 %v1155
    %1416 = vmatprep.subr.mxu0 0.0
    %1417 = vmatpush1.msra.mxu0 0.0
    %1418 = vmatprep.subr.mxu0 0.0
    %1419 = vmatpush1.msra.mxu0 0.0
    %1420 = vmatprep.subr.mxu0 0.0
    %1421 = vmatpush1.msra.mxu0 0.0
    %1422 = vmatprep.subr.mxu0 0.0
    %1423 = vmatpush1.msra.mxu0 0.0
    %1424 = vmatprep.subr.mxu0 0.0
    %1425 = vmatpush1.msra.mxu0 0.0
    %1426 = vmatprep.subr.mxu0 0.0
    %1427 = vmatpush1.msra.mxu0 0.0
    %1428 = vmatprep.subr.mxu0 0.0
    %1429 = vmatpush1.msra.mxu0 0.0
    %1430 = vmatprep.subr.mxu0 0.0
    %1431 = vmatpush1.msra.mxu0 0.0
    %1432 = vmatprep.subr.mxu0 0.0
    %1433 = vmatpush1.msra.mxu0 0.0
    %1434 = vmatprep.subr.mxu0 0.0
    %1435 = vmatpush1.msra.mxu0 0.0
    %1436 = vmatprep.subr.mxu0 0.0
    %1437 = vmatpush1.msra.mxu0 0.0
    %1438 = vmatprep.subr.mxu0 0.0
    %1439 = vmatpush1.msra.mxu0 0.0
    %1440 = vmatprep.subr.mxu0 0.0
    %1441 = vmatpush1.msra.mxu0 0.0
    %1442 = vmatprep.subr.mxu0 0.0
    %1443 = vmatpush1.msra.mxu0 0.0
    %1444 = vmatprep.subr.mxu0 0.0
    %1445 = vmatpush1.msra.mxu0 0.0
    %1446 = vmatprep.subr.mxu0 0.0
    %1447 = vmatpush1.msra.mxu0 0.0
    %1448 = vmatprep.subr.mxu0 0.0
    %1449 = vmatpush1.msra.mxu0 0.0
    %1450 = vmatprep.subr.mxu0 0.0
    %1451 = vmatpush1.msra.mxu0 0.0
    %1452 = vmatprep.subr.mxu0 0.0
    %1453 = vmatpush1.msra.mxu0 0.0
    %1454 = vmatprep.subr.mxu0 0.0
    %1455 = vmatpush1.msra.mxu0 0.0
    %1456 = vmatprep.subr.mxu0 0.0
    %1457 = vmatpush1.msra.mxu0 0.0
    %1458 = vmatprep.subr.mxu0 0.0
    %1459 = vmatpush1.msra.mxu0 0.0
    %1460 = vmatprep.subr.mxu0 0.0
    %1461 = vmatpush1.msra.mxu0 0.0
    %1462 = vmatprep.subr.mxu0 0.0
    %1463 = vmatpush1.msra.mxu0 0.0
    %1464 = vmatprep.mubr.f32.mxu0 0.0
    %1465 = vmatmul.mubr.f32.gmra.mrb[0].mxu0 %v1377
    %v1466 = vpop.f32.mrb[0].mxu0
    %v1467 = vadd.f32 %v770, %v1466
    %v1468 = vpop.f32.mrb[0].mxu0
    %1469 = vmatprep.mubr.f32.mxu0 0.0
    %1470 = vmatmul.mubr.f32.gmra.mrb[0].mxu0 %v1380
    %v1471 = vpop.f32.mrb[0].mxu0
    %v1472 = vadd.f32 %v775, %v1471
    %v1473 = vpop.f32.mrb[0].mxu0
    %1474 = vmatprep.mubr.f32.mxu0 0.0
    %1475 = vmatmul.mubr.f32.gmra.mrb[0].mxu0 %v1383
    %v1476 = vpop.f32.mrb[0].mxu0
    %v1477 = vadd.f32 %v780, %v1476
    %v1478 = vpop.f32.mrb[0].mxu0
    %1479 = vmatprep.mubr.f32.mxu0 0.0
    %1480 = vmatmul.mubr.f32.gmra.mrb[0].mxu0 %v1386
    %v1481 = vpop.f32.mrb[0].mxu0
    %v1482 = vadd.f32 %v785, %v1481
    %v1483 = vpop.f32.mrb[0].mxu0
    %1484 = vmatprep.mubr.f32.mxu0 0.0
    %1485 = vmatmul.mubr.f32.gmra.mrb[0].mxu0 %v1389
    %v1486 = vpop.f32.mrb[0].mxu0
    %v1487 = vadd.f32 %v790, %v1486
    %v1488 = vpop.f32.mrb[0].mxu0
    %1489 = vmatprep.mubr.f32.mxu0 0.0
    %1490 = vmatmul.mubr.f32.gmra.mrb[0].mxu0 %v1392
    %v1491 = vpop.f32.mrb[0].mxu0
    %v1492 = vadd.f32 %v795, %v1491
    %v1493 = vpop.f32.mrb[0].mxu0
    %1494 = vmatprep.mubr.f32.mxu0 0.0
    %1495 = vmatmul.mubr.f32.gmra.mrb[0].mxu0 %v1395
    %v1496 = vpop.f32.mrb[0].mxu0
    %v1497 = vadd.f32 %v800, %v1496
    %v1498 = vpop.f32.mrb[0].mxu0
    %1499 = vmatprep.mubr.f32.mxu0 0.0
    %1500 = vmatmul.mubr.f32.gmra.mrb[0].mxu0 %v1398
    %v1501 = vpop.f32.mrb[0].mxu0
    %v1502 = vadd.f32 %v805, %v1501
    %v1503 = vpop.f32.mrb[0].mxu0
    %1504 = vdwg.mxu0
    %v1505 = vmax.f32 %v1467, 0.0
    %v1506 = vmax.f32 %v1472, 0.0
    %v1507 = vmax.f32 %v1477, 0.0
    %v1508 = vmax.f32 %v1482, 0.0
    %v1509 = vmax.f32 %v1487, 0.0
    %v1510 = vmax.f32 %v1492, 0.0
    %v1511 = vmax.f32 %v1497, 0.0
    %v1512 = vmax.f32 %v1502, 0.0
    %v1513 = vadd.f32 %v1505, %v657
    %v1514 = vadd.f32 %v1506, %v658
    %v1515 = vadd.f32 %v1507, %v659
    %v1516 = vadd.f32 %v1508, %v660
    %v1517 = vadd.f32 %v1509, %v661
    %v1518 = vadd.f32 %v1510, %v662
    %v1519 = vadd.f32 %v1511, %v663
    %v1520 = vadd.f32 %v1512, %v664
    %v1521 = vld [vmem:[#allocation2 + $0x80] sm:$0xff]
    %v1522 = vld [vmem:[#allocation2 + $0x88] sm:$0xff]
    %v1523 = vld [vmem:[#allocation2 + $0x90] sm:$0xff]
    %v1524 = vld [vmem:[#allocation2 + $0x98] sm:$0xff]
    %v1526 = vsel %vm919, %v1513, 0
    %v1529 = vsel %vm919, %v1514, 0
    %v1532 = vsel %vm919, %v1515, 0
    %v1535 = vsel %vm919, %v1516, 0
    %v1538 = vsel %vm919, %v1517, 0
    %v1541 = vsel %vm919, %v1518, 0
    %v1544 = vsel %vm919, %v1519, 0
    %v1547 = vsel %vm919, %v1520, 0
    %1549 = vmatprep.subr.mxu0 0.0
    %1550 = vmatpush1.msra.mxu0 %v1521
    %1551 = vmatprep.subr.mxu0 0.0
    %1552 = vmatpush1.msra.mxu0 %v1522
    %1553 = vmatprep.subr.mxu0 0.0
    %1554 = vmatpush1.msra.mxu0 %v1523
    %1555 = vmatprep.subr.mxu0 0.0
    %1556 = vmatpush1.msra.mxu0 %v1524
    %1557 = vmatprep.subr.mxu0 0.0
    %1558 = vmatpush1.msra.mxu0 0.0
    %1559 = vmatprep.subr.mxu0 0.0
    %1560 = vmatpush1.msra.mxu0 0.0
    %1561 = vmatprep.subr.mxu0 0.0
    %1562 = vmatpush1.msra.mxu0 0.0
    %1563 = vmatprep.subr.mxu0 0.0
    %1564 = vmatpush1.msra.mxu0 0.0
    %1565 = vmatprep.subr.mxu0 0.0
    %1566 = vmatpush1.msra.mxu0 0.0
    %1567 = vmatprep.subr.mxu0 0.0
    %1568 = vmatpush1.msra.mxu0 0.0
    %1569 = vmatprep.subr.mxu0 0.0
    %1570 = vmatpush1.msra.mxu0 0.0
    %1571 = vmatprep.subr.mxu0 0.0
    %1572 = vmatpush1.msra.mxu0 0.0
    %1573 = vmatprep.subr.mxu0 0.0
    %1574 = vmatpush1.msra.mxu0 0.0
    %1575 = vmatprep.subr.mxu0 0.0
    %1576 = vmatpush1.msra.mxu0 0.0
    %1577 = vmatprep.subr.mxu0 0.0
    %1578 = vmatpush1.msra.mxu0 0.0
    %1579 = vmatprep.subr.mxu0 0.0
    %1580 = vmatpush1.msra.mxu0 0.0
    %1581 = vmatprep.subr.mxu0 0.0
    %1582 = vmatpush1.msra.mxu0 0.0
    %1583 = vmatprep.subr.mxu0 0.0
    %1584 = vmatpush1.msra.mxu0 0.0
    %1585 = vmatprep.subr.mxu0 0.0
    %1586 = vmatpush1.msra.mxu0 0.0
    %1587 = vmatprep.subr.mxu0 0.0
    %1588 = vmatpush1.msra.mxu0 0.0
    %1589 = vmatprep.subr.mxu0 0.0
    %1590 = vmatpush1.msra.mxu0 0.0
    %1591 = vmatprep.subr.mxu0 0.0
    %1592 = vmatpush1.msra.mxu0 0.0
    %1593 = vmatprep.subr.mxu0 0.0
    %1594 = vmatpush1.msra.mxu0 0.0
    %1595 = vmatprep.subr.mxu0 0.0
    %1596 = vmatpush1.msra.mxu0 0.0
    %1597 = vmatprep.subr.mxu0 0.0
    %1598 = vmatpush1.msra.mxu0 0.0
    %1599 = vmatprep.subr.mxu0 0.0
    %1600 = vmatpush1.msra.mxu0 0.0
    %1601 = vmatprep.subr.mxu0 0.0
    %1602 = vmatpush1.msra.mxu0 0.0
    %1603 = vmatprep.subr.mxu0 0.0
    %1604 = vmatpush1.msra.mxu0 0.0
    %1605 = vmatprep.subr.mxu0 0.0
    %1606 = vmatpush1.msra.mxu0 0.0
    %1607 = vmatprep.subr.mxu0 0.0
    %1608 = vmatpush1.msra.mxu0 0.0
    %1609 = vmatprep.subr.mxu0 0.0
    %1610 = vmatpush1.msra.mxu0 0.0
    %1611 = vmatprep.subr.mxu0 0.0
    %1612 = vmatpush1.msra.mxu0 0.0
    %1613 = vmatprep.mubr.f32.mxu0 0.0
    %1614 = vmatmul.mubr.f32.gmra.mrb[0].mxu0 %v1526
    %v1615 = vpop.f32.mrb[0].mxu0
    %v1616 = vadd.f32 0.0, %v1615
    %v1617 = vpop.f32.mrb[0].mxu0
    %1618 = vmatprep.mubr.f32.mxu0 0.0
    %1619 = vmatmul.mubr.f32.gmra.mrb[0].mxu0 %v1529
    %v1620 = vpop.f32.mrb[0].mxu0
    %v1621 = vadd.f32 0.0, %v1620
    %v1622 = vpop.f32.mrb[0].mxu0
    %1623 = vmatprep.mubr.f32.mxu0 0.0
    %1624 = vmatmul.mubr.f32.gmra.mrb[0].mxu0 %v1532
    %v1625 = vpop.f32.mrb[0].mxu0
    %v1626 = vadd.f32 0.0, %v1625
    %v1627 = vpop.f32.mrb[0].mxu0
    %1628 = vmatprep.mubr.f32.mxu0 0.0
    %1629 = vmatmul.mubr.f32.gmra.mrb[0].mxu0 %v1535
    %v1630 = vpop.f32.mrb[0].mxu0
    %v1631 = vadd.f32 0.0, %v1630
    %v1632 = vpop.f32.mrb[0].mxu0
    %1633 = vmatprep.mubr.f32.mxu0 0.0
    %1634 = vmatmul.mubr.f32.gmra.mrb[0].mxu0 %v1538
    %v1635 = vpop.f32.mrb[0].mxu0
    %v1636 = vadd.f32 0.0, %v1635
    %v1637 = vpop.f32.mrb[0].mxu0
    %1638 = vmatprep.mubr.f32.mxu0 0.0
    %1639 = vmatmul.mubr.f32.gmra.mrb[0].mxu0 %v1541
    %v1640 = vpop.f32.mrb[0].mxu0
    %v1641 = vadd.f32 0.0, %v1640
    %v1642 = vpop.f32.mrb[0].mxu0
    %1643 = vmatprep.mubr.f32.mxu0 0.0
    %1644 = vmatmul.mubr.f32.gmra.mrb[0].mxu0 %v1544
    %v1645 = vpop.f32.mrb[0].mxu0
    %v1646 = vadd.f32 0.0, %v1645
    %v1647 = vpop.f32.mrb[0].mxu0
    %1648 = vmatprep.mubr.f32.mxu0 0.0
    %1649 = vmatmul.mubr.f32.gmra.mrb[0].mxu0 %v1547
    %v1650 = vpop.f32.mrb[0].mxu0
    %v1651 = vadd.f32 0.0, %v1650
    %v1652 = vpop.f32.mrb[0].mxu0
    %1653 = vdwg.mxu0
    %v1654 = vmax.f32 %v1616, 0.0
    %v1655 = vmax.f32 %v1621, 0.0
    %v1656 = vmax.f32 %v1626, 0.0
    %v1657 = vmax.f32 %v1631, 0.0
    %v1658 = vmax.f32 %v1636, 0.0
    %v1659 = vmax.f32 %v1641, 0.0
    %v1660 = vmax.f32 %v1646, 0.0
    %v1661 = vmax.f32 %v1651, 0.0
    %v1662 = vld [vmem:[#allocation2 + $0xa0] sm:$0xff]
    %v1663 = vld [vmem:[#allocation2 + $0xa8] sm:$0xff]
    %v1664 = vld [vmem:[#allocation2 + $0xb0] sm:$0xff]
    %v1665 = vld [vmem:[#allocation2 + $0xb8] sm:$0xff]
    %v1666 = vld [vmem:[#allocation2 + $0xc0] sm:$0xff]
    %v1667 = vld [vmem:[#allocation2 + $0xc8] sm:$0xff]
    %v1668 = vld [vmem:[#allocation2 + $0xd0] sm:$0xff]
    %v1669 = vld [vmem:[#allocation2 + $0xd8] sm:$0xff]
    %v1671 = vsel %vm1287, %v1654, 0
    %v1674 = vsel %vm1287, %v1655, 0
    %v1677 = vsel %vm1287, %v1656, 0
    %v1680 = vsel %vm1287, %v1657, 0
    %v1683 = vsel %vm1287, %v1658, 0
    %v1686 = vsel %vm1287, %v1659, 0
    %v1689 = vsel %vm1287, %v1660, 0
    %v1692 = vsel %vm1287, %v1661, 0
    %1694 = vmatprep.subr.mxu0 0.0
    %1695 = vmatpush1.msra.mxu0 %v1662
    %1696 = vmatprep.subr.mxu0 0.0
    %1697 = vmatpush1.msra.mxu0 %v1663
    %1698 = vmatprep.subr.mxu0 0.0
    %1699 = vmatpush1.msra.mxu0 %v1664
    %1700 = vmatprep.subr.mxu0 0.0
    %1701 = vmatpush1.msra.mxu0 %v1665
    %1702 = vmatprep.subr.mxu0 0.0
    %1703 = vmatpush1.msra.mxu0 %v1666
    %1704 = vmatprep.subr.mxu0 0.0
    %1705 = vmatpush1.msra.mxu0 %v1667
    %1706 = vmatprep.subr.mxu0 0.0
    %1707 = vmatpush1.msra.mxu0 %v1668
    %1708 = vmatprep.subr.mxu0 0.0
    %1709 = vmatpush1.msra.mxu0 %v1669
    %1710 = vmatprep.subr.mxu0 0.0
    %1711 = vmatpush1.msra.mxu0 0.0
    %1712 = vmatprep.subr.mxu0 0.0
    %1713 = vmatpush1.msra.mxu0 0.0
    %1714 = vmatprep.subr.mxu0 0.0
    %1715 = vmatpush1.msra.mxu0 0.0
    %1716 = vmatprep.subr.mxu0 0.0
    %1717 = vmatpush1.msra.mxu0 0.0
    %1718 = vmatprep.subr.mxu0 0.0
    %1719 = vmatpush1.msra.mxu0 0.0
    %1720 = vmatprep.subr.mxu0 0.0
    %1721 = vmatpush1.msra.mxu0 0.0
    %1722 = vmatprep.subr.mxu0 0.0
    %1723 = vmatpush1.msra.mxu0 0.0
    %1724 = vmatprep.subr.mxu0 0.0
    %1725 = vmatpush1.msra.mxu0 0.0
    %1726 = vmatprep.subr.mxu0 0.0
    %1727 = vmatpush1.msra.mxu0 0.0
    %1728 = vmatprep.subr.mxu0 0.0
    %1729 = vmatpush1.msra.mxu0 0.0
    %1730 = vmatprep.subr.mxu0 0.0
    %1731 = vmatpush1.msra.mxu0 0.0
    %1732 = vmatprep.subr.mxu0 0.0
    %1733 = vmatpush1.msra.mxu0 0.0
    %1734 = vmatprep.subr.mxu0 0.0
    %1735 = vmatpush1.msra.mxu0 0.0
    %1736 = vmatprep.subr.mxu0 0.0
    %1737 = vmatpush1.msra.mxu0 0.0
    %1738 = vmatprep.subr.mxu0 0.0
    %1739 = vmatpush1.msra.mxu0 0.0
    %1740 = vmatprep.subr.mxu0 0.0
    %1741 = vmatpush1.msra.mxu0 0.0
    %1742 = vmatprep.subr.mxu0 0.0
    %1743 = vmatpush1.msra.mxu0 0.0
    %1744 = vmatprep.subr.mxu0 0.0
    %1745 = vmatpush1.msra.mxu0 0.0
    %1746 = vmatprep.subr.mxu0 0.0
    %1747 = vmatpush1.msra.mxu0 0.0
    %1748 = vmatprep.subr.mxu0 0.0
    %1749 = vmatpush1.msra.mxu0 0.0
    %1750 = vmatprep.subr.mxu0 0.0
    %1751 = vmatpush1.msra.mxu0 0.0
    %1752 = vmatprep.subr.mxu0 0.0
    %1753 = vmatpush1.msra.mxu0 0.0
    %1754 = vmatprep.subr.mxu0 0.0
    %1755 = vmatpush1.msra.mxu0 0.0
    %1756 = vmatprep.subr.mxu0 0.0
    %1757 = vmatpush1.msra.mxu0 0.0
    %1758 = vmatprep.mubr.f32.mxu0 0.0
    %1759 = vmatmul.mubr.f32.gmra.mrb[0].mxu0 %v1671
    %v1760 = vpop.f32.mrb[0].mxu0
    %v1761 = vadd.f32 0.0, %v1760
    %v1762 = vpop.f32.mrb[0].mxu0
    %1763 = vmatprep.mubr.f32.mxu0 0.0
    %1764 = vmatmul.mubr.f32.gmra.mrb[0].mxu0 %v1674
    %v1765 = vpop.f32.mrb[0].mxu0
    %v1766 = vadd.f32 0.0, %v1765
    %v1767 = vpop.f32.mrb[0].mxu0
    %1768 = vmatprep.mubr.f32.mxu0 0.0
    %1769 = vmatmul.mubr.f32.gmra.mrb[0].mxu0 %v1677
    %v1770 = vpop.f32.mrb[0].mxu0
    %v1771 = vadd.f32 0.0, %v1770
    %v1772 = vpop.f32.mrb[0].mxu0
    %1773 = vmatprep.mubr.f32.mxu0 0.0
    %1774 = vmatmul.mubr.f32.gmra.mrb[0].mxu0 %v1680
    %v1775 = vpop.f32.mrb[0].mxu0
    %v1776 = vadd.f32 0.0, %v1775
    %v1777 = vpop.f32.mrb[0].mxu0
    %1778 = vmatprep.mubr.f32.mxu0 0.0
    %1779 = vmatmul.mubr.f32.gmra.mrb[0].mxu0 %v1683
    %v1780 = vpop.f32.mrb[0].mxu0
    %v1781 = vadd.f32 0.0, %v1780
    %v1782 = vpop.f32.mrb[0].mxu0
    %1783 = vmatprep.mubr.f32.mxu0 0.0
    %1784 = vmatmul.mubr.f32.gmra.mrb[0].mxu0 %v1686
    %v1785 = vpop.f32.mrb[0].mxu0
    %v1786 = vadd.f32 0.0, %v1785
    %v1787 = vpop.f32.mrb[0].mxu0
    %1788 = vmatprep.mubr.f32.mxu0 0.0
    %1789 = vmatmul.mubr.f32.gmra.mrb[0].mxu0 %v1689
    %v1790 = vpop.f32.mrb[0].mxu0
    %v1791 = vadd.f32 0.0, %v1790
    %v1792 = vpop.f32.mrb[0].mxu0
    %1793 = vmatprep.mubr.f32.mxu0 0.0
    %1794 = vmatmul.mubr.f32.gmra.mrb[0].mxu0 %v1692
    %v1795 = vpop.f32.mrb[0].mxu0
    %v1796 = vadd.f32 0.0, %v1795
    %v1797 = vpop.f32.mrb[0].mxu0
    %1798 = vdwg.mxu0
    %v1799 = vmax.f32 %v1761, 0.0
    %v1800 = vmax.f32 %v1766, 0.0
    %v1801 = vmax.f32 %v1771, 0.0
    %v1802 = vmax.f32 %v1776, 0.0
    %v1803 = vmax.f32 %v1781, 0.0
    %v1804 = vmax.f32 %v1786, 0.0
    %v1805 = vmax.f32 %v1791, 0.0
    %v1806 = vmax.f32 %v1796, 0.0
    %v1807 = vadd.f32 %v1799, %v1513
    %v1808 = vadd.f32 %v1800, %v1514
    %v1809 = vadd.f32 %v1801, %v1515
    %v1810 = vadd.f32 %v1802, %v1516
    %v1811 = vadd.f32 %v1803, %v1517
    %v1812 = vadd.f32 %v1804, %v1518
    %v1813 = vadd.f32 %v1805, %v1519
    %v1814 = vadd.f32 %v1806, %v1520
    %v1815 = vld [vmem:[#allocation2 + $0xe0] sm:$0xff]
    %v1816 = vld [vmem:[#allocation2 + $0xe8] sm:$0xff]
    %v1817 = vld [vmem:[#allocation2 + $0xf0] sm:$0xff]
    %v1818 = vld [vmem:[#allocation2 + $0xf8] sm:$0xff]
    %v1820 = vsel %vm919, %v1807, 0
    %v1823 = vsel %vm919, %v1808, 0
    %v1826 = vsel %vm919, %v1809, 0
    %v1829 = vsel %vm919, %v1810, 0
    %v1832 = vsel %vm919, %v1811, 0
    %v1835 = vsel %vm919, %v1812, 0
    %v1838 = vsel %vm919, %v1813, 0
    %v1841 = vsel %vm919, %v1814, 0
    %1843 = vmatprep.subr.mxu0 0.0
    %1844 = vmatpush1.msra.mxu0 %v1815
    %1845 = vmatprep.subr.mxu0 0.0
    %1846 = vmatpush1.msra.mxu0 %v1816
    %1847 = vmatprep.subr.mxu0 0.0
    %1848 = vmatpush1.msra.mxu0 %v1817
    %1849 = vmatprep.subr.mxu0 0.0
    %1850 = vmatpush1.msra.mxu0 %v1818
    %1851 = vmatprep.subr.mxu0 0.0
    %1852 = vmatpush1.msra.mxu0 0.0
    %1853 = vmatprep.subr.mxu0 0.0
    %1854 = vmatpush1.msra.mxu0 0.0
    %1855 = vmatprep.subr.mxu0 0.0
    %1856 = vmatpush1.msra.mxu0 0.0
    %1857 = vmatprep.subr.mxu0 0.0
    %1858 = vmatpush1.msra.mxu0 0.0
    %1859 = vmatprep.subr.mxu0 0.0
    %1860 = vmatpush1.msra.mxu0 0.0
    %1861 = vmatprep.subr.mxu0 0.0
    %1862 = vmatpush1.msra.mxu0 0.0
    %1863 = vmatprep.subr.mxu0 0.0
    %1864 = vmatpush1.msra.mxu0 0.0
    %1865 = vmatprep.subr.mxu0 0.0
    %1866 = vmatpush1.msra.mxu0 0.0
    %1867 = vmatprep.subr.mxu0 0.0
    %1868 = vmatpush1.msra.mxu0 0.0
    %1869 = vmatprep.subr.mxu0 0.0
    %1870 = vmatpush1.msra.mxu0 0.0
    %1871 = vmatprep.subr.mxu0 0.0
    %1872 = vmatpush1.msra.mxu0 0.0
    %1873 = vmatprep.subr.mxu0 0.0
    %1874 = vmatpush1.msra.mxu0 0.0
    %1875 = vmatprep.subr.mxu0 0.0
    %1876 = vmatpush1.msra.mxu0 0.0
    %1877 = vmatprep.subr.mxu0 0.0
    %1878 = vmatpush1.msra.mxu0 0.0
    %1879 = vmatprep.subr.mxu0 0.0
    %1880 = vmatpush1.msra.mxu0 0.0
    %1881 = vmatprep.subr.mxu0 0.0
    %1882 = vmatpush1.msra.mxu0 0.0
    %1883 = vmatprep.subr.mxu0 0.0
    %1884 = vmatpush1.msra.mxu0 0.0
    %1885 = vmatprep.subr.mxu0 0.0
    %1886 = vmatpush1.msra.mxu0 0.0
    %1887 = vmatprep.subr.mxu0 0.0
    %1888 = vmatpush1.msra.mxu0 0.0
    %1889 = vmatprep.subr.mxu0 0.0
    %1890 = vmatpush1.msra.mxu0 0.0
    %1891 = vmatprep.subr.mxu0 0.0
    %1892 = vmatpush1.msra.mxu0 0.0
    %1893 = vmatprep.subr.mxu0 0.0
    %1894 = vmatpush1.msra.mxu0 0.0
    %1895 = vmatprep.subr.mxu0 0.0
    %1896 = vmatpush1.msra.mxu0 0.0
    %1897 = vmatprep.subr.mxu0 0.0
    %1898 = vmatpush1.msra.mxu0 0.0
    %1899 = vmatprep.subr.mxu0 0.0
    %1900 = vmatpush1.msra.mxu0 0.0
    %1901 = vmatprep.subr.mxu0 0.0
    %1902 = vmatpush1.msra.mxu0 0.0
    %1903 = vmatprep.subr.mxu0 0.0
    %1904 = vmatpush1.msra.mxu0 0.0
    %1905 = vmatprep.subr.mxu0 0.0
    %1906 = vmatpush1.msra.mxu0 0.0
    %1907 = vmatprep.mubr.f32.mxu0 0.0
    %1908 = vmatmul.mubr.f32.gmra.mrb[0].mxu0 %v1820
    %v1909 = vpop.f32.mrb[0].mxu0
    %v1910 = vadd.f32 0.0, %v1909
    %v1911 = vpop.f32.mrb[0].mxu0
    %1912 = vmatprep.mubr.f32.mxu0 0.0
    %1913 = vmatmul.mubr.f32.gmra.mrb[0].mxu0 %v1823
    %v1914 = vpop.f32.mrb[0].mxu0
    %v1915 = vadd.f32 0.0, %v1914
    %v1916 = vpop.f32.mrb[0].mxu0
    %1917 = vmatprep.mubr.f32.mxu0 0.0
    %1918 = vmatmul.mubr.f32.gmra.mrb[0].mxu0 %v1826
    %v1919 = vpop.f32.mrb[0].mxu0
    %v1920 = vadd.f32 0.0, %v1919
    %v1921 = vpop.f32.mrb[0].mxu0
    %1922 = vmatprep.mubr.f32.mxu0 0.0
    %1923 = vmatmul.mubr.f32.gmra.mrb[0].mxu0 %v1829
    %v1924 = vpop.f32.mrb[0].mxu0
    %v1925 = vadd.f32 0.0, %v1924
    %v1926 = vpop.f32.mrb[0].mxu0
    %1927 = vmatprep.mubr.f32.mxu0 0.0
    %1928 = vmatmul.mubr.f32.gmra.mrb[0].mxu0 %v1832
    %v1929 = vpop.f32.mrb[0].mxu0
    %v1930 = vadd.f32 0.0, %v1929
    %v1931 = vpop.f32.mrb[0].mxu0
    %1932 = vmatprep.mubr.f32.mxu0 0.0
    %1933 = vmatmul.mubr.f32.gmra.mrb[0].mxu0 %v1835
    %v1934 = vpop.f32.mrb[0].mxu0
    %v1935 = vadd.f32 0.0, %v1934
    %v1936 = vpop.f32.mrb[0].mxu0
    %1937 = vmatprep.mubr.f32.mxu0 0.0
    %1938 = vmatmul.mubr.f32.gmra.mrb[0].mxu0 %v1838
    %v1939 = vpop.f32.mrb[0].mxu0
    %v1940 = vadd.f32 0.0, %v1939
    %v1941 = vpop.f32.mrb[0].mxu0
    %1942 = vmatprep.mubr.f32.mxu0 0.0
    %1943 = vmatmul.mubr.f32.gmra.mrb[0].mxu0 %v1841
    %v1944 = vpop.f32.mrb[0].mxu0
    %v1945 = vadd.f32 0.0, %v1944
    %v1946 = vpop.f32.mrb[0].mxu0
    %1947 = vdwg.mxu0
    %v1948 = vld [vmem:[#allocation2 + $0x100] sm:$0xff]
    %v1949 = vld [vmem:[#allocation2 + $0x108] sm:$0xff]
    %v1950 = vld [vmem:[#allocation2 + $0x110] sm:$0xff]
    %v1951 = vld [vmem:[#allocation2 + $0x118] sm:$0xff]
    %1952 = vmatprep.subr.mxu0 0.0
    %1953 = vmatpush1.msra.mxu0 %v1948
    %1954 = vmatprep.subr.mxu0 0.0
    %1955 = vmatpush1.msra.mxu0 %v1949
    %1956 = vmatprep.subr.mxu0 0.0
    %1957 = vmatpush1.msra.mxu0 %v1950
    %1958 = vmatprep.subr.mxu0 0.0
    %1959 = vmatpush1.msra.mxu0 %v1951
    %1960 = vmatprep.subr.mxu0 0.0
    %1961 = vmatpush1.msra.mxu0 0.0
    %1962 = vmatprep.subr.mxu0 0.0
    %1963 = vmatpush1.msra.mxu0 0.0
    %1964 = vmatprep.subr.mxu0 0.0
    %1965 = vmatpush1.msra.mxu0 0.0
    %1966 = vmatprep.subr.mxu0 0.0
    %1967 = vmatpush1.msra.mxu0 0.0
    %1968 = vmatprep.subr.mxu0 0.0
    %1969 = vmatpush1.msra.mxu0 0.0
    %1970 = vmatprep.subr.mxu0 0.0
    %1971 = vmatpush1.msra.mxu0 0.0
    %1972 = vmatprep.subr.mxu0 0.0
    %1973 = vmatpush1.msra.mxu0 0.0
    %1974 = vmatprep.subr.mxu0 0.0
    %1975 = vmatpush1.msra.mxu0 0.0
    %1976 = vmatprep.subr.mxu0 0.0
    %1977 = vmatpush1.msra.mxu0 0.0
    %1978 = vmatprep.subr.mxu0 0.0
    %1979 = vmatpush1.msra.mxu0 0.0
    %1980 = vmatprep.subr.mxu0 0.0
    %1981 = vmatpush1.msra.mxu0 0.0
    %1982 = vmatprep.subr.mxu0 0.0
    %1983 = vmatpush1.msra.mxu0 0.0
    %1984 = vmatprep.subr.mxu0 0.0
    %1985 = vmatpush1.msra.mxu0 0.0
    %1986 = vmatprep.subr.mxu0 0.0
    %1987 = vmatpush1.msra.mxu0 0.0
    %1988 = vmatprep.subr.mxu0 0.0
    %1989 = vmatpush1.msra.mxu0 0.0
    %1990 = vmatprep.subr.mxu0 0.0
    %1991 = vmatpush1.msra.mxu0 0.0
    %1992 = vmatprep.subr.mxu0 0.0
    %1993 = vmatpush1.msra.mxu0 0.0
    %1994 = vmatprep.subr.mxu0 0.0
    %1995 = vmatpush1.msra.mxu0 0.0
    %1996 = vmatprep.subr.mxu0 0.0
    %1997 = vmatpush1.msra.mxu0 0.0
    %1998 = vmatprep.subr.mxu0 0.0
    %1999 = vmatpush1.msra.mxu0 0.0
    %2000 = vmatprep.subr.mxu0 0.0
    %2001 = vmatpush1.msra.mxu0 0.0
    %2002 = vmatprep.subr.mxu0 0.0
    %2003 = vmatpush1.msra.mxu0 0.0
    %2004 = vmatprep.subr.mxu0 0.0
    %2005 = vmatpush1.msra.mxu0 0.0
    %2006 = vmatprep.subr.mxu0 0.0
    %2007 = vmatpush1.msra.mxu0 0.0
    %2008 = vmatprep.subr.mxu0 0.0
    %2009 = vmatpush1.msra.mxu0 0.0
    %2010 = vmatprep.subr.mxu0 0.0
    %2011 = vmatpush1.msra.mxu0 0.0
    %2012 = vmatprep.subr.mxu0 0.0
    %2013 = vmatpush1.msra.mxu0 0.0
    %2014 = vmatprep.subr.mxu0 0.0
    %2015 = vmatpush1.msra.mxu0 0.0
    %2016 = vmatprep.mubr.f32.mxu0 0.0
    %2017 = vmatmul.mubr.f32.gmra.mrb[0].mxu0 %v1820
    %v2018 = vpop.f32.mrb[0].mxu0
    %v2019 = vadd.f32 0.0, %v2018
    %v2020 = vpop.f32.mrb[0].mxu0
    %2021 = vmatprep.mubr.f32.mxu0 0.0
    %2022 = vmatmul.mubr.f32.gmra.mrb[0].mxu0 %v1823
    %v2023 = vpop.f32.mrb[0].mxu0
    %v2024 = vadd.f32 0.0, %v2023
    %v2025 = vpop.f32.mrb[0].mxu0
    %2026 = vmatprep.mubr.f32.mxu0 0.0
    %2027 = vmatmul.mubr.f32.gmra.mrb[0].mxu0 %v1826
    %v2028 = vpop.f32.mrb[0].mxu0
    %v2029 = vadd.f32 0.0, %v2028
    %v2030 = vpop.f32.mrb[0].mxu0
    %2031 = vmatprep.mubr.f32.mxu0 0.0
    %2032 = vmatmul.mubr.f32.gmra.mrb[0].mxu0 %v1829
    %v2033 = vpop.f32.mrb[0].mxu0
    %v2034 = vadd.f32 0.0, %v2033
    %v2035 = vpop.f32.mrb[0].mxu0
    %2036 = vmatprep.mubr.f32.mxu0 0.0
    %2037 = vmatmul.mubr.f32.gmra.mrb[0].mxu0 %v1832
    %v2038 = vpop.f32.mrb[0].mxu0
    %v2039 = vadd.f32 0.0, %v2038
    %v2040 = vpop.f32.mrb[0].mxu0
    %2041 = vmatprep.mubr.f32.mxu0 0.0
    %2042 = vmatmul.mubr.f32.gmra.mrb[0].mxu0 %v1835
    %v2043 = vpop.f32.mrb[0].mxu0
    %v2044 = vadd.f32 0.0, %v2043
    %v2045 = vpop.f32.mrb[0].mxu0
    %2046 = vmatprep.mubr.f32.mxu0 0.0
    %2047 = vmatmul.mubr.f32.gmra.mrb[0].mxu0 %v1838
    %v2048 = vpop.f32.mrb[0].mxu0
    %v2049 = vadd.f32 0.0, %v2048
    %v2050 = vpop.f32.mrb[0].mxu0
    %2051 = vmatprep.mubr.f32.mxu0 0.0
    %2052 = vmatmul.mubr.f32.gmra.mrb[0].mxu0 %v1841
    %v2053 = vpop.f32.mrb[0].mxu0
    %v2054 = vadd.f32 0.0, %v2053
    %v2055 = vpop.f32.mrb[0].mxu0
    %2056 = vdwg.mxu0
    %v2058 = vsel %vm919, %v1910, 0
    %v2061 = vsel %vm919, %v1915, 0
    %v2064 = vsel %vm919, %v1920, 0
    %v2067 = vsel %vm919, %v1925, 0
    %v2070 = vsel %vm919, %v1930, 0
    %v2073 = vsel %vm919, %v1935, 0
    %v2076 = vsel %vm919, %v1940, 0
    %v2079 = vsel %vm919, %v1945, 0
    %2081 = vmatprep.subr.mxu0 0.0
    %2082 = vmatpush1.xpose.msra.mxu0 %v2058
    %2083 = vmatprep.subr.mxu0 0.0
    %2084 = vmatpush1.xpose.msra.mxu0 %v2061
    %2085 = vmatprep.subr.mxu0 0.0
    %2086 = vmatpush1.xpose.msra.mxu0 %v2064
    %2087 = vmatprep.subr.mxu0 0.0
    %2088 = vmatpush1.xpose.msra.mxu0 %v2067
    %2089 = vmatprep.subr.mxu0 0.0
    %2090 = vmatpush1.xpose.msra.mxu0 %v2070
    %2091 = vmatprep.subr.mxu0 0.0
    %2092 = vmatpush1.xpose.msra.mxu0 %v2073
    %2093 = vmatprep.subr.mxu0 0.0
    %2094 = vmatpush1.xpose.msra.mxu0 %v2076
    %2095 = vmatprep.subr.mxu0 0.0
    %2096 = vmatpush1.xpose.msra.mxu0 %v2079
    %2097 = vmatprep.subr.mxu0 0.0
    %2098 = vmatpush1.xpose.msra.mxu0 0.0
    %2099 = vmatprep.subr.mxu0 0.0
    %2100 = vmatpush1.xpose.msra.mxu0 0.0
    %2101 = vmatprep.subr.mxu0 0.0
    %2102 = vmatpush1.xpose.msra.mxu0 0.0
    %2103 = vmatprep.subr.mxu0 0.0
    %2104 = vmatpush1.xpose.msra.mxu0 0.0
    %2105 = vmatprep.subr.mxu0 0.0
    %2106 = vmatpush1.xpose.msra.mxu0 0.0
    %2107 = vmatprep.subr.mxu0 0.0
    %2108 = vmatpush1.xpose.msra.mxu0 0.0
    %2109 = vmatprep.subr.mxu0 0.0
    %2110 = vmatpush1.xpose.msra.mxu0 0.0
    %2111 = vmatprep.subr.mxu0 0.0
    %2112 = vmatpush1.xpose.msra.mxu0 0.0
    %2113 = vmatprep.subr.mxu0 0.0
    %2114 = vmatpush1.xpose.msra.mxu0 0.0
    %2115 = vmatprep.subr.mxu0 0.0
    %2116 = vmatpush1.xpose.msra.mxu0 0.0
    %2117 = vmatprep.subr.mxu0 0.0
    %2118 = vmatpush1.xpose.msra.mxu0 0.0
    %2119 = vmatprep.subr.mxu0 0.0
    %2120 = vmatpush1.xpose.msra.mxu0 0.0
    %2121 = vmatprep.subr.mxu0 0.0
    %2122 = vmatpush1.xpose.msra.mxu0 0.0
    %2123 = vmatprep.subr.mxu0 0.0
    %2124 = vmatpush1.xpose.msra.mxu0 0.0
    %2125 = vmatprep.subr.mxu0 0.0
    %2126 = vmatpush1.xpose.msra.mxu0 0.0
    %2127 = vmatprep.subr.mxu0 0.0
    %2128 = vmatpush1.xpose.msra.mxu0 0.0
    %2129 = vmatprep.subr.mxu0 0.0
    %2130 = vmatpush1.xpose.msra.mxu0 0.0
    %2131 = vmatprep.subr.mxu0 0.0
    %2132 = vmatpush1.xpose.msra.mxu0 0.0
    %2133 = vmatprep.subr.mxu0 0.0
    %2134 = vmatpush1.xpose.msra.mxu0 0.0
    %2135 = vmatprep.subr.mxu0 0.0
    %2136 = vmatpush1.xpose.msra.mxu0 0.0
    %2137 = vmatprep.subr.mxu0 0.0
    %2138 = vmatpush1.xpose.msra.mxu0 0.0
    %2139 = vmatprep.subr.mxu0 0.0
    %2140 = vmatpush1.xpose.msra.mxu0 0.0
    %2141 = vmatprep.subr.mxu0 0.0
    %2142 = vmatpush1.xpose.msra.mxu0 0.0
    %2143 = vmatprep.subr.mxu0 0.0
    %2144 = vmatpush1.xpose.msra.mxu0 0.0
    %2145 = vmatprep.mubr.f32.mxu0 0.0
    %2146 = vmatmul.mubr.f32.gmra.mrb[0].mxu0 %v1820
    %v2147 = vpop.f32.mrb[0].mxu0
    %v2148 = vadd.f32 %v693, %v2147
    %v2149 = vpop.f32.mrb[0].mxu0
    %2150 = vmatprep.mubr.f32.mxu0 0.0
    %2151 = vmatmul.mubr.f32.gmra.mrb[0].mxu0 %v1823
    %v2152 = vpop.f32.mrb[0].mxu0
    %v2153 = vadd.f32 %v694, %v2152
    %v2154 = vpop.f32.mrb[0].mxu0
    %2155 = vmatprep.mubr.f32.mxu0 0.0
    %2156 = vmatmul.mubr.f32.gmra.mrb[0].mxu0 %v1826
    %v2157 = vpop.f32.mrb[0].mxu0
    %v2158 = vadd.f32 %v695, %v2157
    %v2159 = vpop.f32.mrb[0].mxu0
    %2160 = vmatprep.mubr.f32.mxu0 0.0
    %2161 = vmatmul.mubr.f32.gmra.mrb[0].mxu0 %v1829
    %v2162 = vpop.f32.mrb[0].mxu0
    %v2163 = vadd.f32 %v696, %v2162
    %v2164 = vpop.f32.mrb[0].mxu0
    %2165 = vmatprep.mubr.f32.mxu0 0.0
    %2166 = vmatmul.mubr.f32.gmra.mrb[0].mxu0 %v1832
    %v2167 = vpop.f32.mrb[0].mxu0
    %v2168 = vadd.f32 %v697, %v2167
    %v2169 = vpop.f32.mrb[0].mxu0
    %2170 = vmatprep.mubr.f32.mxu0 0.0
    %2171 = vmatmul.mubr.f32.gmra.mrb[0].mxu0 %v1835
    %v2172 = vpop.f32.mrb[0].mxu0
    %v2173 = vadd.f32 %v698, %v2172
    %v2174 = vpop.f32.mrb[0].mxu0
    %2175 = vmatprep.mubr.f32.mxu0 0.0
    %2176 = vmatmul.mubr.f32.gmra.mrb[0].mxu0 %v1838
    %v2177 = vpop.f32.mrb[0].mxu0
    %v2178 = vadd.f32 %v699, %v2177
    %v2179 = vpop.f32.mrb[0].mxu0
    %2180 = vmatprep.mubr.f32.mxu0 0.0
    %2181 = vmatmul.mubr.f32.gmra.mrb[0].mxu0 %v1841
    %v2182 = vpop.f32.mrb[0].mxu0
    %v2183 = vadd.f32 %v700, %v2182
    %v2184 = vpop.f32.mrb[0].mxu0
    %2185 = vdwg.mxu0
    %v2186 = vsel %vm1287, %v2148, -inf
    %2187 = vmax.xlane.f32.xlu0 %v2186
    %v2188 = vpop.xlane.xlu0 %2187
    %v2189 = vsel %vm1287, %v2153, -inf
    %2190 = vmax.xlane.f32.xlu0 %v2189
    %v2191 = vpop.xlane.xlu0 %2190
    %v2192 = vsel %vm1287, %v2158, -inf
    %2193 = vmax.xlane.f32.xlu0 %v2192
    %v2194 = vpop.xlane.xlu0 %2193
    %v2195 = vsel %vm1287, %v2163, -inf
    %2196 = vmax.xlane.f32.xlu0 %v2195
    %v2197 = vpop.xlane.xlu0 %2196
    %v2198 = vsel %vm1287, %v2168, -inf
    %2199 = vmax.xlane.f32.xlu0 %v2198
    %v2200 = vpop.xlane.xlu0 %2199
    %v2201 = vsel %vm1287, %v2173, -inf
    %2202 = vmax.xlane.f32.xlu0 %v2201
    %v2203 = vpop.xlane.xlu0 %2202
    %v2204 = vsel %vm1287, %v2178, -inf
    %2205 = vmax.xlane.f32.xlu0 %v2204
    %v2206 = vpop.xlane.xlu0 %2205
    %v2207 = vsel %vm1287, %v2183, -inf
    %2208 = vmax.xlane.f32.xlu0 %v2207
    %v2209 = vpop.xlane.xlu0 %2208
    %v2210 = vsub.f32 %v2148, %v2188
    %v2211 = vsub.f32 %v2153, %v2191
    %v2212 = vsub.f32 %v2158, %v2194
    %v2213 = vsub.f32 %v2163, %v2197
    %v2214 = vsub.f32 %v2168, %v2200
    %v2215 = vsub.f32 %v2173, %v2203
    %v2216 = vsub.f32 %v2178, %v2206
    %v2217 = vsub.f32 %v2183, %v2209
    %v2218 = vmul.f32 %v2210, 1.442695
    %v2219 = vpow.pop %v2218
    %v2220 = vmul.f32 %v2211, 1.442695
    %v2221 = vpow.pop %v2220
    %v2222 = vmul.f32 %v2212, 1.442695
    %v2223 = vpow.pop %v2222
    %v2224 = vmul.f32 %v2213, 1.442695
    %v2225 = vpow.pop %v2224
    %v2226 = vmul.f32 %v2214, 1.442695
    %v2227 = vpow.pop %v2226
    %v2228 = vmul.f32 %v2215, 1.442695
    %v2229 = vpow.pop %v2228
    %v2230 = vmul.f32 %v2216, 1.442695
    %v2231 = vpow.pop %v2230
    %v2232 = vmul.f32 %v2217, 1.442695
    %v2233 = vpow.pop %v2232
    %v2234 = vsel %vm1287, %v2219, 0.0
    %2235 = vadd.xlane.f32.xlu0 %v2234
    %v2236 = vpop.xlane.xlu0 %2235
    %v2237 = vsel %vm1287, %v2221, 0.0
    %2238 = vadd.xlane.f32.xlu0 %v2237
    %v2239 = vpop.xlane.xlu0 %2238
    %v2240 = vsel %vm1287, %v2223, 0.0
    %2241 = vadd.xlane.f32.xlu0 %v2240
    %v2242 = vpop.xlane.xlu0 %2241
    %v2243 = vsel %vm1287, %v2225, 0.0
    %2244 = vadd.xlane.f32.xlu0 %v2243
    %v2245 = vpop.xlane.xlu0 %2244
    %v2246 = vsel %vm1287, %v2227, 0.0
    %2247 = vadd.xlane.f32.xlu0 %v2246
    %v2248 = vpop.xlane.xlu0 %2247
    %v2249 = vsel %vm1287, %v2229, 0.0
    %2250 = vadd.xlane.f32.xlu0 %v2249
    %v2251 = vpop.xlane.xlu0 %2250
    %v2252 = vsel %vm1287, %v2231, 0.0
    %2253 = vadd.xlane.f32.xlu0 %v2252
    %v2254 = vpop.xlane.xlu0 %2253
    %v2255 = vsel %vm1287, %v2233, 0.0
    %2256 = vadd.xlane.f32.xlu0 %v2255
    %v2257 = vpop.xlane.xlu0 %2256
    %v2258 = vrcp.pop %v2236
    %v2259 = vrcp.pop %v2239
    %v2260 = vrcp.pop %v2242
    %v2261 = vrcp.pop %v2245
    %v2262 = vrcp.pop %v2248
    %v2263 = vrcp.pop %v2251
    %v2264 = vrcp.pop %v2254
    %v2265 = vrcp.pop %v2257
    %v2266 = vmul.f32 %v2219, %v2258
    %v2267 = vmul.f32 %v2221, %v2259
    %v2268 = vmul.f32 %v2223, %v2260
    %v2269 = vmul.f32 %v2225, %v2261
    %v2270 = vmul.f32 %v2227, %v2262
    %v2271 = vmul.f32 %v2229, %v2263
    %v2272 = vmul.f32 %v2231, %v2264
    %v2273 = vmul.f32 %v2233, %v2265
    %v2275 = vsel %vm1287, %v2266, 0
    %v2278 = vsel %vm1287, %v2267, 0
    %v2281 = vsel %vm1287, %v2268, 0
    %v2284 = vsel %vm1287, %v2269, 0
    %v2287 = vsel %vm1287, %v2270, 0
    %v2290 = vsel %vm1287, %v2271, 0
    %v2293 = vsel %vm1287, %v2272, 0
    %v2296 = vsel %vm1287, %v2273, 0
    %2298 = vmatprep.subr.mxu0 0.0
    %2299 = vmatpush1.msra.mxu0 %v2019
    %2300 = vmatprep.subr.mxu0 0.0
    %2301 = vmatpush1.msra.mxu0 %v2024
    %2302 = vmatprep.subr.mxu0 0.0
    %2303 = vmatpush1.msra.mxu0 %v2029
    %2304 = vmatprep.subr.mxu0 0.0
    %2305 = vmatpush1.msra.mxu0 %v2034
    %2306 = vmatprep.subr.mxu0 0.0
    %2307 = vmatpush1.msra.mxu0 %v2039
    %2308 = vmatprep.subr.mxu0 0.0
    %2309 = vmatpush1.msra.mxu0 %v2044
    %2310 = vmatprep.subr.mxu0 0.0
    %2311 = vmatpush1.msra.mxu0 %v2049
    %2312 = vmatprep.subr.mxu0 0.0
    %2313 = vmatpush1.msra.mxu0 %v2054
    %2314 = vmatprep.subr.mxu0 0.0
    %2315 = vmatpush1.msra.mxu0 0.0
    %2316 = vmatprep.subr.mxu0 0.0
    %2317 = vmatpush1.msra.mxu0 0.0
    %2318 = vmatprep.subr.mxu0 0.0
    %2319 = vmatpush1.msra.mxu0 0.0
    %2320 = vmatprep.subr.mxu0 0.0
    %2321 = vmatpush1.msra.mxu0 0.0
    %2322 = vmatprep.subr.mxu0 0.0
    %2323 = vmatpush1.msra.mxu0 0.0
    %2324 = vmatprep.subr.mxu0 0.0
    %2325 = vmatpush1.msra.mxu0 0.0
    %2326 = vmatprep.subr.mxu0 0.0
    %2327 = vmatpush1.msra.mxu0 0.0
    %2328 = vmatprep.subr.mxu0 0.0
    %2329 = vmatpush1.msra.mxu0 0.0
    %2330 = vmatprep.subr.mxu0 0.0
    %2331 = vmatpush1.msra.mxu0 0.0
    %2332 = vmatprep.subr.mxu0 0.0
    %2333 = vmatpush1.msra.mxu0 0.0
    %2334 = vmatprep.subr.mxu0 0.0
    %2335 = vmatpush1.msra.mxu0 0.0
    %2336 = vmatprep.subr.mxu0 0.0
    %2337 = vmatpush1.msra.mxu0 0.0
    %2338 = vmatprep.subr.mxu0 0.0
    %2339 = vmatpush1.msra.mxu0 0.0
    %2340 = vmatprep.subr.mxu0 0.0
    %2341 = vmatpush1.msra.mxu0 0.0
    %2342 = vmatprep.subr.mxu0 0.0
    %2343 = vmatpush1.msra.mxu0 0.0
    %2344 = vmatprep.subr.mxu0 0.0
    %2345 = vmatpush1.msra.mxu0 0.0
    %2346 = vmatprep.subr.mxu0 0.0
    %2347 = vmatpush1.msra.mxu0 0.0
    %2348 = vmatprep.subr.mxu0 0.0
    %2349 = vmatpush1.msra.mxu0 0.0
    %2350 = vmatprep.subr.mxu0 0.0
    %2351 = vmatpush1.msra.mxu0 0.0
    %2352 = vmatprep.subr.mxu0 0.0
    %2353 = vmatpush1.msra.mxu0 0.0
    %2354 = vmatprep.subr.mxu0 0.0
    %2355 = vmatpush1.msra.mxu0 0.0
    %2356 = vmatprep.subr.mxu0 0.0
    %2357 = vmatpush1.msra.mxu0 0.0
    %2358 = vmatprep.subr.mxu0 0.0
    %2359 = vmatpush1.msra.mxu0 0.0
    %2360 = vmatprep.subr.mxu0 0.0
    %2361 = vmatpush1.msra.mxu0 0.0
    %2362 = vmatprep.mubr.f32.mxu0 0.0
    %2363 = vmatmul.mubr.f32.gmra.mrb[0].mxu0 %v2275
    %v2364 = vpop.f32.mrb[0].mxu0
    %v2365 = vadd.f32 %v877, %v2364
    %v2366 = vpop.f32.mrb[0].mxu0
    %2367 = vmatprep.mubr.f32.mxu0 0.0
    %2368 = vmatmul.mubr.f32.gmra.mrb[0].mxu0 %v2278
    %v2369 = vpop.f32.mrb[0].mxu0
    %v2370 = vadd.f32 %v882, %v2369
    %v2371 = vpop.f32.mrb[0].mxu0
    %2372 = vmatprep.mubr.f32.mxu0 0.0
    %2373 = vmatmul.mubr.f32.gmra.mrb[0].mxu0 %v2281
    %v2374 = vpop.f32.mrb[0].mxu0
    %v2375 = vadd.f32 %v887, %v2374
    %v2376 = vpop.f32.mrb[0].mxu0
    %2377 = vmatprep.mubr.f32.mxu0 0.0
    %2378 = vmatmul.mubr.f32.gmra.mrb[0].mxu0 %v2284
    %v2379 = vpop.f32.mrb[0].mxu0
    %v2380 = vadd.f32 %v892, %v2379
    %v2381 = vpop.f32.mrb[0].mxu0
    %2382 = vmatprep.mubr.f32.mxu0 0.0
    %2383 = vmatmul.mubr.f32.gmra.mrb[0].mxu0 %v2287
    %v2384 = vpop.f32.mrb[0].mxu0
    %v2385 = vadd.f32 %v897, %v2384
    %v2386 = vpop.f32.mrb[0].mxu0
    %2387 = vmatprep.mubr.f32.mxu0 0.0
    %2388 = vmatmul.mubr.f32.gmra.mrb[0].mxu0 %v2290
    %v2389 = vpop.f32.mrb[0].mxu0
    %v2390 = vadd.f32 %v902, %v2389
    %v2391 = vpop.f32.mrb[0].mxu0
    %2392 = vmatprep.mubr.f32.mxu0 0.0
    %2393 = vmatmul.mubr.f32.gmra.mrb[0].mxu0 %v2293
    %v2394 = vpop.f32.mrb[0].mxu0
    %v2395 = vadd.f32 %v907, %v2394
    %v2396 = vpop.f32.mrb[0].mxu0
    %2397 = vmatprep.mubr.f32.mxu0 0.0
    %2398 = vmatmul.mubr.f32.gmra.mrb[0].mxu0 %v2296
    %v2399 = vpop.f32.mrb[0].mxu0
    %v2400 = vadd.f32 %v912, %v2399
    %v2401 = vpop.f32.mrb[0].mxu0
    %2402 = vdwg.mxu0
    %v2403 = vmax.f32 %v2365, 0.0
    %v2404 = vmax.f32 %v2370, 0.0
    %v2405 = vmax.f32 %v2375, 0.0
    %v2406 = vmax.f32 %v2380, 0.0
    %v2407 = vmax.f32 %v2385, 0.0
    %v2408 = vmax.f32 %v2390, 0.0
    %v2409 = vmax.f32 %v2395, 0.0
    %v2410 = vmax.f32 %v2400, 0.0
    %v2411 = vadd.f32 %v2403, %v1807
    %v2412 = vadd.f32 %v2404, %v1808
    %v2413 = vadd.f32 %v2405, %v1809
    %v2414 = vadd.f32 %v2406, %v1810
    %v2415 = vadd.f32 %v2407, %v1811
    %v2416 = vadd.f32 %v2408, %v1812
    %v2417 = vadd.f32 %v2409, %v1813
    %v2418 = vadd.f32 %v2410, %v1814
    %v2419 = vld [vmem:[#allocation2 + $0x130] sm:$0xff]
    %v2420 = vld [vmem:[#allocation2 + $0x138] sm:$0xff]
    %v2421 = vld [vmem:[#allocation2 + $0x140] sm:$0xff]
    %v2422 = vld [vmem:[#allocation2 + $0x148] sm:$0xff]
    %v2424 = vsel %vm919, %v2411, 0
    %v2427 = vsel %vm919, %v2412, 0
    %v2430 = vsel %vm919, %v2413, 0
    %v2433 = vsel %vm919, %v2414, 0
    %v2436 = vsel %vm919, %v2415, 0
    %v2439 = vsel %vm919, %v2416, 0
    %v2442 = vsel %vm919, %v2417, 0
    %v2445 = vsel %vm919, %v2418, 0
    %2447 = vmatprep.subr.mxu0 0.0
    %2448 = vmatpush1.msra.mxu0 %v2419
    %2449 = vmatprep.subr.mxu0 0.0
    %2450 = vmatpush1.msra.mxu0 %v2420
    %2451 = vmatprep.subr.mxu0 0.0
    %2452 = vmatpush1.msra.mxu0 %v2421
    %2453 = vmatprep.subr.mxu0 0.0
    %2454 = vmatpush1.msra.mxu0 %v2422
    %2455 = vmatprep.subr.mxu0 0.0
    %2456 = vmatpush1.msra.mxu0 0.0
    %2457 = vmatprep.subr.mxu0 0.0
    %2458 = vmatpush1.msra.mxu0 0.0
    %2459 = vmatprep.subr.mxu0 0.0
    %2460 = vmatpush1.msra.mxu0 0.0
    %2461 = vmatprep.subr.mxu0 0.0
    %2462 = vmatpush1.msra.mxu0 0.0
    %2463 = vmatprep.subr.mxu0 0.0
    %2464 = vmatpush1.msra.mxu0 0.0
    %2465 = vmatprep.subr.mxu0 0.0
    %2466 = vmatpush1.msra.mxu0 0.0
    %2467 = vmatprep.subr.mxu0 0.0
    %2468 = vmatpush1.msra.mxu0 0.0
    %2469 = vmatprep.subr.mxu0 0.0
    %2470 = vmatpush1.msra.mxu0 0.0
    %2471 = vmatprep.subr.mxu0 0.0
    %2472 = vmatpush1.msra.mxu0 0.0
    %2473 = vmatprep.subr.mxu0 0.0
    %2474 = vmatpush1.msra.mxu0 0.0
    %2475 = vmatprep.subr.mxu0 0.0
    %2476 = vmatpush1.msra.mxu0 0.0
    %2477 = vmatprep.subr.mxu0 0.0
    %2478 = vmatpush1.msra.mxu0 0.0
    %2479 = vmatprep.subr.mxu0 0.0
    %2480 = vmatpush1.msra.mxu0 0.0
    %2481 = vmatprep.subr.mxu0 0.0
    %2482 = vmatpush1.msra.mxu0 0.0
    %2483 = vmatprep.subr.mxu0 0.0
    %2484 = vmatpush1.msra.mxu0 0.0
    %2485 = vmatprep.subr.mxu0 0.0
    %2486 = vmatpush1.msra.mxu0 0.0
    %2487 = vmatprep.subr.mxu0 0.0
    %2488 = vmatpush1.msra.mxu0 0.0
    %2489 = vmatprep.subr.mxu0 0.0
    %2490 = vmatpush1.msra.mxu0 0.0
    %2491 = vmatprep.subr.mxu0 0.0
    %2492 = vmatpush1.msra.mxu0 0.0
    %2493 = vmatprep.subr.mxu0 0.0
    %2494 = vmatpush1.msra.mxu0 0.0
    %2495 = vmatprep.subr.mxu0 0.0
    %2496 = vmatpush1.msra.mxu0 0.0
    %2497 = vmatprep.subr.mxu0 0.0
    %2498 = vmatpush1.msra.mxu0 0.0
    %2499 = vmatprep.subr.mxu0 0.0
    %2500 = vmatpush1.msra.mxu0 0.0
    %2501 = vmatprep.subr.mxu0 0.0
    %2502 = vmatpush1.msra.mxu0 0.0
    %2503 = vmatprep.subr.mxu0 0.0
    %2504 = vmatpush1.msra.mxu0 0.0
    %2505 = vmatprep.subr.mxu0 0.0
    %2506 = vmatpush1.msra.mxu0 0.0
    %2507 = vmatprep.subr.mxu0 0.0
    %2508 = vmatpush1.msra.mxu0 0.0
    %2509 = vmatprep.subr.mxu0 0.0
    %2510 = vmatpush1.msra.mxu0 0.0
    %2511 = vmatprep.mubr.f32.mxu0 0.0
    %2512 = vmatmul.mubr.f32.gmra.mrb[0].mxu0 %v2424
    %v2513 = vpop.f32.mrb[0].mxu0
    %v2514 = vadd.f32 0.0, %v2513
    %v2515 = vpop.f32.mrb[0].mxu0
    %2516 = vmatprep.mubr.f32.mxu0 0.0
    %2517 = vmatmul.mubr.f32.gmra.mrb[0].mxu0 %v2427
    %v2518 = vpop.f32.mrb[0].mxu0
    %v2519 = vadd.f32 0.0, %v2518
    %v2520 = vpop.f32.mrb[0].mxu0
    %2521 = vmatprep.mubr.f32.mxu0 0.0
    %2522 = vmatmul.mubr.f32.gmra.mrb[0].mxu0 %v2430
    %v2523 = vpop.f32.mrb[0].mxu0
    %v2524 = vadd.f32 0.0, %v2523
    %v2525 = vpop.f32.mrb[0].mxu0
    %2526 = vmatprep.mubr.f32.mxu0 0.0
    %2527 = vmatmul.mubr.f32.gmra.mrb[0].mxu0 %v2433
    %v2528 = vpop.f32.mrb[0].mxu0
    %v2529 = vadd.f32 0.0, %v2528
    %v2530 = vpop.f32.mrb[0].mxu0
    %2531 = vmatprep.mubr.f32.mxu0 0.0
    %2532 = vmatmul.mubr.f32.gmra.mrb[0].mxu0 %v2436
    %v2533 = vpop.f32.mrb[0].mxu0
    %v2534 = vadd.f32 0.0, %v2533
    %v2535 = vpop.f32.mrb[0].mxu0
    %2536 = vmatprep.mubr.f32.mxu0 0.0
    %2537 = vmatmul.mubr.f32.gmra.mrb[0].mxu0 %v2439
    %v2538 = vpop.f32.mrb[0].mxu0
    %v2539 = vadd.f32 0.0, %v2538
    %v2540 = vpop.f32.mrb[0].mxu0
    %2541 = vmatprep.mubr.f32.mxu0 0.0
    %2542 = vmatmul.mubr.f32.gmra.mrb[0].mxu0 %v2442
    %v2543 = vpop.f32.mrb[0].mxu0
    %v2544 = vadd.f32 0.0, %v2543
    %v2545 = vpop.f32.mrb[0].mxu0
    %2546 = vmatprep.mubr.f32.mxu0 0.0
    %2547 = vmatmul.mubr.f32.gmra.mrb[0].mxu0 %v2445
    %v2548 = vpop.f32.mrb[0].mxu0
    %v2549 = vadd.f32 0.0, %v2548
    %v2550 = vpop.f32.mrb[0].mxu0
    %2551 = vdwg.mxu0
    %v2552 = vmax.f32 %v2514, 0.0
    %v2553 = vmax.f32 %v2519, 0.0
    %v2554 = vmax.f32 %v2524, 0.0
    %v2555 = vmax.f32 %v2529, 0.0
    %v2556 = vmax.f32 %v2534, 0.0
    %v2557 = vmax.f32 %v2539, 0.0
    %v2558 = vmax.f32 %v2544, 0.0
    %v2559 = vmax.f32 %v2549, 0.0
    %v2560 = vld [vmem:[#allocation2 + $0x150] sm:$0xff]
    %v2561 = vld [vmem:[#allocation2 + $0x158] sm:$0xff]
    %v2562 = vld [vmem:[#allocation2 + $0x160] sm:$0xff]
    %v2563 = vld [vmem:[#allocation2 + $0x168] sm:$0xff]
    %v2564 = vld [vmem:[#allocation2 + $0x170] sm:$0xff]
    %v2565 = vld [vmem:[#allocation2 + $0x178] sm:$0xff]
    %v2566 = vld [vmem:[#allocation2 + $0x180] sm:$0xff]
    %v2567 = vld [vmem:[#allocation2 + $0x188] sm:$0xff]
    %v2569 = vsel %vm1287, %v2552, 0
    %v2572 = vsel %vm1287, %v2553, 0
    %v2575 = vsel %vm1287, %v2554, 0
    %v2578 = vsel %vm1287, %v2555, 0
    %v2581 = vsel %vm1287, %v2556, 0
    %v2584 = vsel %vm1287, %v2557, 0
    %v2587 = vsel %vm1287, %v2558, 0
    %v2590 = vsel %vm1287, %v2559, 0
    %2592 = vmatprep.subr.mxu0 0.0
    %2593 = vmatpush1.msra.mxu0 %v2560
    %2594 = vmatprep.subr.mxu0 0.0
    %2595 = vmatpush1.msra.mxu0 %v2561
    %2596 = vmatprep.subr.mxu0 0.0
    %2597 = vmatpush1.msra.mxu0 %v2562
    %2598 = vmatprep.subr.mxu0 0.0
    %2599 = vmatpush1.msra.mxu0 %v2563
    %2600 = vmatprep.subr.mxu0 0.0
    %2601 = vmatpush1.msra.mxu0 %v2564
    %2602 = vmatprep.subr.mxu0 0.0
    %2603 = vmatpush1.msra.mxu0 %v2565
    %2604 = vmatprep.subr.mxu0 0.0
    %2605 = vmatpush1.msra.mxu0 %v2566
    %2606 = vmatprep.subr.mxu0 0.0
    %2607 = vmatpush1.msra.mxu0 %v2567
    %2608 = vmatprep.subr.mxu0 0.0
    %2609 = vmatpush1.msra.mxu0 0.0
    %2610 = vmatprep.subr.mxu0 0.0
    %2611 = vmatpush1.msra.mxu0 0.0
    %2612 = vmatprep.subr.mxu0 0.0
    %2613 = vmatpush1.msra.mxu0 0.0
    %2614 = vmatprep.subr.mxu0 0.0
    %2615 = vmatpush1.msra.mxu0 0.0
    %2616 = vmatprep.subr.mxu0 0.0
    %2617 = vmatpush1.msra.mxu0 0.0
    %2618 = vmatprep.subr.mxu0 0.0
    %2619 = vmatpush1.msra.mxu0 0.0
    %2620 = vmatprep.subr.mxu0 0.0
    %2621 = vmatpush1.msra.mxu0 0.0
    %2622 = vmatprep.subr.mxu0 0.0
    %2623 = vmatpush1.msra.mxu0 0.0
    %2624 = vmatprep.subr.mxu0 0.0
    %2625 = vmatpush1.msra.mxu0 0.0
    %2626 = vmatprep.subr.mxu0 0.0
    %2627 = vmatpush1.msra.mxu0 0.0
    %2628 = vmatprep.subr.mxu0 0.0
    %2629 = vmatpush1.msra.mxu0 0.0
    %2630 = vmatprep.subr.mxu0 0.0
    %2631 = vmatpush1.msra.mxu0 0.0
    %2632 = vmatprep.subr.mxu0 0.0
    %2633 = vmatpush1.msra.mxu0 0.0
    %2634 = vmatprep.subr.mxu0 0.0
    %2635 = vmatpush1.msra.mxu0 0.0
    %2636 = vmatprep.subr.mxu0 0.0
    %2637 = vmatpush1.msra.mxu0 0.0
    %2638 = vmatprep.subr.mxu0 0.0
    %2639 = vmatpush1.msra.mxu0 0.0
    %2640 = vmatprep.subr.mxu0 0.0
    %2641 = vmatpush1.msra.mxu0 0.0
    %2642 = vmatprep.subr.mxu0 0.0
    %2643 = vmatpush1.msra.mxu0 0.0
    %2644 = vmatprep.subr.mxu0 0.0
    %2645 = vmatpush1.msra.mxu0 0.0
    %2646 = vmatprep.subr.mxu0 0.0
    %2647 = vmatpush1.msra.mxu0 0.0
    %2648 = vmatprep.subr.mxu0 0.0
    %2649 = vmatpush1.msra.mxu0 0.0
    %2650 = vmatprep.subr.mxu0 0.0
    %2651 = vmatpush1.msra.mxu0 0.0
    %2652 = vmatprep.subr.mxu0 0.0
    %2653 = vmatpush1.msra.mxu0 0.0
    %2654 = vmatprep.subr.mxu0 0.0
    %2655 = vmatpush1.msra.mxu0 0.0
    %2656 = vmatprep.mubr.f32.mxu0 0.0
    %2657 = vmatmul.mubr.f32.gmra.mrb[0].mxu0 %v2569
    %v2658 = vpop.f32.mrb[0].mxu0
    %v2659 = vadd.f32 0.0, %v2658
    %v2660 = vpop.f32.mrb[0].mxu0
    %2661 = vmatprep.mubr.f32.mxu0 0.0
    %2662 = vmatmul.mubr.f32.gmra.mrb[0].mxu0 %v2572
    %v2663 = vpop.f32.mrb[0].mxu0
    %v2664 = vadd.f32 0.0, %v2663
    %v2665 = vpop.f32.mrb[0].mxu0
    %2666 = vmatprep.mubr.f32.mxu0 0.0
    %2667 = vmatmul.mubr.f32.gmra.mrb[0].mxu0 %v2575
    %v2668 = vpop.f32.mrb[0].mxu0
    %v2669 = vadd.f32 0.0, %v2668
    %v2670 = vpop.f32.mrb[0].mxu0
    %2671 = vmatprep.mubr.f32.mxu0 0.0
    %2672 = vmatmul.mubr.f32.gmra.mrb[0].mxu0 %v2578
    %v2673 = vpop.f32.mrb[0].mxu0
    %v2674 = vadd.f32 0.0, %v2673
    %v2675 = vpop.f32.mrb[0].mxu0
    %2676 = vmatprep.mubr.f32.mxu0 0.0
    %2677 = vmatmul.mubr.f32.gmra.mrb[0].mxu0 %v2581
    %v2678 = vpop.f32.mrb[0].mxu0
    %v2679 = vadd.f32 0.0, %v2678
    %v2680 = vpop.f32.mrb[0].mxu0
    %2681 = vmatprep.mubr.f32.mxu0 0.0
    %2682 = vmatmul.mubr.f32.gmra.mrb[0].mxu0 %v2584
    %v2683 = vpop.f32.mrb[0].mxu0
    %v2684 = vadd.f32 0.0, %v2683
    %v2685 = vpop.f32.mrb[0].mxu0
    %2686 = vmatprep.mubr.f32.mxu0 0.0
    %2687 = vmatmul.mubr.f32.gmra.mrb[0].mxu0 %v2587
    %v2688 = vpop.f32.mrb[0].mxu0
    %v2689 = vadd.f32 0.0, %v2688
    %v2690 = vpop.f32.mrb[0].mxu0
    %2691 = vmatprep.mubr.f32.mxu0 0.0
    %2692 = vmatmul.mubr.f32.gmra.mrb[0].mxu0 %v2590
    %v2693 = vpop.f32.mrb[0].mxu0
    %v2694 = vadd.f32 0.0, %v2693
    %v2695 = vpop.f32.mrb[0].mxu0
    %2696 = vdwg.mxu0
    %v2697 = vmax.f32 %v2659, 0.0
    %v2698 = vmax.f32 %v2664, 0.0
    %v2699 = vmax.f32 %v2669, 0.0
    %v2700 = vmax.f32 %v2674, 0.0
    %v2701 = vmax.f32 %v2679, 0.0
    %v2702 = vmax.f32 %v2684, 0.0
    %v2703 = vmax.f32 %v2689, 0.0
    %v2704 = vmax.f32 %v2694, 0.0
    %v2705 = vadd.f32 %v2697, %v2411
    %v2706 = vadd.f32 %v2698, %v2412
    %v2707 = vadd.f32 %v2699, %v2413
    %v2708 = vadd.f32 %v2700, %v2414
    %v2709 = vadd.f32 %v2701, %v2415
    %v2710 = vadd.f32 %v2702, %v2416
    %v2711 = vadd.f32 %v2703, %v2417
    %v2712 = vadd.f32 %v2704, %v2418
    %v2714 = vsel %vm1287, %v50, 0
    %2716 = vmatprep.subr.mxu0 0.0
    %2717 = vmatpush1.msra.mxu0 %v2705
    %2718 = vmatprep.subr.mxu0 0.0
    %2719 = vmatpush1.msra.mxu0 %v2706
    %2720 = vmatprep.subr.mxu0 0.0
    %2721 = vmatpush1.msra.mxu0 %v2707
    %2722 = vmatprep.subr.mxu0 0.0
    %2723 = vmatpush1.msra.mxu0 %v2708
    %2724 = vmatprep.subr.mxu0 0.0
    %2725 = vmatpush1.msra.mxu0 %v2709
    %2726 = vmatprep.subr.mxu0 0.0
    %2727 = vmatpush1.msra.mxu0 %v2710
    %2728 = vmatprep.subr.mxu0 0.0
    %2729 = vmatpush1.msra.mxu0 %v2711
    %2730 = vmatprep.subr.mxu0 0.0
    %2731 = vmatpush1.msra.mxu0 %v2712
    %2732 = vmatprep.subr.mxu0 0.0
    %2733 = vmatpush1.msra.mxu0 0.0
    %2734 = vmatprep.subr.mxu0 0.0
    %2735 = vmatpush1.msra.mxu0 0.0
    %2736 = vmatprep.subr.mxu0 0.0
    %2737 = vmatpush1.msra.mxu0 0.0
    %2738 = vmatprep.subr.mxu0 0.0
    %2739 = vmatpush1.msra.mxu0 0.0
    %2740 = vmatprep.subr.mxu0 0.0
    %2741 = vmatpush1.msra.mxu0 0.0
    %2742 = vmatprep.subr.mxu0 0.0
    %2743 = vmatpush1.msra.mxu0 0.0
    %2744 = vmatprep.subr.mxu0 0.0
    %2745 = vmatpush1.msra.mxu0 0.0
    %2746 = vmatprep.subr.mxu0 0.0
    %2747 = vmatpush1.msra.mxu0 0.0
    %2748 = vmatprep.subr.mxu0 0.0
    %2749 = vmatpush1.msra.mxu0 0.0
    %2750 = vmatprep.subr.mxu0 0.0
    %2751 = vmatpush1.msra.mxu0 0.0
    %2752 = vmatprep.subr.mxu0 0.0
    %2753 = vmatpush1.msra.mxu0 0.0
    %2754 = vmatprep.subr.mxu0 0.0
    %2755 = vmatpush1.msra.mxu0 0.0
    %2756 = vmatprep.subr.mxu0 0.0
    %2757 = vmatpush1.msra.mxu0 0.0
    %2758 = vmatprep.subr.mxu0 0.0
    %2759 = vmatpush1.msra.mxu0 0.0
    %2760 = vmatprep.subr.mxu0 0.0
    %2761 = vmatpush1.msra.mxu0 0.0
    %2762 = vmatprep.subr.mxu0 0.0
    %2763 = vmatpush1.msra.mxu0 0.0
    %2764 = vmatprep.subr.mxu0 0.0
    %2765 = vmatpush1.msra.mxu0 0.0
    %2766 = vmatprep.subr.mxu0 0.0
    %2767 = vmatpush1.msra.mxu0 0.0
    %2768 = vmatprep.subr.mxu0 0.0
    %2769 = vmatpush1.msra.mxu0 0.0
    %2770 = vmatprep.subr.mxu0 0.0
    %2771 = vmatpush1.msra.mxu0 0.0
    %2772 = vmatprep.subr.mxu0 0.0
    %2773 = vmatpush1.msra.mxu0 0.0
    %2774 = vmatprep.subr.mxu0 0.0
    %2775 = vmatpush1.msra.mxu0 0.0
    %2776 = vmatprep.subr.mxu0 0.0
    %2777 = vmatpush1.msra.mxu0 0.0
    %2778 = vmatprep.subr.mxu0 0.0
    %2779 = vmatpush1.msra.mxu0 0.0
    %2780 = vmatprep.mubr.f32.mxu0 0.0
    %2781 = vmatmul.mubr.f32.gmra.mrb[0].mxu0 %v2714
    %v2782 = vpop.f32.mrb[0].mxu0
    %v2783 = vadd.f32 0.0, %v2782
    %v2784 = vpop.f32.mrb[0].mxu0
    %2785 = vdwg.mxu0
    %v2786 = vld [vmem:[#allocation2 + $0x1a0] sm:$0xff]
    %v2787 = vld [vmem:[#allocation2 + $0x1a8] sm:$0xff]
    %v2788 = vld [vmem:[#allocation2 + $0x1b0] sm:$0xff]
    %v2789 = vld [vmem:[#allocation2 + $0x1b8] sm:$0xff]
    %v2790 = vld [vmem:[#allocation2 + $0x190] sm:$0xff]
    %v2791 = vld [vmem:[#allocation2 + $0x198] sm:$0xff]
    %v2793 = vsel %vm53, %v127, 0
    %2795 = vmatprep.subr.mxu0 0.0
    %2796 = vmatpush1.msra.mxu0 %v2790
    %2797 = vmatprep.subr.mxu0 0.0
    %2798 = vmatpush1.msra.mxu0 %v2791
    %2799 = vmatprep.subr.mxu0 0.0
    %2800 = vmatpush1.msra.mxu0 0.0
    %2801 = vmatprep.subr.mxu0 0.0
    %2802 = vmatpush1.msra.mxu0 0.0
    %2803 = vmatprep.subr.mxu0 0.0
    %2804 = vmatpush1.msra.mxu0 0.0
    %2805 = vmatprep.subr.mxu0 0.0
    %2806 = vmatpush1.msra.mxu0 0.0
    %2807 = vmatprep.subr.mxu0 0.0
    %2808 = vmatpush1.msra.mxu0 0.0
    %2809 = vmatprep.subr.mxu0 0.0
    %2810 = vmatpush1.msra.mxu0 0.0
    %2811 = vmatprep.subr.mxu0 0.0
    %2812 = vmatpush1.msra.mxu0 0.0
    %2813 = vmatprep.subr.mxu0 0.0
    %2814 = vmatpush1.msra.mxu0 0.0
    %2815 = vmatprep.subr.mxu0 0.0
    %2816 = vmatpush1.msra.mxu0 0.0
    %2817 = vmatprep.subr.mxu0 0.0
    %2818 = vmatpush1.msra.mxu0 0.0
    %2819 = vmatprep.subr.mxu0 0.0
    %2820 = vmatpush1.msra.mxu0 0.0
    %2821 = vmatprep.subr.mxu0 0.0
    %2822 = vmatpush1.msra.mxu0 0.0
    %2823 = vmatprep.subr.mxu0 0.0
    %2824 = vmatpush1.msra.mxu0 0.0
    %2825 = vmatprep.subr.mxu0 0.0
    %2826 = vmatpush1.msra.mxu0 0.0
    %2827 = vmatprep.subr.mxu0 0.0
    %2828 = vmatpush1.msra.mxu0 0.0
    %2829 = vmatprep.subr.mxu0 0.0
    %2830 = vmatpush1.msra.mxu0 0.0
    %2831 = vmatprep.subr.mxu0 0.0
    %2832 = vmatpush1.msra.mxu0 0.0
    %2833 = vmatprep.subr.mxu0 0.0
    %2834 = vmatpush1.msra.mxu0 0.0
    %2835 = vmatprep.subr.mxu0 0.0
    %2836 = vmatpush1.msra.mxu0 0.0
    %2837 = vmatprep.subr.mxu0 0.0
    %2838 = vmatpush1.msra.mxu0 0.0
    %2839 = vmatprep.subr.mxu0 0.0
    %2840 = vmatpush1.msra.mxu0 0.0
    %2841 = vmatprep.subr.mxu0 0.0
    %2842 = vmatpush1.msra.mxu0 0.0
    %2843 = vmatprep.subr.mxu0 0.0
    %2844 = vmatpush1.msra.mxu0 0.0
    %2845 = vmatprep.subr.mxu0 0.0
    %2846 = vmatpush1.msra.mxu0 0.0
    %2847 = vmatprep.subr.mxu0 0.0
    %2848 = vmatpush1.msra.mxu0 0.0
    %2849 = vmatprep.subr.mxu0 0.0
    %2850 = vmatpush1.msra.mxu0 0.0
    %2851 = vmatprep.subr.mxu0 0.0
    %2852 = vmatpush1.msra.mxu0 0.0
    %2853 = vmatprep.subr.mxu0 0.0
    %2854 = vmatpush1.msra.mxu0 0.0
    %2855 = vmatprep.subr.mxu0 0.0
    %2856 = vmatpush1.msra.mxu0 0.0
    %2857 = vmatprep.subr.mxu0 0.0
    %2858 = vmatpush1.msra.mxu0 0.0
    %2859 = vmatprep.mubr.f32.mxu0 0.0
    %2860 = vmatmul.mubr.f32.gmra.mrb[0].mxu0 %v2793
    %v2861 = vpop.f32.mrb[0].mxu0
    %v2862 = vadd.f32 0.0, %v2861
    %v2863 = vpop.f32.mrb[0].mxu0
    %2864 = vdwg.mxu0
    %v2866 = vsel %vm919, %v2783, 0
    %2868 = vmatprep.subr.mxu0 0.0
    %2869 = vmatpush1.msra.mxu0 %v2786
    %2870 = vmatprep.subr.mxu0 0.0
    %2871 = vmatpush1.msra.mxu0 %v2787
    %2872 = vmatprep.subr.mxu0 0.0
    %2873 = vmatpush1.msra.mxu0 %v2788
    %2874 = vmatprep.subr.mxu0 0.0
    %2875 = vmatpush1.msra.mxu0 %v2789
    %2876 = vmatprep.subr.mxu0 0.0
    %2877 = vmatpush1.msra.mxu0 0.0
    %2878 = vmatprep.subr.mxu0 0.0
    %2879 = vmatpush1.msra.mxu0 0.0
    %2880 = vmatprep.subr.mxu0 0.0
    %2881 = vmatpush1.msra.mxu0 0.0
    %2882 = vmatprep.subr.mxu0 0.0
    %2883 = vmatpush1.msra.mxu0 0.0
    %2884 = vmatprep.subr.mxu0 0.0
    %2885 = vmatpush1.msra.mxu0 0.0
    %2886 = vmatprep.subr.mxu0 0.0
    %2887 = vmatpush1.msra.mxu0 0.0
    %2888 = vmatprep.subr.mxu0 0.0
    %2889 = vmatpush1.msra.mxu0 0.0
    %2890 = vmatprep.subr.mxu0 0.0
    %2891 = vmatpush1.msra.mxu0 0.0
    %2892 = vmatprep.subr.mxu0 0.0
    %2893 = vmatpush1.msra.mxu0 0.0
    %2894 = vmatprep.subr.mxu0 0.0
    %2895 = vmatpush1.msra.mxu0 0.0
    %2896 = vmatprep.subr.mxu0 0.0
    %2897 = vmatpush1.msra.mxu0 0.0
    %2898 = vmatprep.subr.mxu0 0.0
    %2899 = vmatpush1.msra.mxu0 0.0
    %2900 = vmatprep.subr.mxu0 0.0
    %2901 = vmatpush1.msra.mxu0 0.0
    %2902 = vmatprep.subr.mxu0 0.0
    %2903 = vmatpush1.msra.mxu0 0.0
    %2904 = vmatprep.subr.mxu0 0.0
    %2905 = vmatpush1.msra.mxu0 0.0
    %2906 = vmatprep.subr.mxu0 0.0
    %2907 = vmatpush1.msra.mxu0 0.0
    %2908 = vmatprep.subr.mxu0 0.0
    %2909 = vmatpush1.msra.mxu0 0.0
    %2910 = vmatprep.subr.mxu0 0.0
    %2911 = vmatpush1.msra.mxu0 0.0
    %2912 = vmatprep.subr.mxu0 0.0
    %2913 = vmatpush1.msra.mxu0 0.0
    %2914 = vmatprep.subr.mxu0 0.0
    %2915 = vmatpush1.msra.mxu0 0.0
    %2916 = vmatprep.subr.mxu0 0.0
    %2917 = vmatpush1.msra.mxu0 0.0
    %2918 = vmatprep.subr.mxu0 0.0
    %2919 = vmatpush1.msra.mxu0 0.0
    %2920 = vmatprep.subr.mxu0 0.0
    %2921 = vmatpush1.msra.mxu0 0.0
    %2922 = vmatprep.subr.mxu0 0.0
    %2923 = vmatpush1.msra.mxu0 0.0
    %2924 = vmatprep.subr.mxu0 0.0
    %2925 = vmatpush1.msra.mxu0 0.0
    %2926 = vmatprep.subr.mxu0 0.0
    %2927 = vmatpush1.msra.mxu0 0.0
    %2928 = vmatprep.subr.mxu0 0.0
    %2929 = vmatpush1.msra.mxu0 0.0
    %2930 = vmatprep.subr.mxu0 0.0
    %2931 = vmatpush1.msra.mxu0 0.0
    %2932 = vmatprep.mubr.f32.mxu0 0.0
    %2933 = vmatmul.mubr.f32.gmra.mrb[0].mxu0 %v2866
    %v2934 = vpop.f32.mrb[0].mxu0
    %v2935 = vadd.f32 %v2862, %v2934
    %v2936 = vpop.f32.mrb[0].mxu0
    %2937 = vdwg.mxu0
    %v2938 = vmax.f32 %v2935, 0.0
    %v2939 = vld [vmem:[#allocation2 + $0x1c0] sm:$0xff]
    %v2940 = vld [vmem:[#allocation2 + $0x1c8] sm:$0xff]
    %v2941 = vld [vmem:[#allocation2 + $0x1d0] sm:$0xff]
    %v2942 = vld [vmem:[#allocation2 + $0x1d8] sm:$0xff]
    %v2944 = vsel %vm919, %v2938, 0
    %2946 = vmatprep.subr.mxu0 0.0
    %2947 = vmatpush1.msra.mxu0 %v2939
    %2948 = vmatprep.subr.mxu0 0.0
    %2949 = vmatpush1.msra.mxu0 %v2940
    %2950 = vmatprep.subr.mxu0 0.0
    %2951 = vmatpush1.msra.mxu0 %v2941
    %2952 = vmatprep.subr.mxu0 0.0
    %2953 = vmatpush1.msra.mxu0 %v2942
    %2954 = vmatprep.subr.mxu0 0.0
    %2955 = vmatpush1.msra.mxu0 0.0
    %2956 = vmatprep.subr.mxu0 0.0
    %2957 = vmatpush1.msra.mxu0 0.0
    %2958 = vmatprep.subr.mxu0 0.0
    %2959 = vmatpush1.msra.mxu0 0.0
    %2960 = vmatprep.subr.mxu0 0.0
    %2961 = vmatpush1.msra.mxu0 0.0
    %2962 = vmatprep.subr.mxu0 0.0
    %2963 = vmatpush1.msra.mxu0 0.0
    %2964 = vmatprep.subr.mxu0 0.0
    %2965 = vmatpush1.msra.mxu0 0.0
    %2966 = vmatprep.subr.mxu0 0.0
    %2967 = vmatpush1.msra.mxu0 0.0
    %2968 = vmatprep.subr.mxu0 0.0
    %2969 = vmatpush1.msra.mxu0 0.0
    %2970 = vmatprep.subr.mxu0 0.0
    %2971 = vmatpush1.msra.mxu0 0.0
    %2972 = vmatprep.subr.mxu0 0.0
    %2973 = vmatpush1.msra.mxu0 0.0
    %2974 = vmatprep.subr.mxu0 0.0
    %2975 = vmatpush1.msra.mxu0 0.0
    %2976 = vmatprep.subr.mxu0 0.0
    %2977 = vmatpush1.msra.mxu0 0.0
    %2978 = vmatprep.subr.mxu0 0.0
    %2979 = vmatpush1.msra.mxu0 0.0
    %2980 = vmatprep.subr.mxu0 0.0
    %2981 = vmatpush1.msra.mxu0 0.0
    %2982 = vmatprep.subr.mxu0 0.0
    %2983 = vmatpush1.msra.mxu0 0.0
    %2984 = vmatprep.subr.mxu0 0.0
    %2985 = vmatpush1.msra.mxu0 0.0
    %2986 = vmatprep.subr.mxu0 0.0
    %2987 = vmatpush1.msra.mxu0 0.0
    %2988 = vmatprep.subr.mxu0 0.0
    %2989 = vmatpush1.msra.mxu0 0.0
    %2990 = vmatprep.subr.mxu0 0.0
    %2991 = vmatpush1.msra.mxu0 0.0
    %2992 = vmatprep.subr.mxu0 0.0
    %2993 = vmatpush1.msra.mxu0 0.0
    %2994 = vmatprep.subr.mxu0 0.0
    %2995 = vmatpush1.msra.mxu0 0.0
    %2996 = vmatprep.subr.mxu0 0.0
    %2997 = vmatpush1.msra.mxu0 0.0
    %2998 = vmatprep.subr.mxu0 0.0
    %2999 = vmatpush1.msra.mxu0 0.0
    %3000 = vmatprep.subr.mxu0 0.0
    %3001 = vmatpush1.msra.mxu0 0.0
    %3002 = vmatprep.subr.mxu0 0.0
    %3003 = vmatpush1.msra.mxu0 0.0
    %3004 = vmatprep.subr.mxu0 0.0
    %3005 = vmatpush1.msra.mxu0 0.0
    %3006 = vmatprep.subr.mxu0 0.0
    %3007 = vmatpush1.msra.mxu0 0.0
    %3008 = vmatprep.subr.mxu0 0.0
    %3009 = vmatpush1.msra.mxu0 0.0
    %3010 = vmatprep.mubr.f32.mxu0 0.0
    %3011 = vmatmul.mubr.f32.gmra.mrb[0].mxu0 %v2944
    %v3012 = vpop.f32.mrb[0].mxu0
    %v3013 = vadd.f32 0.0, %v3012
    %v3014 = vpop.f32.mrb[0].mxu0
    %3015 = vdwg.mxu0
    %v3016 = vmax.f32 %v3013, 0.0
    %v3017 = vld [vmem:[#allocation2 + $0x1e0] sm:$0xff]
    %v3018 = vld [vmem:[#allocation2 + $0x1e8] sm:$0xff]
    %v3019 = vld [vmem:[#allocation2 + $0x1f0] sm:$0xff]
    %v3020 = vld [vmem:[#allocation2 + $0x1f8] sm:$0xff]
    %v3022 = vsel %vm919, %v3016, 0
    %3024 = vmatprep.subr.mxu0 0.0
    %3025 = vmatpush1.msra.mxu0 %v3017
    %3026 = vmatprep.subr.mxu0 0.0
    %3027 = vmatpush1.msra.mxu0 %v3018
    %3028 = vmatprep.subr.mxu0 0.0
    %3029 = vmatpush1.msra.mxu0 %v3019
    %3030 = vmatprep.subr.mxu0 0.0
    %3031 = vmatpush1.msra.mxu0 %v3020
    %3032 = vmatprep.subr.mxu0 0.0
    %3033 = vmatpush1.msra.mxu0 0.0
    %3034 = vmatprep.subr.mxu0 0.0
    %3035 = vmatpush1.msra.mxu0 0.0
    %3036 = vmatprep.subr.mxu0 0.0
    %3037 = vmatpush1.msra.mxu0 0.0
    %3038 = vmatprep.subr.mxu0 0.0
    %3039 = vmatpush1.msra.mxu0 0.0
    %3040 = vmatprep.subr.mxu0 0.0
    %3041 = vmatpush1.msra.mxu0 0.0
    %3042 = vmatprep.subr.mxu0 0.0
    %3043 = vmatpush1.msra.mxu0 0.0
    %3044 = vmatprep.subr.mxu0 0.0
    %3045 = vmatpush1.msra.mxu0 0.0
    %3046 = vmatprep.subr.mxu0 0.0
    %3047 = vmatpush1.msra.mxu0 0.0
    %3048 = vmatprep.subr.mxu0 0.0
    %3049 = vmatpush1.msra.mxu0 0.0
    %3050 = vmatprep.subr.mxu0 0.0
    %3051 = vmatpush1.msra.mxu0 0.0
    %3052 = vmatprep.subr.mxu0 0.0
    %3053 = vmatpush1.msra.mxu0 0.0
    %3054 = vmatprep.subr.mxu0 0.0
    %3055 = vmatpush1.msra.mxu0 0.0
    %3056 = vmatprep.subr.mxu0 0.0
    %3057 = vmatpush1.msra.mxu0 0.0
    %3058 = vmatprep.subr.mxu0 0.0
    %3059 = vmatpush1.msra.mxu0 0.0
    %3060 = vmatprep.subr.mxu0 0.0
    %3061 = vmatpush1.msra.mxu0 0.0
    %3062 = vmatprep.subr.mxu0 0.0
    %3063 = vmatpush1.msra.mxu0 0.0
    %3064 = vmatprep.subr.mxu0 0.0
    %3065 = vmatpush1.msra.mxu0 0.0
    %3066 = vmatprep.subr.mxu0 0.0
    %3067 = vmatpush1.msra.mxu0 0.0
    %3068 = vmatprep.subr.mxu0 0.0
    %3069 = vmatpush1.msra.mxu0 0.0
    %3070 = vmatprep.subr.mxu0 0.0
    %3071 = vmatpush1.msra.mxu0 0.0
    %3072 = vmatprep.subr.mxu0 0.0
    %3073 = vmatpush1.msra.mxu0 0.0
    %3074 = vmatprep.subr.mxu0 0.0
    %3075 = vmatpush1.msra.mxu0 0.0
    %3076 = vmatprep.subr.mxu0 0.0
    %3077 = vmatpush1.msra.mxu0 0.0
    %3078 = vmatprep.subr.mxu0 0.0
    %3079 = vmatpush1.msra.mxu0 0.0
    %3080 = vmatprep.subr.mxu0 0.0
    %3081 = vmatpush1.msra.mxu0 0.0
    %3082 = vmatprep.subr.mxu0 0.0
    %3083 = vmatpush1.msra.mxu0 0.0
    %3084 = vmatprep.subr.mxu0 0.0
    %3085 = vmatpush1.msra.mxu0 0.0
    %3086 = vmatprep.subr.mxu0 0.0
    %3087 = vmatpush1.msra.mxu0 0.0
    %3088 = vmatprep.mubr.f32.mxu0 0.0
    %3089 = vmatmul.mubr.f32.gmra.mrb[0].mxu0 %v3022
    %v3090 = vpop.f32.mrb[0].mxu0
    %v3091 = vadd.f32 0.0, %v3090
    %v3092 = vpop.f32.mrb[0].mxu0
    %3093 = vdwg.mxu0
    %v3094 = vmax.f32 %v3091, 0.0
    %v3095 = vadd.f32 %v3094, %v2938
    %v3096 = vld [vmem:[#allocation2 + $0x200] sm:$0xff]
    %v3097 = vld [vmem:[#allocation2 + $0x208] sm:$0xff]
    %v3098 = vld [vmem:[#allocation2 + $0x210] sm:$0xff]
    %v3099 = vld [vmem:[#allocation2 + $0x218] sm:$0xff]
    %v3101 = vsel %vm919, %v3095, 0
    %3103 = vmatprep.subr.mxu0 0.0
    %3104 = vmatpush1.msra.mxu0 %v3096
    %3105 = vmatprep.subr.mxu0 0.0
    %3106 = vmatpush1.msra.mxu0 %v3097
    %3107 = vmatprep.subr.mxu0 0.0
    %3108 = vmatpush1.msra.mxu0 %v3098
    %3109 = vmatprep.subr.mxu0 0.0
    %3110 = vmatpush1.msra.mxu0 %v3099
    %3111 = vmatprep.subr.mxu0 0.0
    %3112 = vmatpush1.msra.mxu0 0.0
    %3113 = vmatprep.subr.mxu0 0.0
    %3114 = vmatpush1.msra.mxu0 0.0
    %3115 = vmatprep.subr.mxu0 0.0
    %3116 = vmatpush1.msra.mxu0 0.0
    %3117 = vmatprep.subr.mxu0 0.0
    %3118 = vmatpush1.msra.mxu0 0.0
    %3119 = vmatprep.subr.mxu0 0.0
    %3120 = vmatpush1.msra.mxu0 0.0
    %3121 = vmatprep.subr.mxu0 0.0
    %3122 = vmatpush1.msra.mxu0 0.0
    %3123 = vmatprep.subr.mxu0 0.0
    %3124 = vmatpush1.msra.mxu0 0.0
    %3125 = vmatprep.subr.mxu0 0.0
    %3126 = vmatpush1.msra.mxu0 0.0
    %3127 = vmatprep.subr.mxu0 0.0
    %3128 = vmatpush1.msra.mxu0 0.0
    %3129 = vmatprep.subr.mxu0 0.0
    %3130 = vmatpush1.msra.mxu0 0.0
    %3131 = vmatprep.subr.mxu0 0.0
    %3132 = vmatpush1.msra.mxu0 0.0
    %3133 = vmatprep.subr.mxu0 0.0
    %3134 = vmatpush1.msra.mxu0 0.0
    %3135 = vmatprep.subr.mxu0 0.0
    %3136 = vmatpush1.msra.mxu0 0.0
    %3137 = vmatprep.subr.mxu0 0.0
    %3138 = vmatpush1.msra.mxu0 0.0
    %3139 = vmatprep.subr.mxu0 0.0
    %3140 = vmatpush1.msra.mxu0 0.0
    %3141 = vmatprep.subr.mxu0 0.0
    %3142 = vmatpush1.msra.mxu0 0.0
    %3143 = vmatprep.subr.mxu0 0.0
    %3144 = vmatpush1.msra.mxu0 0.0
    %3145 = vmatprep.subr.mxu0 0.0
    %3146 = vmatpush1.msra.mxu0 0.0
    %3147 = vmatprep.subr.mxu0 0.0
    %3148 = vmatpush1.msra.mxu0 0.0
    %3149 = vmatprep.subr.mxu0 0.0
    %3150 = vmatpush1.msra.mxu0 0.0
    %3151 = vmatprep.subr.mxu0 0.0
    %3152 = vmatpush1.msra.mxu0 0.0
    %3153 = vmatprep.subr.mxu0 0.0
    %3154 = vmatpush1.msra.mxu0 0.0
    %3155 = vmatprep.subr.mxu0 0.0
    %3156 = vmatpush1.msra.mxu0 0.0
    %3157 = vmatprep.subr.mxu0 0.0
    %3158 = vmatpush1.msra.mxu0 0.0
    %3159 = vmatprep.subr.mxu0 0.0
    %3160 = vmatpush1.msra.mxu0 0.0
    %3161 = vmatprep.subr.mxu0 0.0
    %3162 = vmatpush1.msra.mxu0 0.0
    %3163 = vmatprep.subr.mxu0 0.0
    %3164 = vmatpush1.msra.mxu0 0.0
    %3165 = vmatprep.subr.mxu0 0.0
    %3166 = vmatpush1.msra.mxu0 0.0
    %3167 = vmatprep.mubr.f32.mxu0 0.0
    %3168 = vmatmul.mubr.f32.gmra.mrb[0].mxu0 %v3101
    %v3169 = vpop.f32.mrb[0].mxu0
    %v3170 = vadd.f32 0.0, %v3169
    %v3171 = vpop.f32.mrb[0].mxu0
    %3172 = vdwg.mxu0
    %v3173 = vmax.f32 %v3170, 0.0
    %v3174 = vld [vmem:[#allocation2 + $0x220] sm:$0xff]
    %v3175 = vld [vmem:[#allocation2 + $0x228] sm:$0xff]
    %v3176 = vld [vmem:[#allocation2 + $0x230] sm:$0xff]
    %v3177 = vld [vmem:[#allocation2 + $0x238] sm:$0xff]
    %v3179 = vsel %vm919, %v3173, 0
    %3181 = vmatprep.subr.mxu0 0.0
    %3182 = vmatpush1.msra.mxu0 %v3174
    %3183 = vmatprep.subr.mxu0 0.0
    %3184 = vmatpush1.msra.mxu0 %v3175
    %3185 = vmatprep.subr.mxu0 0.0
    %3186 = vmatpush1.msra.mxu0 %v3176
    %3187 = vmatprep.subr.mxu0 0.0
    %3188 = vmatpush1.msra.mxu0 %v3177
    %3189 = vmatprep.subr.mxu0 0.0
    %3190 = vmatpush1.msra.mxu0 0.0
    %3191 = vmatprep.subr.mxu0 0.0
    %3192 = vmatpush1.msra.mxu0 0.0
    %3193 = vmatprep.subr.mxu0 0.0
    %3194 = vmatpush1.msra.mxu0 0.0
    %3195 = vmatprep.subr.mxu0 0.0
    %3196 = vmatpush1.msra.mxu0 0.0
    %3197 = vmatprep.subr.mxu0 0.0
    %3198 = vmatpush1.msra.mxu0 0.0
    %3199 = vmatprep.subr.mxu0 0.0
    %3200 = vmatpush1.msra.mxu0 0.0
    %3201 = vmatprep.subr.mxu0 0.0
    %3202 = vmatpush1.msra.mxu0 0.0
    %3203 = vmatprep.subr.mxu0 0.0
    %3204 = vmatpush1.msra.mxu0 0.0
    %3205 = vmatprep.subr.mxu0 0.0
    %3206 = vmatpush1.msra.mxu0 0.0
    %3207 = vmatprep.subr.mxu0 0.0
    %3208 = vmatpush1.msra.mxu0 0.0
    %3209 = vmatprep.subr.mxu0 0.0
    %3210 = vmatpush1.msra.mxu0 0.0
    %3211 = vmatprep.subr.mxu0 0.0
    %3212 = vmatpush1.msra.mxu0 0.0
    %3213 = vmatprep.subr.mxu0 0.0
    %3214 = vmatpush1.msra.mxu0 0.0
    %3215 = vmatprep.subr.mxu0 0.0
    %3216 = vmatpush1.msra.mxu0 0.0
    %3217 = vmatprep.subr.mxu0 0.0
    %3218 = vmatpush1.msra.mxu0 0.0
    %3219 = vmatprep.subr.mxu0 0.0
    %3220 = vmatpush1.msra.mxu0 0.0
    %3221 = vmatprep.subr.mxu0 0.0
    %3222 = vmatpush1.msra.mxu0 0.0
    %3223 = vmatprep.subr.mxu0 0.0
    %3224 = vmatpush1.msra.mxu0 0.0
    %3225 = vmatprep.subr.mxu0 0.0
    %3226 = vmatpush1.msra.mxu0 0.0
    %3227 = vmatprep.subr.mxu0 0.0
    %3228 = vmatpush1.msra.mxu0 0.0
    %3229 = vmatprep.subr.mxu0 0.0
    %3230 = vmatpush1.msra.mxu0 0.0
    %3231 = vmatprep.subr.mxu0 0.0
    %3232 = vmatpush1.msra.mxu0 0.0
    %3233 = vmatprep.subr.mxu0 0.0
    %3234 = vmatpush1.msra.mxu0 0.0
    %3235 = vmatprep.subr.mxu0 0.0
    %3236 = vmatpush1.msra.mxu0 0.0
    %3237 = vmatprep.subr.mxu0 0.0
    %3238 = vmatpush1.msra.mxu0 0.0
    %3239 = vmatprep.subr.mxu0 0.0
    %3240 = vmatpush1.msra.mxu0 0.0
    %3241 = vmatprep.subr.mxu0 0.0
    %3242 = vmatpush1.msra.mxu0 0.0
    %3243 = vmatprep.subr.mxu0 0.0
    %3244 = vmatpush1.msra.mxu0 0.0
    %3245 = vmatprep.mubr.f32.mxu0 0.0
    %3246 = vmatmul.mubr.f32.gmra.mrb[0].mxu0 %v3179
    %v3247 = vpop.f32.mrb[0].mxu0
    %v3248 = vadd.f32 0.0, %v3247
    %v3249 = vpop.f32.mrb[0].mxu0
    %3250 = vdwg.mxu0
    %v3251 = vmax.f32 %v3248, 0.0
    %v3252 = vadd.f32 %v3251, %v3095
    %v3253 = vld [vmem:[#allocation2 + $0x240] sm:$0xff]
    %v3254 = vld [vmem:[#allocation2 + $0x248] sm:$0xff]
    %v3255 = vld [vmem:[#allocation2 + $0x250] sm:$0xff]
    %v3256 = vld [vmem:[#allocation2 + $0x258] sm:$0xff]
    %v3257 = vld [vmem:[#allocation2 + $0x260] sm:$0x1]
    %v3258 = vlaneseq
    %v3259 = vshrl.u32 %v3258, 7
    %v3260 = vsub.s32 0, %v3259
    %v3261 = vrot.slane %v3257, %v3260
    %v3263 = vsel %vm919, %v3252, 0
    %3265 = vmatprep.subr.mxu0 0.0
    %3266 = vmatpush1.msra.mxu0 %v3253
    %3267 = vmatprep.subr.mxu0 0.0
    %3268 = vmatpush1.msra.mxu0 %v3254
    %3269 = vmatprep.subr.mxu0 0.0
    %3270 = vmatpush1.msra.mxu0 %v3255
    %3271 = vmatprep.subr.mxu0 0.0
    %3272 = vmatpush1.msra.mxu0 %v3256
    %3273 = vmatprep.subr.mxu0 0.0
    %3274 = vmatpush1.msra.mxu0 0.0
    %3275 = vmatprep.subr.mxu0 0.0
    %3276 = vmatpush1.msra.mxu0 0.0
    %3277 = vmatprep.subr.mxu0 0.0
    %3278 = vmatpush1.msra.mxu0 0.0
    %3279 = vmatprep.subr.mxu0 0.0
    %3280 = vmatpush1.msra.mxu0 0.0
    %3281 = vmatprep.subr.mxu0 0.0
    %3282 = vmatpush1.msra.mxu0 0.0
    %3283 = vmatprep.subr.mxu0 0.0
    %3284 = vmatpush1.msra.mxu0 0.0
    %3285 = vmatprep.subr.mxu0 0.0
    %3286 = vmatpush1.msra.mxu0 0.0
    %3287 = vmatprep.subr.mxu0 0.0
    %3288 = vmatpush1.msra.mxu0 0.0
    %3289 = vmatprep.subr.mxu0 0.0
    %3290 = vmatpush1.msra.mxu0 0.0
    %3291 = vmatprep.subr.mxu0 0.0
    %3292 = vmatpush1.msra.mxu0 0.0
    %3293 = vmatprep.subr.mxu0 0.0
    %3294 = vmatpush1.msra.mxu0 0.0
    %3295 = vmatprep.subr.mxu0 0.0
    %3296 = vmatpush1.msra.mxu0 0.0
    %3297 = vmatprep.subr.mxu0 0.0
    %3298 = vmatpush1.msra.mxu0 0.0
    %3299 = vmatprep.subr.mxu0 0.0
    %3300 = vmatpush1.msra.mxu0 0.0
    %3301 = vmatprep.subr.mxu0 0.0
    %3302 = vmatpush1.msra.mxu0 0.0
    %3303 = vmatprep.subr.mxu0 0.0
    %3304 = vmatpush1.msra.mxu0 0.0
    %3305 = vmatprep.subr.mxu0 0.0
    %3306 = vmatpush1.msra.mxu0 0.0
    %3307 = vmatprep.subr.mxu0 0.0
    %3308 = vmatpush1.msra.mxu0 0.0
    %3309 = vmatprep.subr.mxu0 0.0
    %3310 = vmatpush1.msra.mxu0 0.0
    %3311 = vmatprep.subr.mxu0 0.0
    %3312 = vmatpush1.msra.mxu0 0.0
    %3313 = vmatprep.subr.mxu0 0.0
    %3314 = vmatpush1.msra.mxu0 0.0
    %3315 = vmatprep.subr.mxu0 0.0
    %3316 = vmatpush1.msra.mxu0 0.0
    %3317 = vmatprep.subr.mxu0 0.0
    %3318 = vmatpush1.msra.mxu0 0.0
    %3319 = vmatprep.subr.mxu0 0.0
    %3320 = vmatpush1.msra.mxu0 0.0
    %3321 = vmatprep.subr.mxu0 0.0
    %3322 = vmatpush1.msra.mxu0 0.0
    %3323 = vmatprep.subr.mxu0 0.0
    %3324 = vmatpush1.msra.mxu0 0.0
    %3325 = vmatprep.subr.mxu0 0.0
    %3326 = vmatpush1.msra.mxu0 0.0
    %3327 = vmatprep.subr.mxu0 0.0
    %3328 = vmatpush1.msra.mxu0 0.0
    %3329 = vmatprep.mubr.f32.mxu0 0.0
    %3330 = vmatmul.mubr.f32.gmra.mrb[0].mxu0 %v3263
    %v3331 = vpop.f32.mrb[0].mxu0
    %v3332 = vadd.f32 %v3261, %v3331
    %v3333 = vpop.f32.mrb[0].mxu0
    %3334 = vdwg.mxu0
    %3335 = vst [vmem:[%s2] sm:$0xff] %v3332
    // Predicated region
    $region14: #{run_model.1} parent=1 // pred_check
      _
    $region15: #{run_model.1} parent=1 // pred_check_branch
      %3337 = sbr.rel (0) target = $region17
    $region16: #{run_model.1} parent=1 // pred_region
      _
    $region17: #{run_model.1} parent=1 // pred_fallthru
      _
    // Predicated region
    $region18: #{run_model.1} parent=1 // pred_check
      _
    $region19: #{run_model.1} parent=1 // pred_check_branch
      %3339 = sbr.rel (0) target = $region21
    $region20: #{run_model.1} parent=1 // pred_region
      _
    $region21: #{run_model.1} parent=1 // pred_fallthru
      _
    %3340 = vsyncpa [#allocation3], 1

</llo_original>
